<compile_context>
chip_gen: v7x
topology: tpu7x:2x2x1
jax: 0.10.0
libtpu: 0.0.40
codegen_flags: <defaults>
</compile_context>

<pallas_src>
import jax
import jax.numpy as jnp
from jax.experimental import pallas as pl
from jax.experimental.pallas import tpu as pltpu


# -----------------------------------------------------------------------------
# Fused kernel: gather -> encoder GRU -> decoder GRU -> attention -> projection
# -----------------------------------------------------------------------------
def fused_poet_kernel(enc_idx_ref, dec_idx_ref, comb_emb_ref,
                      enc_wih_ref, enc_whh_ref, enc_bx_ref, enc_bh_ref,
                      dec_wih_ref, dec_whh_ref, dec_bx_ref, dec_bh_ref,
                      wa_ref, wc_ctx_ref, wc_dec_ref, bc_ref,
                      wout_ref, bout_ref,
                      out_ref,
                      xp_enc_ref, xp_dec_ref, mb_ref, do_ref):
    H = wa_ref.shape[0]
    Te = enc_idx_ref.shape[0]          # 3 + title_len
    Td = dec_idx_ref.shape[0]          # paragraph_len
    N = comb_emb_ref.shape[0]          # combined (padded) table rows

    # ---- embedding gather: one-hot @ combined table (one MXU push each) -----
    comb = comb_emb_ref[...]
    enc_oh = (enc_idx_ref[...] ==
              jax.lax.broadcasted_iota(jnp.int32, (Te, N), 1)).astype(jnp.float32)
    dec_oh = (dec_idx_ref[...] ==
              jax.lax.broadcasted_iota(jnp.int32, (Td, N), 1)).astype(jnp.float32)
    enc_in = jnp.dot(enc_oh, comb, preferred_element_type=jnp.float32)   # [Te, E]
    dec_in = jnp.dot(dec_oh, comb, preferred_element_type=jnp.float32)   # [Td, E]

    # ---- single-layer GRU (nn.GRU gate equations, gates fused r|z|n) --------
    def run_gru(x, h0, wih, whh, bx, bh, xp_ref, hs_ref):
        T = x.shape[0]
        # Hoisted input-side projection (b_ih folded in) for all timesteps,
        # spilled to VMEM scratch; read back one row per step (off crit path).
        xp_ref[...] = jnp.dot(x, wih, preferred_element_type=jnp.float32) + bx
        h = h0                                                 # [1, H]
        for t in range(T):                                     # fully unrolled
            gx = xp_ref[pl.ds(t, 1), :]                        # [1, 3H] static row
            gh = jnp.dot(h, whh, preferred_element_type=jnp.float32) + bh
            r = jax.nn.sigmoid(gx[:, 0:H] + gh[:, 0:H])
            z = jax.nn.sigmoid(gx[:, H:2 * H] + gh[:, H:2 * H])
            n = jnp.tanh(gx[:, 2 * H:3 * H] + r * gh[:, 2 * H:3 * H])
            h = n + z * (h - n)                                # == (1-z)*n + z*h
            hs_ref[pl.ds(t, 1), :] = h                         # per-step vst
        return h

    h0 = jnp.zeros((1, H), jnp.float32)
    h_enc = run_gru(enc_in, h0, enc_wih_ref[...], enc_whh_ref[...],
                    enc_bx_ref[...], enc_bh_ref[...], xp_enc_ref, mb_ref)
    run_gru(dec_in, h_enc, dec_wih_ref[...], dec_whh_ref[...],
            dec_bx_ref[...], dec_bh_ref[...], xp_dec_ref, do_ref)

    memory_bank = mb_ref[...]                                  # [Te, H]
    dec_out = do_ref[...]                                      # [Td, H]

    # ---- Luong "general" global attention -----------------------------------
    dec_wa = jnp.dot(dec_out, wa_ref[...], preferred_element_type=jnp.float32)
    scores = jax.lax.dot_general(
        dec_wa, memory_bank, (((1,), (1,)), ((), ())),
        preferred_element_type=jnp.float32)                    # [Td, Te]
    m = jnp.max(scores, axis=-1, keepdims=True)
    e = jnp.exp(scores - m)
    align = e * pl.reciprocal(jnp.sum(e, axis=-1, keepdims=True), approx=True)
    ctx = jnp.dot(align, memory_bank, preferred_element_type=jnp.float32)
    attn_h = jnp.tanh(
        jnp.dot(ctx, wc_ctx_ref[...], preferred_element_type=jnp.float32)
        + jnp.dot(dec_out, wc_dec_ref[...], preferred_element_type=jnp.float32)
        + bc_ref[...])

    # ---- output projection + exact log_softmax (dense [Td, V] store) --------
    logits = (jnp.dot(attn_h, wout_ref[...], preferred_element_type=jnp.float32)
              + bout_ref[...])                                 # [Td, V]
    lm = jnp.max(logits, axis=-1, keepdims=True)
    lse = jnp.log(jnp.sum(jnp.exp(logits - lm), axis=-1, keepdims=True)) + lm
    out_ref[...] = logits - lse


# -----------------------------------------------------------------------------
# Parameters (deterministic synthetic init, gate-fused layout)
# -----------------------------------------------------------------------------
def init_params(key, vocab_size, max_row, max_col, author_num, E, H):
    keys = jax.random.split(key, 16)

    def w(k, shape, scale=0.1):
        return (scale * jax.random.normal(k, shape)).astype(jnp.float32)

    word_emb = w(keys[3], (vocab_size, E)).at[0].set(0.0)  # padding_idx=0
    return dict(
        row_emb=w(keys[0], (max_row, E)),
        col_emb=w(keys[1], (max_col, E)),
        author_emb=w(keys[2], (author_num, E)),
        word_emb=word_emb,                       # shared by encoder & decoder
        # GRU weights concatenated along the gate axis (r|z|n).  Input bias is
        # folded into the hoisted input projection (bx); hidden bias (bh) is
        # kept separate so the r-gated candidate matches nn.GRU exactly.
        enc_wih=w(keys[4], (E, 3 * H)),
        enc_whh=w(keys[5], (H, 3 * H)),
        enc_bx=w(keys[6], (1, 3 * H)),
        enc_bh=w(keys[7], (1, 3 * H)),
        dec_wih=w(keys[8], (E, 3 * H)),
        dec_whh=w(keys[9], (H, 3 * H)),
        dec_bx=w(keys[10], (1, 3 * H)),
        dec_bh=w(keys[11], (1, 3 * H)),
        attn_wa=w(keys[12], (H, H)),
        attn_wc_ctx=w(keys[13], (H, H)),
        attn_wc_dec=w(keys[14], (H, H)),
        attn_bc=jnp.zeros((1, H), jnp.float32),
        out_w=w(keys[15], (H, vocab_size)),
        out_b=jnp.zeros((1, vocab_size), jnp.float32),
    )


# -----------------------------------------------------------------------------
# Forward pass (mirrors PoetGenModel.forward); tags_tensor unused, exactly as
# in the reference forward().
# -----------------------------------------------------------------------------
def poet_gen_forward(params, row_tensor, column_tensor, author_tensor,
                     title_tensor, paragraphs_tensor, tags_tensor):
    del tags_tensor  # unused in the reference forward
    Lt = title_tensor.shape[0]
    Ld = paragraphs_tensor.shape[0]
    H = params["attn_wa"].shape[0]
    V = params["out_w"].shape[1]

    n_row = params["row_emb"].shape[0]
    n_col = params["col_emb"].shape[0]
    n_auth = params["author_emb"].shape[0]

    # Combined embedding table (row | col | author | word), padded to 8 rows.
    comb_emb = jnp.concatenate(
        [params["row_emb"], params["col_emb"], params["author_emb"],
         params["word_emb"]], axis=0)
    N = comb_emb.shape[0]
    N_pad = -(-N // 8) * 8
    if N_pad != N:
        comb_emb = jnp.pad(comb_emb, ((0, N_pad - N), (0, 0)))

    col_off = n_row
    auth_off = n_row + n_col
    word_off = n_row + n_col + n_auth

    enc_idx = jnp.concatenate([
        row_tensor.reshape(-1).astype(jnp.int32),
        column_tensor.reshape(-1).astype(jnp.int32) + col_off,
        author_tensor.reshape(-1).astype(jnp.int32) + auth_off,
        title_tensor[:, 0].astype(jnp.int32) + word_off,
    ]).reshape(-1, 1)                                           # [3+Lt, 1]
    dec_idx = (paragraphs_tensor[:, 0].astype(jnp.int32)
               + word_off).reshape(-1, 1)                       # [Ld, 1]
    Te = 3 + Lt

    vmem = pl.BlockSpec(memory_space=pltpu.MemorySpace.VMEM)

    log_probs = pl.pallas_call(
        fused_poet_kernel,
        out_shape=jax.ShapeDtypeStruct((Ld, V), jnp.float32),
        in_specs=[vmem] * 17,
        out_specs=vmem,
        scratch_shapes=[
            pltpu.VMEM((Te, 3 * H), jnp.float32),   # encoder xp
            pltpu.VMEM((Ld, 3 * H), jnp.float32),   # decoder xp
            pltpu.VMEM((Te, H), jnp.float32),       # memory bank
            pltpu.VMEM((Ld, H), jnp.float32),       # decoder outputs
        ],
    )(enc_idx, dec_idx, comb_emb,
      params["enc_wih"], params["enc_whh"], params["enc_bx"], params["enc_bh"],
      params["dec_wih"], params["dec_whh"], params["dec_bx"], params["dec_bh"],
      params["attn_wa"], params["attn_wc_ctx"], params["attn_wc_dec"],
      params["attn_bc"], params["out_w"], params["out_b"])

    # match PyTorch output shape [len, 1, vocab]
    return log_probs[:, None, :]


if __name__ == "__main__":
    vocab_size = 128
    max_row, max_col, author_num = 10, 12, 8
    E, H = 32, 32
    title_len, para_len = 8, 8

    key = jax.random.PRNGKey(0)
    kp, k1, k2, k3, k4, k5, k6 = jax.random.split(key, 7)

    params = init_params(kp, vocab_size, max_row, max_col, author_num, E, H)

    row_tensor = jax.random.randint(k1, (1, 1), 0, max_row, dtype=jnp.int32)
    column_tensor = jax.random.randint(k2, (1, 1), 0, max_col, dtype=jnp.int32)
    author_tensor = jax.random.randint(k3, (1, 1), 0, author_num, dtype=jnp.int32)
    title_tensor = jax.random.randint(k4, (title_len, 1), 1, vocab_size, dtype=jnp.int32)
    paragraphs_tensor = jax.random.randint(k5, (para_len, 1), 1, vocab_size, dtype=jnp.int32)
    tags_tensor = jax.random.randint(k6, (title_len, 1), 1, vocab_size, dtype=jnp.int32)

    fwd = jax.jit(poet_gen_forward)
    out = fwd(params, row_tensor, column_tensor, author_tensor,
              title_tensor, paragraphs_tensor, tags_tensor)
    out = jax.block_until_ready(out)

    assert out.shape == (para_len, 1, vocab_size), out.shape
    # log-softmax sanity: exp of each row sums to ~1
    sums = jnp.exp(out).sum(axis=-1)
    assert bool(jnp.all(jnp.abs(sums - 1.0) < 1e-3)), sums

    print("KERNEL_OK")
</pallas_src>

<mosaic_0001>
module attributes {stable_mosaic.version = 11 : i64} {
  func.func @fused_poet_kernel(%arg0: memref<11x1xi32, #tpu.memory_space<vmem>>, %arg1: memref<8x1xi32, #tpu.memory_space<vmem>>, %arg2: memref<160x32xf32, #tpu.memory_space<vmem>>, %arg3: memref<32x96xf32, #tpu.memory_space<vmem>>, %arg4: memref<32x96xf32, #tpu.memory_space<vmem>>, %arg5: memref<1x96xf32, #tpu.memory_space<vmem>>, %arg6: memref<1x96xf32, #tpu.memory_space<vmem>>, %arg7: memref<32x96xf32, #tpu.memory_space<vmem>>, %arg8: memref<32x96xf32, #tpu.memory_space<vmem>>, %arg9: memref<1x96xf32, #tpu.memory_space<vmem>>, %arg10: memref<1x96xf32, #tpu.memory_space<vmem>>, %arg11: memref<32x32xf32, #tpu.memory_space<vmem>>, %arg12: memref<32x32xf32, #tpu.memory_space<vmem>>, %arg13: memref<32x32xf32, #tpu.memory_space<vmem>>, %arg14: memref<1x32xf32, #tpu.memory_space<vmem>>, %arg15: memref<32x128xf32, #tpu.memory_space<vmem>>, %arg16: memref<1x128xf32, #tpu.memory_space<vmem>>, %arg17: memref<8x128xf32, #tpu.memory_space<vmem>>, %arg18: memref<11x96xf32, #tpu.memory_space<vmem>>, %arg19: memref<8x96xf32, #tpu.memory_space<vmem>>, %arg20: memref<11x32xf32, #tpu.memory_space<vmem>>, %arg21: memref<8x32xf32, #tpu.memory_space<vmem>>) attributes {dimension_semantics = [], scalar_prefetch = 0 : i64, scratch_operands = 4 : i64, tpu.core_type = #tpu.core_type<tc>} {
    %c0 = arith.constant 0 : index
    %c0_0 = arith.constant 0 : index
    %0 = vector.load %arg2[%c0, %c0_0] : memref<160x32xf32, #tpu.memory_space<vmem>>, vector<160x32xf32>
    %c0_1 = arith.constant 0 : index
    %c0_2 = arith.constant 0 : index
    %1 = vector.load %arg0[%c0_1, %c0_2] : memref<11x1xi32, #tpu.memory_space<vmem>>, vector<11x1xi32>
    %2 = tpu.iota {dimensions = array<i32: 1>} : vector<11x160xi32>
    %3 = vector.broadcast %1 : vector<11x1xi32> to vector<11x160xi32>
    %4 = arith.cmpi eq, %3, %2 : vector<11x160xi32>
    %5 = arith.extui %4 : vector<11x160xi1> to vector<11x160xi32>
    %6 = arith.sitofp %5 : vector<11x160xi32> to vector<11x160xf32>
    %c0_3 = arith.constant 0 : index
    %c0_4 = arith.constant 0 : index
    %7 = vector.load %arg1[%c0_3, %c0_4] : memref<8x1xi32, #tpu.memory_space<vmem>>, vector<8x1xi32>
    %8 = tpu.iota {dimensions = array<i32: 1>} : vector<8x160xi32>
    %9 = vector.broadcast %7 : vector<8x1xi32> to vector<8x160xi32>
    %10 = arith.cmpi eq, %9, %8 : vector<8x160xi32>
    %11 = arith.extui %10 : vector<8x160xi1> to vector<8x160xi32>
    %12 = arith.sitofp %11 : vector<8x160xi32> to vector<8x160xf32>
    %cst = arith.constant dense<0.000000e+00> : vector<11x32xf32>
    %13 = tpu.matmul %6, %0, %cst {dimension_numbers = #tpu.dot_dimension_numbers<[1], [0], [0], [1], [0, 0, 1, 1], [], []>} : vector<11x160xf32>, vector<160x32xf32>, vector<11x32xf32> -> vector<11x32xf32>
    %cst_5 = arith.constant dense<0.000000e+00> : vector<8x32xf32>
    %14 = tpu.matmul %12, %0, %cst_5 {dimension_numbers = #tpu.dot_dimension_numbers<[1], [0], [0], [1], [0, 0, 1, 1], [], []>} : vector<8x160xf32>, vector<160x32xf32>, vector<8x32xf32> -> vector<8x32xf32>
    %cst_6 = arith.constant 0.000000e+00 : f32
    %15 = vector.broadcast %cst_6 : f32 to vector<1x32xf32>
    %c0_7 = arith.constant 0 : index
    %c0_8 = arith.constant 0 : index
    %16 = vector.load %arg3[%c0_7, %c0_8] : memref<32x96xf32, #tpu.memory_space<vmem>>, vector<32x96xf32>
    %c0_9 = arith.constant 0 : index
    %c0_10 = arith.constant 0 : index
    %17 = vector.load %arg4[%c0_9, %c0_10] : memref<32x96xf32, #tpu.memory_space<vmem>>, vector<32x96xf32>
    %c0_11 = arith.constant 0 : index
    %c0_12 = arith.constant 0 : index
    %18 = vector.load %arg5[%c0_11, %c0_12] : memref<1x96xf32, #tpu.memory_space<vmem>>, vector<1x96xf32>
    %c0_13 = arith.constant 0 : index
    %c0_14 = arith.constant 0 : index
    %19 = vector.load %arg6[%c0_13, %c0_14] : memref<1x96xf32, #tpu.memory_space<vmem>>, vector<1x96xf32>
    %cst_15 = arith.constant dense<0.000000e+00> : vector<11x96xf32>
    %20 = tpu.matmul %13, %16, %cst_15 {dimension_numbers = #tpu.dot_dimension_numbers<[1], [0], [0], [1], [0, 0, 1, 1], [], []>} : vector<11x32xf32>, vector<32x96xf32>, vector<11x96xf32> -> vector<11x96xf32>
    %21 = vector.broadcast %18 : vector<1x96xf32> to vector<11x96xf32>
    %22 = arith.addf %20, %21 : vector<11x96xf32>
    %c0_16 = arith.constant 0 : index
    %c0_17 = arith.constant 0 : index
    %23 = vector.load %arg18[%c0_16, %c0_17] : memref<11x96xf32, #tpu.memory_space<vmem>>, vector<11x96xf32>
    tpu.vector_store %arg18[%c0_16, %c0_17], %22 {strides = array<i32>} : memref<11x96xf32, #tpu.memory_space<vmem>>, vector<11x96xf32>,
    %c0_18 = arith.constant 0 : index
    %c0_19 = arith.constant 0 : index
    %24 = vector.load %arg18[%c0_18, %c0_19] : memref<11x96xf32, #tpu.memory_space<vmem>>, vector<1x96xf32>
    %cst_20 = arith.constant dense<0.000000e+00> : vector<1x96xf32>
    %25 = tpu.matmul %15, %17, %cst_20 {dimension_numbers = #tpu.dot_dimension_numbers<[1], [0], [0], [1], [0, 0, 1, 1], [], []>} : vector<1x32xf32>, vector<32x96xf32>, vector<1x96xf32> -> vector<1x96xf32>
    %26 = arith.addf %25, %19 : vector<1x96xf32>
    %27 = vector.extract_strided_slice %24 {offsets = [0, 0], sizes = [1, 32], strides = [1, 1]} : vector<1x96xf32> to vector<1x32xf32>
    %28 = vector.extract_strided_slice %26 {offsets = [0, 0], sizes = [1, 32], strides = [1, 1]} : vector<1x96xf32> to vector<1x32xf32>
    %29 = arith.addf %27, %28 : vector<1x32xf32>
    %30 = arith.negf %29 : vector<1x32xf32>
    %31 = math.exp %30 : vector<1x32xf32>
    %cst_21 = arith.constant 1.000000e+00 : f32
    %32 = vector.broadcast %cst_21 : f32 to vector<1x32xf32>
    %33 = arith.addf %32, %31 : vector<1x32xf32>
    %34 = arith.divf %32, %33 : vector<1x32xf32>
    %35 = vector.extract_strided_slice %24 {offsets = [0, 32], sizes = [1, 32], strides = [1, 1]} : vector<1x96xf32> to vector<1x32xf32>
    %36 = vector.extract_strided_slice %26 {offsets = [0, 32], sizes = [1, 32], strides = [1, 1]} : vector<1x96xf32> to vector<1x32xf32>
    %37 = arith.addf %35, %36 : vector<1x32xf32>
    %38 = arith.negf %37 : vector<1x32xf32>
    %39 = math.exp %38 : vector<1x32xf32>
    %cst_22 = arith.constant 1.000000e+00 : f32
    %40 = vector.broadcast %cst_22 : f32 to vector<1x32xf32>
    %41 = arith.addf %40, %39 : vector<1x32xf32>
    %42 = arith.divf %40, %41 : vector<1x32xf32>
    %43 = vector.extract_strided_slice %24 {offsets = [0, 64], sizes = [1, 32], strides = [1, 1]} : vector<1x96xf32> to vector<1x32xf32>
    %44 = vector.extract_strided_slice %26 {offsets = [0, 64], sizes = [1, 32], strides = [1, 1]} : vector<1x96xf32> to vector<1x32xf32>
    %45 = arith.mulf %34, %44 : vector<1x32xf32>
    %46 = arith.addf %43, %45 : vector<1x32xf32>
    %47 = math.tanh %46 : vector<1x32xf32>
    %48 = arith.subf %15, %47 : vector<1x32xf32>
    %49 = arith.mulf %42, %48 : vector<1x32xf32>
    %50 = arith.addf %47, %49 : vector<1x32xf32>
    %c0_23 = arith.constant 0 : index
    %c0_24 = arith.constant 0 : index
    %51 = vector.load %arg20[%c0_23, %c0_24] : memref<11x32xf32, #tpu.memory_space<vmem>>, vector<1x32xf32>
    tpu.vector_store %arg20[%c0_23, %c0_24], %50 {strides = array<i32>} : memref<11x32xf32, #tpu.memory_space<vmem>>, vector<1x32xf32>,
    %c1 = arith.constant 1 : index
    %c0_25 = arith.constant 0 : index
    %52 = vector.load %arg18[%c1, %c0_25] : memref<11x96xf32, #tpu.memory_space<vmem>>, vector<1x96xf32>
    %cst_26 = arith.constant dense<0.000000e+00> : vector<1x96xf32>
    %53 = tpu.matmul %50, %17, %cst_26 {dimension_numbers = #tpu.dot_dimension_numbers<[1], [0], [0], [1], [0, 0, 1, 1], [], []>} : vector<1x32xf32>, vector<32x96xf32>, vector<1x96xf32> -> vector<1x96xf32>
    %54 = arith.addf %53, %19 : vector<1x96xf32>
    %55 = vector.extract_strided_slice %52 {offsets = [0, 0], sizes = [1, 32], strides = [1, 1]} : vector<1x96xf32> to vector<1x32xf32>
    %56 = vector.extract_strided_slice %54 {offsets = [0, 0], sizes = [1, 32], strides = [1, 1]} : vector<1x96xf32> to vector<1x32xf32>
    %57 = arith.addf %55, %56 : vector<1x32xf32>
    %58 = arith.negf %57 : vector<1x32xf32>
    %59 = math.exp %58 : vector<1x32xf32>
    %cst_27 = arith.constant 1.000000e+00 : f32
    %60 = vector.broadcast %cst_27 : f32 to vector<1x32xf32>
    %61 = arith.addf %60, %59 : vector<1x32xf32>
    %62 = arith.divf %60, %61 : vector<1x32xf32>
    %63 = vector.extract_strided_slice %52 {offsets = [0, 32], sizes = [1, 32], strides = [1, 1]} : vector<1x96xf32> to vector<1x32xf32>
    %64 = vector.extract_strided_slice %54 {offsets = [0, 32], sizes = [1, 32], strides = [1, 1]} : vector<1x96xf32> to vector<1x32xf32>
    %65 = arith.addf %63, %64 : vector<1x32xf32>
    %66 = arith.negf %65 : vector<1x32xf32>
    %67 = math.exp %66 : vector<1x32xf32>
    %cst_28 = arith.constant 1.000000e+00 : f32
    %68 = vector.broadcast %cst_28 : f32 to vector<1x32xf32>
    %69 = arith.addf %68, %67 : vector<1x32xf32>
    %70 = arith.divf %68, %69 : vector<1x32xf32>
    %71 = vector.extract_strided_slice %52 {offsets = [0, 64], sizes = [1, 32], strides = [1, 1]} : vector<1x96xf32> to vector<1x32xf32>
    %72 = vector.extract_strided_slice %54 {offsets = [0, 64], sizes = [1, 32], strides = [1, 1]} : vector<1x96xf32> to vector<1x32xf32>
    %73 = arith.mulf %62, %72 : vector<1x32xf32>
    %74 = arith.addf %71, %73 : vector<1x32xf32>
    %75 = math.tanh %74 : vector<1x32xf32>
    %76 = arith.subf %50, %75 : vector<1x32xf32>
    %77 = arith.mulf %70, %76 : vector<1x32xf32>
    %78 = arith.addf %75, %77 : vector<1x32xf32>
    %c1_29 = arith.constant 1 : index
    %c0_30 = arith.constant 0 : index
    %79 = vector.load %arg20[%c1_29, %c0_30] : memref<11x32xf32, #tpu.memory_space<vmem>>, vector<1x32xf32>
    tpu.vector_store %arg20[%c1_29, %c0_30], %78 {strides = array<i32>} : memref<11x32xf32, #tpu.memory_space<vmem>>, vector<1x32xf32>,
    %c2 = arith.constant 2 : index
    %c0_31 = arith.constant 0 : index
    %80 = vector.load %arg18[%c2, %c0_31] : memref<11x96xf32, #tpu.memory_space<vmem>>, vector<1x96xf32>
    %cst_32 = arith.constant dense<0.000000e+00> : vector<1x96xf32>
    %81 = tpu.matmul %78, %17, %cst_32 {dimension_numbers = #tpu.dot_dimension_numbers<[1], [0], [0], [1], [0, 0, 1, 1], [], []>} : vector<1x32xf32>, vector<32x96xf32>, vector<1x96xf32> -> vector<1x96xf32>
    %82 = arith.addf %81, %19 : vector<1x96xf32>
    %83 = vector.extract_strided_slice %80 {offsets = [0, 0], sizes = [1, 32], strides = [1, 1]} : vector<1x96xf32> to vector<1x32xf32>
    %84 = vector.extract_strided_slice %82 {offsets = [0, 0], sizes = [1, 32], strides = [1, 1]} : vector<1x96xf32> to vector<1x32xf32>
    %85 = arith.addf %83, %84 : vector<1x32xf32>
    %86 = arith.negf %85 : vector<1x32xf32>
    %87 = math.exp %86 : vector<1x32xf32>
    %cst_33 = arith.constant 1.000000e+00 : f32
    %88 = vector.broadcast %cst_33 : f32 to vector<1x32xf32>
    %89 = arith.addf %88, %87 : vector<1x32xf32>
    %90 = arith.divf %88, %89 : vector<1x32xf32>
    %91 = vector.extract_strided_slice %80 {offsets = [0, 32], sizes = [1, 32], strides = [1, 1]} : vector<1x96xf32> to vector<1x32xf32>
    %92 = vector.extract_strided_slice %82 {offsets = [0, 32], sizes = [1, 32], strides = [1, 1]} : vector<1x96xf32> to vector<1x32xf32>
    %93 = arith.addf %91, %92 : vector<1x32xf32>
    %94 = arith.negf %93 : vector<1x32xf32>
    %95 = math.exp %94 : vector<1x32xf32>
    %cst_34 = arith.constant 1.000000e+00 : f32
    %96 = vector.broadcast %cst_34 : f32 to vector<1x32xf32>
    %97 = arith.addf %96, %95 : vector<1x32xf32>
    %98 = arith.divf %96, %97 : vector<1x32xf32>
    %99 = vector.extract_strided_slice %80 {offsets = [0, 64], sizes = [1, 32], strides = [1, 1]} : vector<1x96xf32> to vector<1x32xf32>
    %100 = vector.extract_strided_slice %82 {offsets = [0, 64], sizes = [1, 32], strides = [1, 1]} : vector<1x96xf32> to vector<1x32xf32>
    %101 = arith.mulf %90, %100 : vector<1x32xf32>
    %102 = arith.addf %99, %101 : vector<1x32xf32>
    %103 = math.tanh %102 : vector<1x32xf32>
    %104 = arith.subf %78, %103 : vector<1x32xf32>
    %105 = arith.mulf %98, %104 : vector<1x32xf32>
    %106 = arith.addf %103, %105 : vector<1x32xf32>
    %c2_35 = arith.constant 2 : index
    %c0_36 = arith.constant 0 : index
    %107 = vector.load %arg20[%c2_35, %c0_36] : memref<11x32xf32, #tpu.memory_space<vmem>>, vector<1x32xf32>
    tpu.vector_store %arg20[%c2_35, %c0_36], %106 {strides = array<i32>} : memref<11x32xf32, #tpu.memory_space<vmem>>, vector<1x32xf32>,
    %c3 = arith.constant 3 : index
    %c0_37 = arith.constant 0 : index
    %108 = vector.load %arg18[%c3, %c0_37] : memref<11x96xf32, #tpu.memory_space<vmem>>, vector<1x96xf32>
    %cst_38 = arith.constant dense<0.000000e+00> : vector<1x96xf32>
    %109 = tpu.matmul %106, %17, %cst_38 {dimension_numbers = #tpu.dot_dimension_numbers<[1], [0], [0], [1], [0, 0, 1, 1], [], []>} : vector<1x32xf32>, vector<32x96xf32>, vector<1x96xf32> -> vector<1x96xf32>
    %110 = arith.addf %109, %19 : vector<1x96xf32>
    %111 = vector.extract_strided_slice %108 {offsets = [0, 0], sizes = [1, 32], strides = [1, 1]} : vector<1x96xf32> to vector<1x32xf32>
    %112 = vector.extract_strided_slice %110 {offsets = [0, 0], sizes = [1, 32], strides = [1, 1]} : vector<1x96xf32> to vector<1x32xf32>
    %113 = arith.addf %111, %112 : vector<1x32xf32>
    %114 = arith.negf %113 : vector<1x32xf32>
    %115 = math.exp %114 : vector<1x32xf32>
    %cst_39 = arith.constant 1.000000e+00 : f32
    %116 = vector.broadcast %cst_39 : f32 to vector<1x32xf32>
    %117 = arith.addf %116, %115 : vector<1x32xf32>
    %118 = arith.divf %116, %117 : vector<1x32xf32>
    %119 = vector.extract_strided_slice %108 {offsets = [0, 32], sizes = [1, 32], strides = [1, 1]} : vector<1x96xf32> to vector<1x32xf32>
    %120 = vector.extract_strided_slice %110 {offsets = [0, 32], sizes = [1, 32], strides = [1, 1]} : vector<1x96xf32> to vector<1x32xf32>
    %121 = arith.addf %119, %120 : vector<1x32xf32>
    %122 = arith.negf %121 : vector<1x32xf32>
    %123 = math.exp %122 : vector<1x32xf32>
    %cst_40 = arith.constant 1.000000e+00 : f32
    %124 = vector.broadcast %cst_40 : f32 to vector<1x32xf32>
    %125 = arith.addf %124, %123 : vector<1x32xf32>
    %126 = arith.divf %124, %125 : vector<1x32xf32>
    %127 = vector.extract_strided_slice %108 {offsets = [0, 64], sizes = [1, 32], strides = [1, 1]} : vector<1x96xf32> to vector<1x32xf32>
    %128 = vector.extract_strided_slice %110 {offsets = [0, 64], sizes = [1, 32], strides = [1, 1]} : vector<1x96xf32> to vector<1x32xf32>
    %129 = arith.mulf %118, %128 : vector<1x32xf32>
    %130 = arith.addf %127, %129 : vector<1x32xf32>
    %131 = math.tanh %130 : vector<1x32xf32>
    %132 = arith.subf %106, %131 : vector<1x32xf32>
    %133 = arith.mulf %126, %132 : vector<1x32xf32>
    %134 = arith.addf %131, %133 : vector<1x32xf32>
    %c3_41 = arith.constant 3 : index
    %c0_42 = arith.constant 0 : index
    %135 = vector.load %arg20[%c3_41, %c0_42] : memref<11x32xf32, #tpu.memory_space<vmem>>, vector<1x32xf32>
    tpu.vector_store %arg20[%c3_41, %c0_42], %134 {strides = array<i32>} : memref<11x32xf32, #tpu.memory_space<vmem>>, vector<1x32xf32>,
    %c4 = arith.constant 4 : index
    %c0_43 = arith.constant 0 : index
    %136 = vector.load %arg18[%c4, %c0_43] : memref<11x96xf32, #tpu.memory_space<vmem>>, vector<1x96xf32>
    %cst_44 = arith.constant dense<0.000000e+00> : vector<1x96xf32>
    %137 = tpu.matmul %134, %17, %cst_44 {dimension_numbers = #tpu.dot_dimension_numbers<[1], [0], [0], [1], [0, 0, 1, 1], [], []>} : vector<1x32xf32>, vector<32x96xf32>, vector<1x96xf32> -> vector<1x96xf32>
    %138 = arith.addf %137, %19 : vector<1x96xf32>
    %139 = vector.extract_strided_slice %136 {offsets = [0, 0], sizes = [1, 32], strides = [1, 1]} : vector<1x96xf32> to vector<1x32xf32>
    %140 = vector.extract_strided_slice %138 {offsets = [0, 0], sizes = [1, 32], strides = [1, 1]} : vector<1x96xf32> to vector<1x32xf32>
    %141 = arith.addf %139, %140 : vector<1x32xf32>
    %142 = arith.negf %141 : vector<1x32xf32>
    %143 = math.exp %142 : vector<1x32xf32>
    %cst_45 = arith.constant 1.000000e+00 : f32
    %144 = vector.broadcast %cst_45 : f32 to vector<1x32xf32>
    %145 = arith.addf %144, %143 : vector<1x32xf32>
    %146 = arith.divf %144, %145 : vector<1x32xf32>
    %147 = vector.extract_strided_slice %136 {offsets = [0, 32], sizes = [1, 32], strides = [1, 1]} : vector<1x96xf32> to vector<1x32xf32>
    %148 = vector.extract_strided_slice %138 {offsets = [0, 32], sizes = [1, 32], strides = [1, 1]} : vector<1x96xf32> to vector<1x32xf32>
    %149 = arith.addf %147, %148 : vector<1x32xf32>
    %150 = arith.negf %149 : vector<1x32xf32>
    %151 = math.exp %150 : vector<1x32xf32>
    %cst_46 = arith.constant 1.000000e+00 : f32
    %152 = vector.broadcast %cst_46 : f32 to vector<1x32xf32>
    %153 = arith.addf %152, %151 : vector<1x32xf32>
    %154 = arith.divf %152, %153 : vector<1x32xf32>
    %155 = vector.extract_strided_slice %136 {offsets = [0, 64], sizes = [1, 32], strides = [1, 1]} : vector<1x96xf32> to vector<1x32xf32>
    %156 = vector.extract_strided_slice %138 {offsets = [0, 64], sizes = [1, 32], strides = [1, 1]} : vector<1x96xf32> to vector<1x32xf32>
    %157 = arith.mulf %146, %156 : vector<1x32xf32>
    %158 = arith.addf %155, %157 : vector<1x32xf32>
    %159 = math.tanh %158 : vector<1x32xf32>
    %160 = arith.subf %134, %159 : vector<1x32xf32>
    %161 = arith.mulf %154, %160 : vector<1x32xf32>
    %162 = arith.addf %159, %161 : vector<1x32xf32>
    %c4_47 = arith.constant 4 : index
    %c0_48 = arith.constant 0 : index
    %163 = vector.load %arg20[%c4_47, %c0_48] : memref<11x32xf32, #tpu.memory_space<vmem>>, vector<1x32xf32>
    tpu.vector_store %arg20[%c4_47, %c0_48], %162 {strides = array<i32>} : memref<11x32xf32, #tpu.memory_space<vmem>>, vector<1x32xf32>,
    %c5 = arith.constant 5 : index
    %c0_49 = arith.constant 0 : index
    %164 = vector.load %arg18[%c5, %c0_49] : memref<11x96xf32, #tpu.memory_space<vmem>>, vector<1x96xf32>
    %cst_50 = arith.constant dense<0.000000e+00> : vector<1x96xf32>
    %165 = tpu.matmul %162, %17, %cst_50 {dimension_numbers = #tpu.dot_dimension_numbers<[1], [0], [0], [1], [0, 0, 1, 1], [], []>} : vector<1x32xf32>, vector<32x96xf32>, vector<1x96xf32> -> vector<1x96xf32>
    %166 = arith.addf %165, %19 : vector<1x96xf32>
    %167 = vector.extract_strided_slice %164 {offsets = [0, 0], sizes = [1, 32], strides = [1, 1]} : vector<1x96xf32> to vector<1x32xf32>
    %168 = vector.extract_strided_slice %166 {offsets = [0, 0], sizes = [1, 32], strides = [1, 1]} : vector<1x96xf32> to vector<1x32xf32>
    %169 = arith.addf %167, %168 : vector<1x32xf32>
    %170 = arith.negf %169 : vector<1x32xf32>
    %171 = math.exp %170 : vector<1x32xf32>
    %cst_51 = arith.constant 1.000000e+00 : f32
    %172 = vector.broadcast %cst_51 : f32 to vector<1x32xf32>
    %173 = arith.addf %172, %171 : vector<1x32xf32>
    %174 = arith.divf %172, %173 : vector<1x32xf32>
    %175 = vector.extract_strided_slice %164 {offsets = [0, 32], sizes = [1, 32], strides = [1, 1]} : vector<1x96xf32> to vector<1x32xf32>
    %176 = vector.extract_strided_slice %166 {offsets = [0, 32], sizes = [1, 32], strides = [1, 1]} : vector<1x96xf32> to vector<1x32xf32>
    %177 = arith.addf %175, %176 : vector<1x32xf32>
    %178 = arith.negf %177 : vector<1x32xf32>
    %179 = math.exp %178 : vector<1x32xf32>
    %cst_52 = arith.constant 1.000000e+00 : f32
    %180 = vector.broadcast %cst_52 : f32 to vector<1x32xf32>
    %181 = arith.addf %180, %179 : vector<1x32xf32>
    %182 = arith.divf %180, %181 : vector<1x32xf32>
    %183 = vector.extract_strided_slice %164 {offsets = [0, 64], sizes = [1, 32], strides = [1, 1]} : vector<1x96xf32> to vector<1x32xf32>
    %184 = vector.extract_strided_slice %166 {offsets = [0, 64], sizes = [1, 32], strides = [1, 1]} : vector<1x96xf32> to vector<1x32xf32>
    %185 = arith.mulf %174, %184 : vector<1x32xf32>
    %186 = arith.addf %183, %185 : vector<1x32xf32>
    %187 = math.tanh %186 : vector<1x32xf32>
    %188 = arith.subf %162, %187 : vector<1x32xf32>
    %189 = arith.mulf %182, %188 : vector<1x32xf32>
    %190 = arith.addf %187, %189 : vector<1x32xf32>
    %c5_53 = arith.constant 5 : index
    %c0_54 = arith.constant 0 : index
    %191 = vector.load %arg20[%c5_53, %c0_54] : memref<11x32xf32, #tpu.memory_space<vmem>>, vector<1x32xf32>
    tpu.vector_store %arg20[%c5_53, %c0_54], %190 {strides = array<i32>} : memref<11x32xf32, #tpu.memory_space<vmem>>, vector<1x32xf32>,
    %c6 = arith.constant 6 : index
    %c0_55 = arith.constant 0 : index
    %192 = vector.load %arg18[%c6, %c0_55] : memref<11x96xf32, #tpu.memory_space<vmem>>, vector<1x96xf32>
    %cst_56 = arith.constant dense<0.000000e+00> : vector<1x96xf32>
    %193 = tpu.matmul %190, %17, %cst_56 {dimension_numbers = #tpu.dot_dimension_numbers<[1], [0], [0], [1], [0, 0, 1, 1], [], []>} : vector<1x32xf32>, vector<32x96xf32>, vector<1x96xf32> -> vector<1x96xf32>
    %194 = arith.addf %193, %19 : vector<1x96xf32>
    %195 = vector.extract_strided_slice %192 {offsets = [0, 0], sizes = [1, 32], strides = [1, 1]} : vector<1x96xf32> to vector<1x32xf32>
    %196 = vector.extract_strided_slice %194 {offsets = [0, 0], sizes = [1, 32], strides = [1, 1]} : vector<1x96xf32> to vector<1x32xf32>
    %197 = arith.addf %195, %196 : vector<1x32xf32>
    %198 = arith.negf %197 : vector<1x32xf32>
    %199 = math.exp %198 : vector<1x32xf32>
    %cst_57 = arith.constant 1.000000e+00 : f32
    %200 = vector.broadcast %cst_57 : f32 to vector<1x32xf32>
    %201 = arith.addf %200, %199 : vector<1x32xf32>
    %202 = arith.divf %200, %201 : vector<1x32xf32>
    %203 = vector.extract_strided_slice %192 {offsets = [0, 32], sizes = [1, 32], strides = [1, 1]} : vector<1x96xf32> to vector<1x32xf32>
    %204 = vector.extract_strided_slice %194 {offsets = [0, 32], sizes = [1, 32], strides = [1, 1]} : vector<1x96xf32> to vector<1x32xf32>
    %205 = arith.addf %203, %204 : vector<1x32xf32>
    %206 = arith.negf %205 : vector<1x32xf32>
    %207 = math.exp %206 : vector<1x32xf32>
    %cst_58 = arith.constant 1.000000e+00 : f32
    %208 = vector.broadcast %cst_58 : f32 to vector<1x32xf32>
    %209 = arith.addf %208, %207 : vector<1x32xf32>
    %210 = arith.divf %208, %209 : vector<1x32xf32>
    %211 = vector.extract_strided_slice %192 {offsets = [0, 64], sizes = [1, 32], strides = [1, 1]} : vector<1x96xf32> to vector<1x32xf32>
    %212 = vector.extract_strided_slice %194 {offsets = [0, 64], sizes = [1, 32], strides = [1, 1]} : vector<1x96xf32> to vector<1x32xf32>
    %213 = arith.mulf %202, %212 : vector<1x32xf32>
    %214 = arith.addf %211, %213 : vector<1x32xf32>
    %215 = math.tanh %214 : vector<1x32xf32>
    %216 = arith.subf %190, %215 : vector<1x32xf32>
    %217 = arith.mulf %210, %216 : vector<1x32xf32>
    %218 = arith.addf %215, %217 : vector<1x32xf32>
    %c6_59 = arith.constant 6 : index
    %c0_60 = arith.constant 0 : index
    %219 = vector.load %arg20[%c6_59, %c0_60] : memref<11x32xf32, #tpu.memory_space<vmem>>, vector<1x32xf32>
    tpu.vector_store %arg20[%c6_59, %c0_60], %218 {strides = array<i32>} : memref<11x32xf32, #tpu.memory_space<vmem>>, vector<1x32xf32>,
    %c7 = arith.constant 7 : index
    %c0_61 = arith.constant 0 : index
    %220 = vector.load %arg18[%c7, %c0_61] : memref<11x96xf32, #tpu.memory_space<vmem>>, vector<1x96xf32>
    %cst_62 = arith.constant dense<0.000000e+00> : vector<1x96xf32>
    %221 = tpu.matmul %218, %17, %cst_62 {dimension_numbers = #tpu.dot_dimension_numbers<[1], [0], [0], [1], [0, 0, 1, 1], [], []>} : vector<1x32xf32>, vector<32x96xf32>, vector<1x96xf32> -> vector<1x96xf32>
    %222 = arith.addf %221, %19 : vector<1x96xf32>
    %223 = vector.extract_strided_slice %220 {offsets = [0, 0], sizes = [1, 32], strides = [1, 1]} : vector<1x96xf32> to vector<1x32xf32>
    %224 = vector.extract_strided_slice %222 {offsets = [0, 0], sizes = [1, 32], strides = [1, 1]} : vector<1x96xf32> to vector<1x32xf32>
    %225 = arith.addf %223, %224 : vector<1x32xf32>
    %226 = arith.negf %225 : vector<1x32xf32>
    %227 = math.exp %226 : vector<1x32xf32>
    %cst_63 = arith.constant 1.000000e+00 : f32
    %228 = vector.broadcast %cst_63 : f32 to vector<1x32xf32>
    %229 = arith.addf %228, %227 : vector<1x32xf32>
    %230 = arith.divf %228, %229 : vector<1x32xf32>
    %231 = vector.extract_strided_slice %220 {offsets = [0, 32], sizes = [1, 32], strides = [1, 1]} : vector<1x96xf32> to vector<1x32xf32>
    %232 = vector.extract_strided_slice %222 {offsets = [0, 32], sizes = [1, 32], strides = [1, 1]} : vector<1x96xf32> to vector<1x32xf32>
    %233 = arith.addf %231, %232 : vector<1x32xf32>
    %234 = arith.negf %233 : vector<1x32xf32>
    %235 = math.exp %234 : vector<1x32xf32>
    %cst_64 = arith.constant 1.000000e+00 : f32
    %236 = vector.broadcast %cst_64 : f32 to vector<1x32xf32>
    %237 = arith.addf %236, %235 : vector<1x32xf32>
    %238 = arith.divf %236, %237 : vector<1x32xf32>
    %239 = vector.extract_strided_slice %220 {offsets = [0, 64], sizes = [1, 32], strides = [1, 1]} : vector<1x96xf32> to vector<1x32xf32>
    %240 = vector.extract_strided_slice %222 {offsets = [0, 64], sizes = [1, 32], strides = [1, 1]} : vector<1x96xf32> to vector<1x32xf32>
    %241 = arith.mulf %230, %240 : vector<1x32xf32>
    %242 = arith.addf %239, %241 : vector<1x32xf32>
    %243 = math.tanh %242 : vector<1x32xf32>
    %244 = arith.subf %218, %243 : vector<1x32xf32>
    %245 = arith.mulf %238, %244 : vector<1x32xf32>
    %246 = arith.addf %243, %245 : vector<1x32xf32>
    %c7_65 = arith.constant 7 : index
    %c0_66 = arith.constant 0 : index
    %247 = vector.load %arg20[%c7_65, %c0_66] : memref<11x32xf32, #tpu.memory_space<vmem>>, vector<1x32xf32>
    tpu.vector_store %arg20[%c7_65, %c0_66], %246 {strides = array<i32>} : memref<11x32xf32, #tpu.memory_space<vmem>>, vector<1x32xf32>,
    %c8 = arith.constant 8 : index
    %c0_67 = arith.constant 0 : index
    %248 = vector.load %arg18[%c8, %c0_67] : memref<11x96xf32, #tpu.memory_space<vmem>>, vector<1x96xf32>
    %cst_68 = arith.constant dense<0.000000e+00> : vector<1x96xf32>
    %249 = tpu.matmul %246, %17, %cst_68 {dimension_numbers = #tpu.dot_dimension_numbers<[1], [0], [0], [1], [0, 0, 1, 1], [], []>} : vector<1x32xf32>, vector<32x96xf32>, vector<1x96xf32> -> vector<1x96xf32>
    %250 = arith.addf %249, %19 : vector<1x96xf32>
    %251 = vector.extract_strided_slice %248 {offsets = [0, 0], sizes = [1, 32], strides = [1, 1]} : vector<1x96xf32> to vector<1x32xf32>
    %252 = vector.extract_strided_slice %250 {offsets = [0, 0], sizes = [1, 32], strides = [1, 1]} : vector<1x96xf32> to vector<1x32xf32>
    %253 = arith.addf %251, %252 : vector<1x32xf32>
    %254 = arith.negf %253 : vector<1x32xf32>
    %255 = math.exp %254 : vector<1x32xf32>
    %cst_69 = arith.constant 1.000000e+00 : f32
    %256 = vector.broadcast %cst_69 : f32 to vector<1x32xf32>
    %257 = arith.addf %256, %255 : vector<1x32xf32>
    %258 = arith.divf %256, %257 : vector<1x32xf32>
    %259 = vector.extract_strided_slice %248 {offsets = [0, 32], sizes = [1, 32], strides = [1, 1]} : vector<1x96xf32> to vector<1x32xf32>
    %260 = vector.extract_strided_slice %250 {offsets = [0, 32], sizes = [1, 32], strides = [1, 1]} : vector<1x96xf32> to vector<1x32xf32>
    %261 = arith.addf %259, %260 : vector<1x32xf32>
    %262 = arith.negf %261 : vector<1x32xf32>
    %263 = math.exp %262 : vector<1x32xf32>
    %cst_70 = arith.constant 1.000000e+00 : f32
    %264 = vector.broadcast %cst_70 : f32 to vector<1x32xf32>
    %265 = arith.addf %264, %263 : vector<1x32xf32>
    %266 = arith.divf %264, %265 : vector<1x32xf32>
    %267 = vector.extract_strided_slice %248 {offsets = [0, 64], sizes = [1, 32], strides = [1, 1]} : vector<1x96xf32> to vector<1x32xf32>
    %268 = vector.extract_strided_slice %250 {offsets = [0, 64], sizes = [1, 32], strides = [1, 1]} : vector<1x96xf32> to vector<1x32xf32>
    %269 = arith.mulf %258, %268 : vector<1x32xf32>
    %270 = arith.addf %267, %269 : vector<1x32xf32>
    %271 = math.tanh %270 : vector<1x32xf32>
    %272 = arith.subf %246, %271 : vector<1x32xf32>
    %273 = arith.mulf %266, %272 : vector<1x32xf32>
    %274 = arith.addf %271, %273 : vector<1x32xf32>
    %c8_71 = arith.constant 8 : index
    %c0_72 = arith.constant 0 : index
    %275 = vector.load %arg20[%c8_71, %c0_72] : memref<11x32xf32, #tpu.memory_space<vmem>>, vector<1x32xf32>
    tpu.vector_store %arg20[%c8_71, %c0_72], %274 {strides = array<i32>} : memref<11x32xf32, #tpu.memory_space<vmem>>, vector<1x32xf32>,
    %c9 = arith.constant 9 : index
    %c0_73 = arith.constant 0 : index
    %276 = vector.load %arg18[%c9, %c0_73] : memref<11x96xf32, #tpu.memory_space<vmem>>, vector<1x96xf32>
    %cst_74 = arith.constant dense<0.000000e+00> : vector<1x96xf32>
    %277 = tpu.matmul %274, %17, %cst_74 {dimension_numbers = #tpu.dot_dimension_numbers<[1], [0], [0], [1], [0, 0, 1, 1], [], []>} : vector<1x32xf32>, vector<32x96xf32>, vector<1x96xf32> -> vector<1x96xf32>
    %278 = arith.addf %277, %19 : vector<1x96xf32>
    %279 = vector.extract_strided_slice %276 {offsets = [0, 0], sizes = [1, 32], strides = [1, 1]} : vector<1x96xf32> to vector<1x32xf32>
    %280 = vector.extract_strided_slice %278 {offsets = [0, 0], sizes = [1, 32], strides = [1, 1]} : vector<1x96xf32> to vector<1x32xf32>
    %281 = arith.addf %279, %280 : vector<1x32xf32>
    %282 = arith.negf %281 : vector<1x32xf32>
    %283 = math.exp %282 : vector<1x32xf32>
    %cst_75 = arith.constant 1.000000e+00 : f32
    %284 = vector.broadcast %cst_75 : f32 to vector<1x32xf32>
    %285 = arith.addf %284, %283 : vector<1x32xf32>
    %286 = arith.divf %284, %285 : vector<1x32xf32>
    %287 = vector.extract_strided_slice %276 {offsets = [0, 32], sizes = [1, 32], strides = [1, 1]} : vector<1x96xf32> to vector<1x32xf32>
    %288 = vector.extract_strided_slice %278 {offsets = [0, 32], sizes = [1, 32], strides = [1, 1]} : vector<1x96xf32> to vector<1x32xf32>
    %289 = arith.addf %287, %288 : vector<1x32xf32>
    %290 = arith.negf %289 : vector<1x32xf32>
    %291 = math.exp %290 : vector<1x32xf32>
    %cst_76 = arith.constant 1.000000e+00 : f32
    %292 = vector.broadcast %cst_76 : f32 to vector<1x32xf32>
    %293 = arith.addf %292, %291 : vector<1x32xf32>
    %294 = arith.divf %292, %293 : vector<1x32xf32>
    %295 = vector.extract_strided_slice %276 {offsets = [0, 64], sizes = [1, 32], strides = [1, 1]} : vector<1x96xf32> to vector<1x32xf32>
    %296 = vector.extract_strided_slice %278 {offsets = [0, 64], sizes = [1, 32], strides = [1, 1]} : vector<1x96xf32> to vector<1x32xf32>
    %297 = arith.mulf %286, %296 : vector<1x32xf32>
    %298 = arith.addf %295, %297 : vector<1x32xf32>
    %299 = math.tanh %298 : vector<1x32xf32>
    %300 = arith.subf %274, %299 : vector<1x32xf32>
    %301 = arith.mulf %294, %300 : vector<1x32xf32>
    %302 = arith.addf %299, %301 : vector<1x32xf32>
    %c9_77 = arith.constant 9 : index
    %c0_78 = arith.constant 0 : index
    %303 = vector.load %arg20[%c9_77, %c0_78] : memref<11x32xf32, #tpu.memory_space<vmem>>, vector<1x32xf32>
    tpu.vector_store %arg20[%c9_77, %c0_78], %302 {strides = array<i32>} : memref<11x32xf32, #tpu.memory_space<vmem>>, vector<1x32xf32>,
    %c10 = arith.constant 10 : index
    %c0_79 = arith.constant 0 : index
    %304 = vector.load %arg18[%c10, %c0_79] : memref<11x96xf32, #tpu.memory_space<vmem>>, vector<1x96xf32>
    %cst_80 = arith.constant dense<0.000000e+00> : vector<1x96xf32>
    %305 = tpu.matmul %302, %17, %cst_80 {dimension_numbers = #tpu.dot_dimension_numbers<[1], [0], [0], [1], [0, 0, 1, 1], [], []>} : vector<1x32xf32>, vector<32x96xf32>, vector<1x96xf32> -> vector<1x96xf32>
    %306 = arith.addf %305, %19 : vector<1x96xf32>
    %307 = vector.extract_strided_slice %304 {offsets = [0, 0], sizes = [1, 32], strides = [1, 1]} : vector<1x96xf32> to vector<1x32xf32>
    %308 = vector.extract_strided_slice %306 {offsets = [0, 0], sizes = [1, 32], strides = [1, 1]} : vector<1x96xf32> to vector<1x32xf32>
    %309 = arith.addf %307, %308 : vector<1x32xf32>
    %310 = arith.negf %309 : vector<1x32xf32>
    %311 = math.exp %310 : vector<1x32xf32>
    %cst_81 = arith.constant 1.000000e+00 : f32
    %312 = vector.broadcast %cst_81 : f32 to vector<1x32xf32>
    %313 = arith.addf %312, %311 : vector<1x32xf32>
    %314 = arith.divf %312, %313 : vector<1x32xf32>
    %315 = vector.extract_strided_slice %304 {offsets = [0, 32], sizes = [1, 32], strides = [1, 1]} : vector<1x96xf32> to vector<1x32xf32>
    %316 = vector.extract_strided_slice %306 {offsets = [0, 32], sizes = [1, 32], strides = [1, 1]} : vector<1x96xf32> to vector<1x32xf32>
    %317 = arith.addf %315, %316 : vector<1x32xf32>
    %318 = arith.negf %317 : vector<1x32xf32>
    %319 = math.exp %318 : vector<1x32xf32>
    %cst_82 = arith.constant 1.000000e+00 : f32
    %320 = vector.broadcast %cst_82 : f32 to vector<1x32xf32>
    %321 = arith.addf %320, %319 : vector<1x32xf32>
    %322 = arith.divf %320, %321 : vector<1x32xf32>
    %323 = vector.extract_strided_slice %304 {offsets = [0, 64], sizes = [1, 32], strides = [1, 1]} : vector<1x96xf32> to vector<1x32xf32>
    %324 = vector.extract_strided_slice %306 {offsets = [0, 64], sizes = [1, 32], strides = [1, 1]} : vector<1x96xf32> to vector<1x32xf32>
    %325 = arith.mulf %314, %324 : vector<1x32xf32>
    %326 = arith.addf %323, %325 : vector<1x32xf32>
    %327 = math.tanh %326 : vector<1x32xf32>
    %328 = arith.subf %302, %327 : vector<1x32xf32>
    %329 = arith.mulf %322, %328 : vector<1x32xf32>
    %330 = arith.addf %327, %329 : vector<1x32xf32>
    %c10_83 = arith.constant 10 : index
    %c0_84 = arith.constant 0 : index
    %331 = vector.load %arg20[%c10_83, %c0_84] : memref<11x32xf32, #tpu.memory_space<vmem>>, vector<1x32xf32>
    tpu.vector_store %arg20[%c10_83, %c0_84], %330 {strides = array<i32>} : memref<11x32xf32, #tpu.memory_space<vmem>>, vector<1x32xf32>,
    %c0_85 = arith.constant 0 : index
    %c0_86 = arith.constant 0 : index
    %332 = vector.load %arg7[%c0_85, %c0_86] : memref<32x96xf32, #tpu.memory_space<vmem>>, vector<32x96xf32>
    %c0_87 = arith.constant 0 : index
    %c0_88 = arith.constant 0 : index
    %333 = vector.load %arg8[%c0_87, %c0_88] : memref<32x96xf32, #tpu.memory_space<vmem>>, vector<32x96xf32>
    %c0_89 = arith.constant 0 : index
    %c0_90 = arith.constant 0 : index
    %334 = vector.load %arg9[%c0_89, %c0_90] : memref<1x96xf32, #tpu.memory_space<vmem>>, vector<1x96xf32>
    %c0_91 = arith.constant 0 : index
    %c0_92 = arith.constant 0 : index
    %335 = vector.load %arg10[%c0_91, %c0_92] : memref<1x96xf32, #tpu.memory_space<vmem>>, vector<1x96xf32>
    %cst_93 = arith.constant dense<0.000000e+00> : vector<8x96xf32>
    %336 = tpu.matmul %14, %332, %cst_93 {dimension_numbers = #tpu.dot_dimension_numbers<[1], [0], [0], [1], [0, 0, 1, 1], [], []>} : vector<8x32xf32>, vector<32x96xf32>, vector<8x96xf32> -> vector<8x96xf32>
    %337 = vector.broadcast %334 : vector<1x96xf32> to vector<8x96xf32>
    %338 = arith.addf %336, %337 : vector<8x96xf32>
    %c0_94 = arith.constant 0 : index
    %c0_95 = arith.constant 0 : index
    %339 = vector.load %arg19[%c0_94, %c0_95] : memref<8x96xf32, #tpu.memory_space<vmem>>, vector<8x96xf32>
    tpu.vector_store %arg19[%c0_94, %c0_95], %338 {strides = array<i32>} : memref<8x96xf32, #tpu.memory_space<vmem>>, vector<8x96xf32>,
    %c0_96 = arith.constant 0 : index
    %c0_97 = arith.constant 0 : index
    %340 = vector.load %arg19[%c0_96, %c0_97] : memref<8x96xf32, #tpu.memory_space<vmem>>, vector<1x96xf32>
    %cst_98 = arith.constant dense<0.000000e+00> : vector<1x96xf32>
    %341 = tpu.matmul %330, %333, %cst_98 {dimension_numbers = #tpu.dot_dimension_numbers<[1], [0], [0], [1], [0, 0, 1, 1], [], []>} : vector<1x32xf32>, vector<32x96xf32>, vector<1x96xf32> -> vector<1x96xf32>
    %342 = arith.addf %341, %335 : vector<1x96xf32>
    %343 = vector.extract_strided_slice %340 {offsets = [0, 0], sizes = [1, 32], strides = [1, 1]} : vector<1x96xf32> to vector<1x32xf32>
    %344 = vector.extract_strided_slice %342 {offsets = [0, 0], sizes = [1, 32], strides = [1, 1]} : vector<1x96xf32> to vector<1x32xf32>
    %345 = arith.addf %343, %344 : vector<1x32xf32>
    %346 = arith.negf %345 : vector<1x32xf32>
    %347 = math.exp %346 : vector<1x32xf32>
    %cst_99 = arith.constant 1.000000e+00 : f32
    %348 = vector.broadcast %cst_99 : f32 to vector<1x32xf32>
    %349 = arith.addf %348, %347 : vector<1x32xf32>
    %350 = arith.divf %348, %349 : vector<1x32xf32>
    %351 = vector.extract_strided_slice %340 {offsets = [0, 32], sizes = [1, 32], strides = [1, 1]} : vector<1x96xf32> to vector<1x32xf32>
    %352 = vector.extract_strided_slice %342 {offsets = [0, 32], sizes = [1, 32], strides = [1, 1]} : vector<1x96xf32> to vector<1x32xf32>
    %353 = arith.addf %351, %352 : vector<1x32xf32>
    %354 = arith.negf %353 : vector<1x32xf32>
    %355 = math.exp %354 : vector<1x32xf32>
    %cst_100 = arith.constant 1.000000e+00 : f32
    %356 = vector.broadcast %cst_100 : f32 to vector<1x32xf32>
    %357 = arith.addf %356, %355 : vector<1x32xf32>
    %358 = arith.divf %356, %357 : vector<1x32xf32>
    %359 = vector.extract_strided_slice %340 {offsets = [0, 64], sizes = [1, 32], strides = [1, 1]} : vector<1x96xf32> to vector<1x32xf32>
    %360 = vector.extract_strided_slice %342 {offsets = [0, 64], sizes = [1, 32], strides = [1, 1]} : vector<1x96xf32> to vector<1x32xf32>
    %361 = arith.mulf %350, %360 : vector<1x32xf32>
    %362 = arith.addf %359, %361 : vector<1x32xf32>
    %363 = math.tanh %362 : vector<1x32xf32>
    %364 = arith.subf %330, %363 : vector<1x32xf32>
    %365 = arith.mulf %358, %364 : vector<1x32xf32>
    %366 = arith.addf %363, %365 : vector<1x32xf32>
    %c0_101 = arith.constant 0 : index
    %c0_102 = arith.constant 0 : index
    %367 = vector.load %arg21[%c0_101, %c0_102] : memref<8x32xf32, #tpu.memory_space<vmem>>, vector<1x32xf32>
    tpu.vector_store %arg21[%c0_101, %c0_102], %366 {strides = array<i32>} : memref<8x32xf32, #tpu.memory_space<vmem>>, vector<1x32xf32>,
    %c1_103 = arith.constant 1 : index
    %c0_104 = arith.constant 0 : index
    %368 = vector.load %arg19[%c1_103, %c0_104] : memref<8x96xf32, #tpu.memory_space<vmem>>, vector<1x96xf32>
    %cst_105 = arith.constant dense<0.000000e+00> : vector<1x96xf32>
    %369 = tpu.matmul %366, %333, %cst_105 {dimension_numbers = #tpu.dot_dimension_numbers<[1], [0], [0], [1], [0, 0, 1, 1], [], []>} : vector<1x32xf32>, vector<32x96xf32>, vector<1x96xf32> -> vector<1x96xf32>
    %370 = arith.addf %369, %335 : vector<1x96xf32>
    %371 = vector.extract_strided_slice %368 {offsets = [0, 0], sizes = [1, 32], strides = [1, 1]} : vector<1x96xf32> to vector<1x32xf32>
    %372 = vector.extract_strided_slice %370 {offsets = [0, 0], sizes = [1, 32], strides = [1, 1]} : vector<1x96xf32> to vector<1x32xf32>
    %373 = arith.addf %371, %372 : vector<1x32xf32>
    %374 = arith.negf %373 : vector<1x32xf32>
    %375 = math.exp %374 : vector<1x32xf32>
    %cst_106 = arith.constant 1.000000e+00 : f32
    %376 = vector.broadcast %cst_106 : f32 to vector<1x32xf32>
    %377 = arith.addf %376, %375 : vector<1x32xf32>
    %378 = arith.divf %376, %377 : vector<1x32xf32>
    %379 = vector.extract_strided_slice %368 {offsets = [0, 32], sizes = [1, 32], strides = [1, 1]} : vector<1x96xf32> to vector<1x32xf32>
    %380 = vector.extract_strided_slice %370 {offsets = [0, 32], sizes = [1, 32], strides = [1, 1]} : vector<1x96xf32> to vector<1x32xf32>
    %381 = arith.addf %379, %380 : vector<1x32xf32>
    %382 = arith.negf %381 : vector<1x32xf32>
    %383 = math.exp %382 : vector<1x32xf32>
    %cst_107 = arith.constant 1.000000e+00 : f32
    %384 = vector.broadcast %cst_107 : f32 to vector<1x32xf32>
    %385 = arith.addf %384, %383 : vector<1x32xf32>
    %386 = arith.divf %384, %385 : vector<1x32xf32>
    %387 = vector.extract_strided_slice %368 {offsets = [0, 64], sizes = [1, 32], strides = [1, 1]} : vector<1x96xf32> to vector<1x32xf32>
    %388 = vector.extract_strided_slice %370 {offsets = [0, 64], sizes = [1, 32], strides = [1, 1]} : vector<1x96xf32> to vector<1x32xf32>
    %389 = arith.mulf %378, %388 : vector<1x32xf32>
    %390 = arith.addf %387, %389 : vector<1x32xf32>
    %391 = math.tanh %390 : vector<1x32xf32>
    %392 = arith.subf %366, %391 : vector<1x32xf32>
    %393 = arith.mulf %386, %392 : vector<1x32xf32>
    %394 = arith.addf %391, %393 : vector<1x32xf32>
    %c1_108 = arith.constant 1 : index
    %c0_109 = arith.constant 0 : index
    %395 = vector.load %arg21[%c1_108, %c0_109] : memref<8x32xf32, #tpu.memory_space<vmem>>, vector<1x32xf32>
    tpu.vector_store %arg21[%c1_108, %c0_109], %394 {strides = array<i32>} : memref<8x32xf32, #tpu.memory_space<vmem>>, vector<1x32xf32>,
    %c2_110 = arith.constant 2 : index
    %c0_111 = arith.constant 0 : index
    %396 = vector.load %arg19[%c2_110, %c0_111] : memref<8x96xf32, #tpu.memory_space<vmem>>, vector<1x96xf32>
    %cst_112 = arith.constant dense<0.000000e+00> : vector<1x96xf32>
    %397 = tpu.matmul %394, %333, %cst_112 {dimension_numbers = #tpu.dot_dimension_numbers<[1], [0], [0], [1], [0, 0, 1, 1], [], []>} : vector<1x32xf32>, vector<32x96xf32>, vector<1x96xf32> -> vector<1x96xf32>
    %398 = arith.addf %397, %335 : vector<1x96xf32>
    %399 = vector.extract_strided_slice %396 {offsets = [0, 0], sizes = [1, 32], strides = [1, 1]} : vector<1x96xf32> to vector<1x32xf32>
    %400 = vector.extract_strided_slice %398 {offsets = [0, 0], sizes = [1, 32], strides = [1, 1]} : vector<1x96xf32> to vector<1x32xf32>
    %401 = arith.addf %399, %400 : vector<1x32xf32>
    %402 = arith.negf %401 : vector<1x32xf32>
    %403 = math.exp %402 : vector<1x32xf32>
    %cst_113 = arith.constant 1.000000e+00 : f32
    %404 = vector.broadcast %cst_113 : f32 to vector<1x32xf32>
    %405 = arith.addf %404, %403 : vector<1x32xf32>
    %406 = arith.divf %404, %405 : vector<1x32xf32>
    %407 = vector.extract_strided_slice %396 {offsets = [0, 32], sizes = [1, 32], strides = [1, 1]} : vector<1x96xf32> to vector<1x32xf32>
    %408 = vector.extract_strided_slice %398 {offsets = [0, 32], sizes = [1, 32], strides = [1, 1]} : vector<1x96xf32> to vector<1x32xf32>
    %409 = arith.addf %407, %408 : vector<1x32xf32>
    %410 = arith.negf %409 : vector<1x32xf32>
    %411 = math.exp %410 : vector<1x32xf32>
    %cst_114 = arith.constant 1.000000e+00 : f32
    %412 = vector.broadcast %cst_114 : f32 to vector<1x32xf32>
    %413 = arith.addf %412, %411 : vector<1x32xf32>
    %414 = arith.divf %412, %413 : vector<1x32xf32>
    %415 = vector.extract_strided_slice %396 {offsets = [0, 64], sizes = [1, 32], strides = [1, 1]} : vector<1x96xf32> to vector<1x32xf32>
    %416 = vector.extract_strided_slice %398 {offsets = [0, 64], sizes = [1, 32], strides = [1, 1]} : vector<1x96xf32> to vector<1x32xf32>
    %417 = arith.mulf %406, %416 : vector<1x32xf32>
    %418 = arith.addf %415, %417 : vector<1x32xf32>
    %419 = math.tanh %418 : vector<1x32xf32>
    %420 = arith.subf %394, %419 : vector<1x32xf32>
    %421 = arith.mulf %414, %420 : vector<1x32xf32>
    %422 = arith.addf %419, %421 : vector<1x32xf32>
    %c2_115 = arith.constant 2 : index
    %c0_116 = arith.constant 0 : index
    %423 = vector.load %arg21[%c2_115, %c0_116] : memref<8x32xf32, #tpu.memory_space<vmem>>, vector<1x32xf32>
    tpu.vector_store %arg21[%c2_115, %c0_116], %422 {strides = array<i32>} : memref<8x32xf32, #tpu.memory_space<vmem>>, vector<1x32xf32>,
    %c3_117 = arith.constant 3 : index
    %c0_118 = arith.constant 0 : index
    %424 = vector.load %arg19[%c3_117, %c0_118] : memref<8x96xf32, #tpu.memory_space<vmem>>, vector<1x96xf32>
    %cst_119 = arith.constant dense<0.000000e+00> : vector<1x96xf32>
    %425 = tpu.matmul %422, %333, %cst_119 {dimension_numbers = #tpu.dot_dimension_numbers<[1], [0], [0], [1], [0, 0, 1, 1], [], []>} : vector<1x32xf32>, vector<32x96xf32>, vector<1x96xf32> -> vector<1x96xf32>
    %426 = arith.addf %425, %335 : vector<1x96xf32>
    %427 = vector.extract_strided_slice %424 {offsets = [0, 0], sizes = [1, 32], strides = [1, 1]} : vector<1x96xf32> to vector<1x32xf32>
    %428 = vector.extract_strided_slice %426 {offsets = [0, 0], sizes = [1, 32], strides = [1, 1]} : vector<1x96xf32> to vector<1x32xf32>
    %429 = arith.addf %427, %428 : vector<1x32xf32>
    %430 = arith.negf %429 : vector<1x32xf32>
    %431 = math.exp %430 : vector<1x32xf32>
    %cst_120 = arith.constant 1.000000e+00 : f32
    %432 = vector.broadcast %cst_120 : f32 to vector<1x32xf32>
    %433 = arith.addf %432, %431 : vector<1x32xf32>
    %434 = arith.divf %432, %433 : vector<1x32xf32>
    %435 = vector.extract_strided_slice %424 {offsets = [0, 32], sizes = [1, 32], strides = [1, 1]} : vector<1x96xf32> to vector<1x32xf32>
    %436 = vector.extract_strided_slice %426 {offsets = [0, 32], sizes = [1, 32], strides = [1, 1]} : vector<1x96xf32> to vector<1x32xf32>
    %437 = arith.addf %435, %436 : vector<1x32xf32>
    %438 = arith.negf %437 : vector<1x32xf32>
    %439 = math.exp %438 : vector<1x32xf32>
    %cst_121 = arith.constant 1.000000e+00 : f32
    %440 = vector.broadcast %cst_121 : f32 to vector<1x32xf32>
    %441 = arith.addf %440, %439 : vector<1x32xf32>
    %442 = arith.divf %440, %441 : vector<1x32xf32>
    %443 = vector.extract_strided_slice %424 {offsets = [0, 64], sizes = [1, 32], strides = [1, 1]} : vector<1x96xf32> to vector<1x32xf32>
    %444 = vector.extract_strided_slice %426 {offsets = [0, 64], sizes = [1, 32], strides = [1, 1]} : vector<1x96xf32> to vector<1x32xf32>
    %445 = arith.mulf %434, %444 : vector<1x32xf32>
    %446 = arith.addf %443, %445 : vector<1x32xf32>
    %447 = math.tanh %446 : vector<1x32xf32>
    %448 = arith.subf %422, %447 : vector<1x32xf32>
    %449 = arith.mulf %442, %448 : vector<1x32xf32>
    %450 = arith.addf %447, %449 : vector<1x32xf32>
    %c3_122 = arith.constant 3 : index
    %c0_123 = arith.constant 0 : index
    %451 = vector.load %arg21[%c3_122, %c0_123] : memref<8x32xf32, #tpu.memory_space<vmem>>, vector<1x32xf32>
    tpu.vector_store %arg21[%c3_122, %c0_123], %450 {strides = array<i32>} : memref<8x32xf32, #tpu.memory_space<vmem>>, vector<1x32xf32>,
    %c4_124 = arith.constant 4 : index
    %c0_125 = arith.constant 0 : index
    %452 = vector.load %arg19[%c4_124, %c0_125] : memref<8x96xf32, #tpu.memory_space<vmem>>, vector<1x96xf32>
    %cst_126 = arith.constant dense<0.000000e+00> : vector<1x96xf32>
    %453 = tpu.matmul %450, %333, %cst_126 {dimension_numbers = #tpu.dot_dimension_numbers<[1], [0], [0], [1], [0, 0, 1, 1], [], []>} : vector<1x32xf32>, vector<32x96xf32>, vector<1x96xf32> -> vector<1x96xf32>
    %454 = arith.addf %453, %335 : vector<1x96xf32>
    %455 = vector.extract_strided_slice %452 {offsets = [0, 0], sizes = [1, 32], strides = [1, 1]} : vector<1x96xf32> to vector<1x32xf32>
    %456 = vector.extract_strided_slice %454 {offsets = [0, 0], sizes = [1, 32], strides = [1, 1]} : vector<1x96xf32> to vector<1x32xf32>
    %457 = arith.addf %455, %456 : vector<1x32xf32>
    %458 = arith.negf %457 : vector<1x32xf32>
    %459 = math.exp %458 : vector<1x32xf32>
    %cst_127 = arith.constant 1.000000e+00 : f32
    %460 = vector.broadcast %cst_127 : f32 to vector<1x32xf32>
    %461 = arith.addf %460, %459 : vector<1x32xf32>
    %462 = arith.divf %460, %461 : vector<1x32xf32>
    %463 = vector.extract_strided_slice %452 {offsets = [0, 32], sizes = [1, 32], strides = [1, 1]} : vector<1x96xf32> to vector<1x32xf32>
    %464 = vector.extract_strided_slice %454 {offsets = [0, 32], sizes = [1, 32], strides = [1, 1]} : vector<1x96xf32> to vector<1x32xf32>
    %465 = arith.addf %463, %464 : vector<1x32xf32>
    %466 = arith.negf %465 : vector<1x32xf32>
    %467 = math.exp %466 : vector<1x32xf32>
    %cst_128 = arith.constant 1.000000e+00 : f32
    %468 = vector.broadcast %cst_128 : f32 to vector<1x32xf32>
    %469 = arith.addf %468, %467 : vector<1x32xf32>
    %470 = arith.divf %468, %469 : vector<1x32xf32>
    %471 = vector.extract_strided_slice %452 {offsets = [0, 64], sizes = [1, 32], strides = [1, 1]} : vector<1x96xf32> to vector<1x32xf32>
    %472 = vector.extract_strided_slice %454 {offsets = [0, 64], sizes = [1, 32], strides = [1, 1]} : vector<1x96xf32> to vector<1x32xf32>
    %473 = arith.mulf %462, %472 : vector<1x32xf32>
    %474 = arith.addf %471, %473 : vector<1x32xf32>
    %475 = math.tanh %474 : vector<1x32xf32>
    %476 = arith.subf %450, %475 : vector<1x32xf32>
    %477 = arith.mulf %470, %476 : vector<1x32xf32>
    %478 = arith.addf %475, %477 : vector<1x32xf32>
    %c4_129 = arith.constant 4 : index
    %c0_130 = arith.constant 0 : index
    %479 = vector.load %arg21[%c4_129, %c0_130] : memref<8x32xf32, #tpu.memory_space<vmem>>, vector<1x32xf32>
    tpu.vector_store %arg21[%c4_129, %c0_130], %478 {strides = array<i32>} : memref<8x32xf32, #tpu.memory_space<vmem>>, vector<1x32xf32>,
    %c5_131 = arith.constant 5 : index
    %c0_132 = arith.constant 0 : index
    %480 = vector.load %arg19[%c5_131, %c0_132] : memref<8x96xf32, #tpu.memory_space<vmem>>, vector<1x96xf32>
    %cst_133 = arith.constant dense<0.000000e+00> : vector<1x96xf32>
    %481 = tpu.matmul %478, %333, %cst_133 {dimension_numbers = #tpu.dot_dimension_numbers<[1], [0], [0], [1], [0, 0, 1, 1], [], []>} : vector<1x32xf32>, vector<32x96xf32>, vector<1x96xf32> -> vector<1x96xf32>
    %482 = arith.addf %481, %335 : vector<1x96xf32>
    %483 = vector.extract_strided_slice %480 {offsets = [0, 0], sizes = [1, 32], strides = [1, 1]} : vector<1x96xf32> to vector<1x32xf32>
    %484 = vector.extract_strided_slice %482 {offsets = [0, 0], sizes = [1, 32], strides = [1, 1]} : vector<1x96xf32> to vector<1x32xf32>
    %485 = arith.addf %483, %484 : vector<1x32xf32>
    %486 = arith.negf %485 : vector<1x32xf32>
    %487 = math.exp %486 : vector<1x32xf32>
    %cst_134 = arith.constant 1.000000e+00 : f32
    %488 = vector.broadcast %cst_134 : f32 to vector<1x32xf32>
    %489 = arith.addf %488, %487 : vector<1x32xf32>
    %490 = arith.divf %488, %489 : vector<1x32xf32>
    %491 = vector.extract_strided_slice %480 {offsets = [0, 32], sizes = [1, 32], strides = [1, 1]} : vector<1x96xf32> to vector<1x32xf32>
    %492 = vector.extract_strided_slice %482 {offsets = [0, 32], sizes = [1, 32], strides = [1, 1]} : vector<1x96xf32> to vector<1x32xf32>
    %493 = arith.addf %491, %492 : vector<1x32xf32>
    %494 = arith.negf %493 : vector<1x32xf32>
    %495 = math.exp %494 : vector<1x32xf32>
    %cst_135 = arith.constant 1.000000e+00 : f32
    %496 = vector.broadcast %cst_135 : f32 to vector<1x32xf32>
    %497 = arith.addf %496, %495 : vector<1x32xf32>
    %498 = arith.divf %496, %497 : vector<1x32xf32>
    %499 = vector.extract_strided_slice %480 {offsets = [0, 64], sizes = [1, 32], strides = [1, 1]} : vector<1x96xf32> to vector<1x32xf32>
    %500 = vector.extract_strided_slice %482 {offsets = [0, 64], sizes = [1, 32], strides = [1, 1]} : vector<1x96xf32> to vector<1x32xf32>
    %501 = arith.mulf %490, %500 : vector<1x32xf32>
    %502 = arith.addf %499, %501 : vector<1x32xf32>
    %503 = math.tanh %502 : vector<1x32xf32>
    %504 = arith.subf %478, %503 : vector<1x32xf32>
    %505 = arith.mulf %498, %504 : vector<1x32xf32>
    %506 = arith.addf %503, %505 : vector<1x32xf32>
    %c5_136 = arith.constant 5 : index
    %c0_137 = arith.constant 0 : index
    %507 = vector.load %arg21[%c5_136, %c0_137] : memref<8x32xf32, #tpu.memory_space<vmem>>, vector<1x32xf32>
    tpu.vector_store %arg21[%c5_136, %c0_137], %506 {strides = array<i32>} : memref<8x32xf32, #tpu.memory_space<vmem>>, vector<1x32xf32>,
    %c6_138 = arith.constant 6 : index
    %c0_139 = arith.constant 0 : index
    %508 = vector.load %arg19[%c6_138, %c0_139] : memref<8x96xf32, #tpu.memory_space<vmem>>, vector<1x96xf32>
    %cst_140 = arith.constant dense<0.000000e+00> : vector<1x96xf32>
    %509 = tpu.matmul %506, %333, %cst_140 {dimension_numbers = #tpu.dot_dimension_numbers<[1], [0], [0], [1], [0, 0, 1, 1], [], []>} : vector<1x32xf32>, vector<32x96xf32>, vector<1x96xf32> -> vector<1x96xf32>
    %510 = arith.addf %509, %335 : vector<1x96xf32>
    %511 = vector.extract_strided_slice %508 {offsets = [0, 0], sizes = [1, 32], strides = [1, 1]} : vector<1x96xf32> to vector<1x32xf32>
    %512 = vector.extract_strided_slice %510 {offsets = [0, 0], sizes = [1, 32], strides = [1, 1]} : vector<1x96xf32> to vector<1x32xf32>
    %513 = arith.addf %511, %512 : vector<1x32xf32>
    %514 = arith.negf %513 : vector<1x32xf32>
    %515 = math.exp %514 : vector<1x32xf32>
    %cst_141 = arith.constant 1.000000e+00 : f32
    %516 = vector.broadcast %cst_141 : f32 to vector<1x32xf32>
    %517 = arith.addf %516, %515 : vector<1x32xf32>
    %518 = arith.divf %516, %517 : vector<1x32xf32>
    %519 = vector.extract_strided_slice %508 {offsets = [0, 32], sizes = [1, 32], strides = [1, 1]} : vector<1x96xf32> to vector<1x32xf32>
    %520 = vector.extract_strided_slice %510 {offsets = [0, 32], sizes = [1, 32], strides = [1, 1]} : vector<1x96xf32> to vector<1x32xf32>
    %521 = arith.addf %519, %520 : vector<1x32xf32>
    %522 = arith.negf %521 : vector<1x32xf32>
    %523 = math.exp %522 : vector<1x32xf32>
    %cst_142 = arith.constant 1.000000e+00 : f32
    %524 = vector.broadcast %cst_142 : f32 to vector<1x32xf32>
    %525 = arith.addf %524, %523 : vector<1x32xf32>
    %526 = arith.divf %524, %525 : vector<1x32xf32>
    %527 = vector.extract_strided_slice %508 {offsets = [0, 64], sizes = [1, 32], strides = [1, 1]} : vector<1x96xf32> to vector<1x32xf32>
    %528 = vector.extract_strided_slice %510 {offsets = [0, 64], sizes = [1, 32], strides = [1, 1]} : vector<1x96xf32> to vector<1x32xf32>
    %529 = arith.mulf %518, %528 : vector<1x32xf32>
    %530 = arith.addf %527, %529 : vector<1x32xf32>
    %531 = math.tanh %530 : vector<1x32xf32>
    %532 = arith.subf %506, %531 : vector<1x32xf32>
    %533 = arith.mulf %526, %532 : vector<1x32xf32>
    %534 = arith.addf %531, %533 : vector<1x32xf32>
    %c6_143 = arith.constant 6 : index
    %c0_144 = arith.constant 0 : index
    %535 = vector.load %arg21[%c6_143, %c0_144] : memref<8x32xf32, #tpu.memory_space<vmem>>, vector<1x32xf32>
    tpu.vector_store %arg21[%c6_143, %c0_144], %534 {strides = array<i32>} : memref<8x32xf32, #tpu.memory_space<vmem>>, vector<1x32xf32>,
    %c7_145 = arith.constant 7 : index
    %c0_146 = arith.constant 0 : index
    %536 = vector.load %arg19[%c7_145, %c0_146] : memref<8x96xf32, #tpu.memory_space<vmem>>, vector<1x96xf32>
    %cst_147 = arith.constant dense<0.000000e+00> : vector<1x96xf32>
    %537 = tpu.matmul %534, %333, %cst_147 {dimension_numbers = #tpu.dot_dimension_numbers<[1], [0], [0], [1], [0, 0, 1, 1], [], []>} : vector<1x32xf32>, vector<32x96xf32>, vector<1x96xf32> -> vector<1x96xf32>
    %538 = arith.addf %537, %335 : vector<1x96xf32>
    %539 = vector.extract_strided_slice %536 {offsets = [0, 0], sizes = [1, 32], strides = [1, 1]} : vector<1x96xf32> to vector<1x32xf32>
    %540 = vector.extract_strided_slice %538 {offsets = [0, 0], sizes = [1, 32], strides = [1, 1]} : vector<1x96xf32> to vector<1x32xf32>
    %541 = arith.addf %539, %540 : vector<1x32xf32>
    %542 = arith.negf %541 : vector<1x32xf32>
    %543 = math.exp %542 : vector<1x32xf32>
    %cst_148 = arith.constant 1.000000e+00 : f32
    %544 = vector.broadcast %cst_148 : f32 to vector<1x32xf32>
    %545 = arith.addf %544, %543 : vector<1x32xf32>
    %546 = arith.divf %544, %545 : vector<1x32xf32>
    %547 = vector.extract_strided_slice %536 {offsets = [0, 32], sizes = [1, 32], strides = [1, 1]} : vector<1x96xf32> to vector<1x32xf32>
    %548 = vector.extract_strided_slice %538 {offsets = [0, 32], sizes = [1, 32], strides = [1, 1]} : vector<1x96xf32> to vector<1x32xf32>
    %549 = arith.addf %547, %548 : vector<1x32xf32>
    %550 = arith.negf %549 : vector<1x32xf32>
    %551 = math.exp %550 : vector<1x32xf32>
    %cst_149 = arith.constant 1.000000e+00 : f32
    %552 = vector.broadcast %cst_149 : f32 to vector<1x32xf32>
    %553 = arith.addf %552, %551 : vector<1x32xf32>
    %554 = arith.divf %552, %553 : vector<1x32xf32>
    %555 = vector.extract_strided_slice %536 {offsets = [0, 64], sizes = [1, 32], strides = [1, 1]} : vector<1x96xf32> to vector<1x32xf32>
    %556 = vector.extract_strided_slice %538 {offsets = [0, 64], sizes = [1, 32], strides = [1, 1]} : vector<1x96xf32> to vector<1x32xf32>
    %557 = arith.mulf %546, %556 : vector<1x32xf32>
    %558 = arith.addf %555, %557 : vector<1x32xf32>
    %559 = math.tanh %558 : vector<1x32xf32>
    %560 = arith.subf %534, %559 : vector<1x32xf32>
    %561 = arith.mulf %554, %560 : vector<1x32xf32>
    %562 = arith.addf %559, %561 : vector<1x32xf32>
    %c7_150 = arith.constant 7 : index
    %c0_151 = arith.constant 0 : index
    %563 = vector.load %arg21[%c7_150, %c0_151] : memref<8x32xf32, #tpu.memory_space<vmem>>, vector<1x32xf32>
    tpu.vector_store %arg21[%c7_150, %c0_151], %562 {strides = array<i32>} : memref<8x32xf32, #tpu.memory_space<vmem>>, vector<1x32xf32>,
    %c0_152 = arith.constant 0 : index
    %c0_153 = arith.constant 0 : index
    %564 = vector.load %arg20[%c0_152, %c0_153] : memref<11x32xf32, #tpu.memory_space<vmem>>, vector<11x32xf32>
    %c0_154 = arith.constant 0 : index
    %c0_155 = arith.constant 0 : index
    %565 = vector.load %arg21[%c0_154, %c0_155] : memref<8x32xf32, #tpu.memory_space<vmem>>, vector<8x32xf32>
    %c0_156 = arith.constant 0 : index
    %c0_157 = arith.constant 0 : index
    %566 = vector.load %arg11[%c0_156, %c0_157] : memref<32x32xf32, #tpu.memory_space<vmem>>, vector<32x32xf32>
    %cst_158 = arith.constant dense<0.000000e+00> : vector<8x32xf32>
    %567 = tpu.matmul %565, %566, %cst_158 {dimension_numbers = #tpu.dot_dimension_numbers<[1], [0], [0], [1], [0, 0, 1, 1], [], []>} : vector<8x32xf32>, vector<32x32xf32>, vector<8x32xf32> -> vector<8x32xf32>
    %cst_159 = arith.constant dense<0.000000e+00> : vector<8x11xf32>
    %568 = tpu.matmul %567, %564, %cst_159 {dimension_numbers = #tpu.dot_dimension_numbers<[1], [1], [0], [0], [0, 0, 1, 0], [], []>} : vector<8x32xf32>, vector<11x32xf32>, vector<8x11xf32> -> vector<8x11xf32>
    %cst_160 = arith.constant dense<0xFF800000> : vector<8xf32>
    %569 = vector.multi_reduction <maximumf>, %568, %cst_160 [1] : vector<8x11xf32> to vector<8xf32>
    %570 = vector.shape_cast %569 : vector<8xf32> to vector<8x1xf32>
    %571 = vector.broadcast %570 : vector<8x1xf32> to vector<8x11xf32>
    %572 = arith.subf %568, %571 : vector<8x11xf32>
    %573 = math.exp %572 : vector<8x11xf32>
    %cst_161 = arith.constant dense<0.000000e+00> : vector<8xf32>
    %574 = vector.multi_reduction <add>, %573, %cst_161 [1] : vector<8x11xf32> to vector<8xf32>
    %575 = vector.shape_cast %574 : vector<8xf32> to vector<8x1xf32>
    %576 = tpu.reciprocal %575 {approx = true} : vector<8x1xf32> -> vector<8x1xf32>
    %577 = vector.broadcast %576 : vector<8x1xf32> to vector<8x11xf32>
    %578 = arith.mulf %573, %577 : vector<8x11xf32>
    %cst_162 = arith.constant dense<0.000000e+00> : vector<8x32xf32>
    %579 = tpu.matmul %578, %564, %cst_162 {dimension_numbers = #tpu.dot_dimension_numbers<[1], [0], [0], [1], [0, 0, 1, 1], [], []>} : vector<8x11xf32>, vector<11x32xf32>, vector<8x32xf32> -> vector<8x32xf32>
    %c0_163 = arith.constant 0 : index
    %c0_164 = arith.constant 0 : index
    %580 = vector.load %arg12[%c0_163, %c0_164] : memref<32x32xf32, #tpu.memory_space<vmem>>, vector<32x32xf32>
    %cst_165 = arith.constant dense<0.000000e+00> : vector<8x32xf32>
    %581 = tpu.matmul %579, %580, %cst_165 {dimension_numbers = #tpu.dot_dimension_numbers<[1], [0], [0], [1], [0, 0, 1, 1], [], []>} : vector<8x32xf32>, vector<32x32xf32>, vector<8x32xf32> -> vector<8x32xf32>
    %c0_166 = arith.constant 0 : index
    %c0_167 = arith.constant 0 : index
    %582 = vector.load %arg13[%c0_166, %c0_167] : memref<32x32xf32, #tpu.memory_space<vmem>>, vector<32x32xf32>
    %cst_168 = arith.constant dense<0.000000e+00> : vector<8x32xf32>
    %583 = tpu.matmul %565, %582, %cst_168 {dimension_numbers = #tpu.dot_dimension_numbers<[1], [0], [0], [1], [0, 0, 1, 1], [], []>} : vector<8x32xf32>, vector<32x32xf32>, vector<8x32xf32> -> vector<8x32xf32>
    %584 = arith.addf %581, %583 : vector<8x32xf32>
    %c0_169 = arith.constant 0 : index
    %c0_170 = arith.constant 0 : index
    %585 = vector.load %arg14[%c0_169, %c0_170] : memref<1x32xf32, #tpu.memory_space<vmem>>, vector<1x32xf32>
    %586 = vector.broadcast %585 : vector<1x32xf32> to vector<8x32xf32>
    %587 = arith.addf %584, %586 : vector<8x32xf32>
    %588 = math.tanh %587 : vector<8x32xf32>
    %c0_171 = arith.constant 0 : index
    %c0_172 = arith.constant 0 : index
    %589 = vector.load %arg15[%c0_171, %c0_172] : memref<32x128xf32, #tpu.memory_space<vmem>>, vector<32x128xf32>
    %cst_173 = arith.constant dense<0.000000e+00> : vector<8x128xf32>
    %590 = tpu.matmul %588, %589, %cst_173 {dimension_numbers = #tpu.dot_dimension_numbers<[1], [0], [0], [1], [0, 0, 1, 1], [], []>} : vector<8x32xf32>, vector<32x128xf32>, vector<8x128xf32> -> vector<8x128xf32>
    %c0_174 = arith.constant 0 : index
    %c0_175 = arith.constant 0 : index
    %591 = vector.load %arg16[%c0_174, %c0_175] : memref<1x128xf32, #tpu.memory_space<vmem>>, vector<1x128xf32>
    %592 = vector.broadcast %591 : vector<1x128xf32> to vector<8x128xf32>
    %593 = arith.addf %590, %592 : vector<8x128xf32>
    %cst_176 = arith.constant dense<0xFF800000> : vector<8xf32>
    %594 = vector.multi_reduction <maximumf>, %593, %cst_176 [1] : vector<8x128xf32> to vector<8xf32>
    %595 = vector.shape_cast %594 : vector<8xf32> to vector<8x1xf32>
    %596 = vector.broadcast %595 : vector<8x1xf32> to vector<8x128xf32>
    %597 = arith.subf %593, %596 : vector<8x128xf32>
    %598 = math.exp %597 : vector<8x128xf32>
    %cst_177 = arith.constant dense<0.000000e+00> : vector<8xf32>
    %599 = vector.multi_reduction <add>, %598, %cst_177 [1] : vector<8x128xf32> to vector<8xf32>
    %600 = vector.shape_cast %599 : vector<8xf32> to vector<8x1xf32>
    %601 = math.log %600 : vector<8x1xf32>
    %602 = arith.addf %601, %595 : vector<8x1xf32>
    %603 = vector.broadcast %602 : vector<8x1xf32> to vector<8x128xf32>
    %604 = arith.subf %593, %603 : vector<8x128xf32>
    %c0_178 = arith.constant 0 : index
    %c0_179 = arith.constant 0 : index
    %605 = vector.load %arg17[%c0_178, %c0_179] : memref<8x128xf32, #tpu.memory_space<vmem>>, vector<8x128xf32>
    tpu.vector_store %arg17[%c0_178, %c0_179], %604 {strides = array<i32>} : memref<8x128xf32, #tpu.memory_space<vmem>>, vector<8x128xf32>,
    return
  }
}

</mosaic_0001>

<llo_original>
// kernel: poet_gen_forward.1
$region0: #{poet_gen_forward.1}
  #allocation0 [shape = 'u32[]', space=smem, size = 0x4, offset = 0x4, fixed_abs, tag = 'smem constant byte address 0x4 - core index']
  #allocation1 [shape = 'u32[144,128]{1,0:T(1,128)}', space=vmem, size = 0x12000, scoped, tag = 'internal scratch']
  #allocation2 [shape = 'f32[11,96]{1,0:T(8,128)}', space=vmem, size = 0x2000, scoped, tag = 'scratch operand']
  #allocation3 [shape = 'f32[8,96]{1,0:T(8,128)}', space=vmem, size = 0x1000, scoped, tag = 'scratch operand']
  #allocation4 [shape = 'f32[11,32]{1,0:T(8,128)}', space=vmem, size = 0x2000, scoped, tag = 'scratch operand']
  #allocation5 [shape = 'f32[8,32]{1,0:T(8,128)}', space=vmem, size = 0x1000, scoped, tag = 'scratch operand']
  %s0 = inlined_call_operand.vmem [shape: s32[11,1], index: 0, kind: input, shape index: {}]
  %s1 = inlined_call_operand.vmem [shape: s32[8,1], index: 1, kind: input, shape index: {}]
  %s2 = inlined_call_operand.vmem [shape: f32[160,32], index: 2, kind: input, shape index: {}]
  %s3 = inlined_call_operand.vmem [shape: f32[32,96], index: 3, kind: input, shape index: {}]
  %s4 = inlined_call_operand.vmem [shape: f32[32,96], index: 4, kind: input, shape index: {}]
  %s5 = inlined_call_operand.vmem [shape: f32[1,96], index: 5, kind: input, shape index: {}]
  %s6 = inlined_call_operand.vmem [shape: f32[1,96], index: 6, kind: input, shape index: {}]
  %s7 = inlined_call_operand.vmem [shape: f32[32,96], index: 7, kind: input, shape index: {}]
  %s8 = inlined_call_operand.vmem [shape: f32[32,96], index: 8, kind: input, shape index: {}]
  %s9 = inlined_call_operand.vmem [shape: f32[1,96], index: 9, kind: input, shape index: {}]
  %s10 = inlined_call_operand.vmem [shape: f32[1,96], index: 10, kind: input, shape index: {}]
  %s11 = inlined_call_operand.vmem [shape: f32[32,32], index: 11, kind: input, shape index: {}]
  %s12 = inlined_call_operand.vmem [shape: f32[32,32], index: 12, kind: input, shape index: {}]
  %s13 = inlined_call_operand.vmem [shape: f32[32,32], index: 13, kind: input, shape index: {}]
  %s14 = inlined_call_operand.vmem [shape: f32[1,32], index: 14, kind: input, shape index: {}]
  %s15 = inlined_call_operand.vmem [shape: f32[32,128], index: 15, kind: input, shape index: {}]
  %s16 = inlined_call_operand.vmem [shape: f32[1,128], index: 16, kind: input, shape index: {}]
  %s17 = inlined_call_operand.hbm [shape: f32[8,128], index: 17, kind: output, shape index: {}]
  %s18 = sld [smem:[#allocation0]]
  $region78: #{poet_gen_forward.1} parent=0
    _
  %s20 = ssub.s32 1, %s18
  %s21 = scalar_select 0, %s20, %s18
  $region1: #{poet_gen_forward.1} parent=0
    #allocation6 [shape = 'u8[4096]{0}', space=vmem, size = 0x1000, scoped, tag = 'output window, operand 0, single buffered']
    #allocation7 [shape = 's32[1]{0}', space=sflag, size = 0x4, scoped, tag = 'scoped memory for poet_gen_forward.1']
    %22 = vsyncpa [#allocation7], 0
    // Predicated region
    $region2: #{poet_gen_forward.1} parent=1 // pred_check
      _
    $region3: #{poet_gen_forward.1} parent=1 // pred_check_branch
      %24 = sbr.rel (0) target = $region5
    $region4: #{poet_gen_forward.1} parent=1 // pred_region
      _
    $region5: #{poet_gen_forward.1} parent=1 // pred_fallthru
      _
    // Predicated region
    $region6: #{poet_gen_forward.1} parent=1 // pred_check
      _
    $region7: #{poet_gen_forward.1} parent=1 // pred_check_branch
      %26 = sbr.rel (0) target = $region9
    $region8: #{poet_gen_forward.1} parent=1 // pred_region
      _
    $region9: #{poet_gen_forward.1} parent=1 // pred_fallthru
      _
    // Predicated region
    $region10: #{poet_gen_forward.1} parent=1 // pred_check
      _
    $region11: #{poet_gen_forward.1} parent=1 // pred_check_branch
      %28 = sbr.rel (0) target = $region13
    $region12: #{poet_gen_forward.1} parent=1 // pred_region
      _
    $region13: #{poet_gen_forward.1} parent=1 // pred_fallthru
      _
    // Predicated region
    $region14: #{poet_gen_forward.1} parent=1 // pred_check
      _
    $region15: #{poet_gen_forward.1} parent=1 // pred_check_branch
      %30 = sbr.rel (0) target = $region17
    $region16: #{poet_gen_forward.1} parent=1 // pred_region
      _
    $region17: #{poet_gen_forward.1} parent=1 // pred_fallthru
      _
    // Predicated region
    $region18: #{poet_gen_forward.1} parent=1 // pred_check
      _
    $region19: #{poet_gen_forward.1} parent=1 // pred_check_branch
      %32 = sbr.rel (0) target = $region21
    $region20: #{poet_gen_forward.1} parent=1 // pred_region
      _
    $region21: #{poet_gen_forward.1} parent=1 // pred_fallthru
      _
    // Predicated region
    $region22: #{poet_gen_forward.1} parent=1 // pred_check
      _
    $region23: #{poet_gen_forward.1} parent=1 // pred_check_branch
      %34 = sbr.rel (0) target = $region25
    $region24: #{poet_gen_forward.1} parent=1 // pred_region
      _
    $region25: #{poet_gen_forward.1} parent=1 // pred_fallthru
      _
    // Predicated region
    $region26: #{poet_gen_forward.1} parent=1 // pred_check
      _
    $region27: #{poet_gen_forward.1} parent=1 // pred_check_branch
      %36 = sbr.rel (0) target = $region29
    $region28: #{poet_gen_forward.1} parent=1 // pred_region
      _
    $region29: #{poet_gen_forward.1} parent=1 // pred_fallthru
      _
    // Predicated region
    $region30: #{poet_gen_forward.1} parent=1 // pred_check
      _
    $region31: #{poet_gen_forward.1} parent=1 // pred_check_branch
      %38 = sbr.rel (0) target = $region33
    $region32: #{poet_gen_forward.1} parent=1 // pred_region
      _
    $region33: #{poet_gen_forward.1} parent=1 // pred_fallthru
      _
    // Predicated region
    $region34: #{poet_gen_forward.1} parent=1 // pred_check
      _
    $region35: #{poet_gen_forward.1} parent=1 // pred_check_branch
      %40 = sbr.rel (0) target = $region37
    $region36: #{poet_gen_forward.1} parent=1 // pred_region
      _
    $region37: #{poet_gen_forward.1} parent=1 // pred_fallthru
      _
    // Predicated region
    $region38: #{poet_gen_forward.1} parent=1 // pred_check
      _
    $region39: #{poet_gen_forward.1} parent=1 // pred_check_branch
      %42 = sbr.rel (0) target = $region41
    $region40: #{poet_gen_forward.1} parent=1 // pred_region
      _
    $region41: #{poet_gen_forward.1} parent=1 // pred_fallthru
      _
    // Predicated region
    $region42: #{poet_gen_forward.1} parent=1 // pred_check
      _
    $region43: #{poet_gen_forward.1} parent=1 // pred_check_branch
      %44 = sbr.rel (0) target = $region45
    $region44: #{poet_gen_forward.1} parent=1 // pred_region
      _
    $region45: #{poet_gen_forward.1} parent=1 // pred_fallthru
      _
    // Predicated region
    $region46: #{poet_gen_forward.1} parent=1 // pred_check
      _
    $region47: #{poet_gen_forward.1} parent=1 // pred_check_branch
      %46 = sbr.rel (0) target = $region49
    $region48: #{poet_gen_forward.1} parent=1 // pred_region
      _
    $region49: #{poet_gen_forward.1} parent=1 // pred_fallthru
      _
    // Predicated region
    $region50: #{poet_gen_forward.1} parent=1 // pred_check
      _
    $region51: #{poet_gen_forward.1} parent=1 // pred_check_branch
      %48 = sbr.rel (0) target = $region53
    $region52: #{poet_gen_forward.1} parent=1 // pred_region
      _
    $region53: #{poet_gen_forward.1} parent=1 // pred_fallthru
      _
    // Predicated region
    $region54: #{poet_gen_forward.1} parent=1 // pred_check
      _
    $region55: #{poet_gen_forward.1} parent=1 // pred_check_branch
      %50 = sbr.rel (0) target = $region57
    $region56: #{poet_gen_forward.1} parent=1 // pred_region
      _
    $region57: #{poet_gen_forward.1} parent=1 // pred_fallthru
      _
    // Predicated region
    $region58: #{poet_gen_forward.1} parent=1 // pred_check
      _
    $region59: #{poet_gen_forward.1} parent=1 // pred_check_branch
      %52 = sbr.rel (0) target = $region61
    $region60: #{poet_gen_forward.1} parent=1 // pred_region
      _
    $region61: #{poet_gen_forward.1} parent=1 // pred_fallthru
      _
    // Predicated region
    $region62: #{poet_gen_forward.1} parent=1 // pred_check
      _
    $region63: #{poet_gen_forward.1} parent=1 // pred_check_branch
      %54 = sbr.rel (0) target = $region65
    $region64: #{poet_gen_forward.1} parent=1 // pred_region
      _
    $region65: #{poet_gen_forward.1} parent=1 // pred_fallthru
      _
    // Predicated region
    $region66: #{poet_gen_forward.1} parent=1 // pred_check
      _
    $region67: #{poet_gen_forward.1} parent=1 // pred_check_branch
      %56 = sbr.rel (0) target = $region69
    $region68: #{poet_gen_forward.1} parent=1 // pred_region
      _
    $region69: #{poet_gen_forward.1} parent=1 // pred_fallthru
      _
    %v57 = vld [vmem:[%s2] sm:$0xff]
    %v58 = vld [vmem:[%s2 + $0x8] sm:$0xff]
    %v59 = vld [vmem:[%s2 + $0x10] sm:$0xff]
    %v60 = vld [vmem:[%s2 + $0x18] sm:$0xff]
    %v61 = vld [vmem:[%s2 + $0x20] sm:$0xff]
    %v62 = vld [vmem:[%s2 + $0x28] sm:$0xff]
    %v63 = vld [vmem:[%s2 + $0x30] sm:$0xff]
    %v64 = vld [vmem:[%s2 + $0x38] sm:$0xff]
    %v65 = vld [vmem:[%s2 + $0x40] sm:$0xff]
    %v66 = vld [vmem:[%s2 + $0x48] sm:$0xff]
    %v67 = vld [vmem:[%s2 + $0x50] sm:$0xff]
    %v68 = vld [vmem:[%s2 + $0x58] sm:$0xff]
    %v69 = vld [vmem:[%s2 + $0x60] sm:$0xff]
    %v70 = vld [vmem:[%s2 + $0x68] sm:$0xff]
    %v71 = vld [vmem:[%s2 + $0x70] sm:$0xff]
    %v72 = vld [vmem:[%s2 + $0x78] sm:$0xff]
    %v73 = vld [vmem:[%s2 + $0x80] sm:$0xff]
    %v74 = vld [vmem:[%s2 + $0x88] sm:$0xff]
    %v75 = vld [vmem:[%s2 + $0x90] sm:$0xff]
    %v76 = vld [vmem:[%s2 + $0x98] sm:$0xff]
    %v77 = vld [vmem:[%s0] sm:$0xff]
    %v78 = vld [vmem:[%s0 + $0x8] sm:$0x7]
    %v79 = vlaneseq
    %v80 = vand.u32 %v79, 127
    %v81 = vadd.s32 %v80, 128
    %82 = vset.pattern.permute.xlu0 0
    %83 = vperm.xlu0 %82, %v77
    %v84 = vpop.permute.xlu0 %83
    %85 = vset.pattern.permute.xlu0 0
    %86 = vperm.xlu0 %85, %v78
    %v87 = vpop.permute.xlu0 %86
    %vm88 = vcmp.eq.s32.totalorder %v84, %v80
    %vm89 = vcmp.eq.s32.totalorder %v84, %v81
    %vm90 = vcmp.eq.s32.totalorder %v87, %v80
    %vm91 = vcmp.eq.s32.totalorder %v87, %v81
    %v92 = vsel %vm88, 1, 0
    %v93 = vsel %vm89, 1, 0
    %v94 = vsel %vm90, 1, 0
    %v95 = vsel %vm91, 1, 0
    %v96 = vcvt.s32.f32 %v92
    %v97 = vcvt.s32.f32 %v93
    %v98 = vcvt.s32.f32 %v94
    %v99 = vcvt.s32.f32 %v95
    %v100 = vld [vmem:[%s1] sm:$0xff]
    %101 = vset.pattern.permute.xlu0 0
    %102 = vperm.xlu0 %101, %v100
    %v103 = vpop.permute.xlu0 %102
    %vm104 = vcmp.eq.s32.totalorder %v103, %v80
    %vm105 = vcmp.eq.s32.totalorder %v103, %v81
    %v106 = vsel %vm104, 1, 0
    %v107 = vsel %vm105, 1, 0
    %v108 = vcvt.s32.f32 %v106
    %v109 = vcvt.s32.f32 %v107
    %vm110 = vcmask 261120
    %v112 = vsel %vm110, %v97, 0
    %v115 = vsel %vm110, %v99, 0
    %117 = vmatprep.subr.mxu0 0.0
    %118 = vmatpush1.msra.mxu0 %v57
    %119 = vmatprep.subr.mxu0 0.0
    %120 = vmatpush1.msra.mxu0 %v58
    %121 = vmatprep.subr.mxu0 0.0
    %122 = vmatpush1.msra.mxu0 %v59
    %123 = vmatprep.subr.mxu0 0.0
    %124 = vmatpush1.msra.mxu0 %v60
    %125 = vmatprep.subr.mxu0 0.0
    %126 = vmatpush1.msra.mxu0 %v61
    %127 = vmatprep.subr.mxu0 0.0
    %128 = vmatpush1.msra.mxu0 %v62
    %129 = vmatprep.subr.mxu0 0.0
    %130 = vmatpush1.msra.mxu0 %v63
    %131 = vmatprep.subr.mxu0 0.0
    %132 = vmatpush1.msra.mxu0 %v64
    %133 = vmatprep.subr.mxu0 0.0
    %134 = vmatpush1.msra.mxu0 %v65
    %135 = vmatprep.subr.mxu0 0.0
    %136 = vmatpush1.msra.mxu0 %v66
    %137 = vmatprep.subr.mxu0 0.0
    %138 = vmatpush1.msra.mxu0 %v67
    %139 = vmatprep.subr.mxu0 0.0
    %140 = vmatpush1.msra.mxu0 %v68
    %141 = vmatprep.subr.mxu0 0.0
    %142 = vmatpush1.msra.mxu0 %v69
    %143 = vmatprep.subr.mxu0 0.0
    %144 = vmatpush1.msra.mxu0 %v70
    %145 = vmatprep.subr.mxu0 0.0
    %146 = vmatpush1.msra.mxu0 %v71
    %147 = vmatprep.subr.mxu0 0.0
    %148 = vmatpush1.msra.mxu0 %v72
    %149 = vmatprep.subr.mxu0 0.0
    %150 = vmatpush1.msra.mxu0 %v73
    %151 = vmatprep.subr.mxu0 0.0
    %152 = vmatpush1.msra.mxu0 %v74
    %153 = vmatprep.subr.mxu0 0.0
    %154 = vmatpush1.msra.mxu0 %v75
    %155 = vmatprep.subr.mxu0 0.0
    %156 = vmatpush1.msra.mxu0 %v76
    %157 = vmatprep.subr.mxu0 0.0
    %158 = vmatpush1.msra.mxu0 0.0
    %159 = vmatprep.subr.mxu0 0.0
    %160 = vmatpush1.msra.mxu0 0.0
    %161 = vmatprep.subr.mxu0 0.0
    %162 = vmatpush1.msra.mxu0 0.0
    %163 = vmatprep.subr.mxu0 0.0
    %164 = vmatpush1.msra.mxu0 0.0
    %165 = vmatprep.subr.mxu0 0.0
    %166 = vmatpush1.msra.mxu0 0.0
    %167 = vmatprep.subr.mxu0 0.0
    %168 = vmatpush1.msra.mxu0 0.0
    %169 = vmatprep.subr.mxu0 0.0
    %170 = vmatpush1.msra.mxu0 0.0
    %171 = vmatprep.subr.mxu0 0.0
    %172 = vmatpush1.msra.mxu0 0.0
    %173 = vmatprep.subr.mxu0 0.0
    %174 = vmatpush1.msra.mxu0 0.0
    %175 = vmatprep.subr.mxu0 0.0
    %176 = vmatpush1.msra.mxu0 0.0
    %177 = vmatprep.subr.mxu0 0.0
    %178 = vmatpush1.msra.mxu0 0.0
    %179 = vmatprep.subr.mxu0 0.0
    %180 = vmatpush1.msra.mxu0 0.0
    %181 = vmatprep.mubr.f32.mxu0 %v112
    %182 = vmatmul.mubr.f32.gmra.mrb[0].mxu0 %v96
    %v183 = vpop.f32.mrb[0].mxu0
    %v184 = vadd.f32 0.0, %v183
    %v185 = vpop.f32.mrb[0].mxu0
    %186 = vmatprep.mubr.f32.mxu0 %v115
    %187 = vmatmul.mubr.f32.gmra.mrb[0].mxu0 %v98
    %v188 = vpop.f32.mrb[0].mxu0
    %v189 = vadd.f32 0.0, %v188
    %v190 = vpop.f32.mrb[0].mxu0
    %191 = vdwg.mxu0
    %v193 = vsel %vm110, %v109, 0
    %195 = vmatprep.subr.mxu0 0.0
    %196 = vmatpush1.msra.mxu0 %v57
    %197 = vmatprep.subr.mxu0 0.0
    %198 = vmatpush1.msra.mxu0 %v58
    %199 = vmatprep.subr.mxu0 0.0
    %200 = vmatpush1.msra.mxu0 %v59
    %201 = vmatprep.subr.mxu0 0.0
    %202 = vmatpush1.msra.mxu0 %v60
    %203 = vmatprep.subr.mxu0 0.0
    %204 = vmatpush1.msra.mxu0 %v61
    %205 = vmatprep.subr.mxu0 0.0
    %206 = vmatpush1.msra.mxu0 %v62
    %207 = vmatprep.subr.mxu0 0.0
    %208 = vmatpush1.msra.mxu0 %v63
    %209 = vmatprep.subr.mxu0 0.0
    %210 = vmatpush1.msra.mxu0 %v64
    %211 = vmatprep.subr.mxu0 0.0
    %212 = vmatpush1.msra.mxu0 %v65
    %213 = vmatprep.subr.mxu0 0.0
    %214 = vmatpush1.msra.mxu0 %v66
    %215 = vmatprep.subr.mxu0 0.0
    %216 = vmatpush1.msra.mxu0 %v67
    %217 = vmatprep.subr.mxu0 0.0
    %218 = vmatpush1.msra.mxu0 %v68
    %219 = vmatprep.subr.mxu0 0.0
    %220 = vmatpush1.msra.mxu0 %v69
    %221 = vmatprep.subr.mxu0 0.0
    %222 = vmatpush1.msra.mxu0 %v70
    %223 = vmatprep.subr.mxu0 0.0
    %224 = vmatpush1.msra.mxu0 %v71
    %225 = vmatprep.subr.mxu0 0.0
    %226 = vmatpush1.msra.mxu0 %v72
    %227 = vmatprep.subr.mxu0 0.0
    %228 = vmatpush1.msra.mxu0 %v73
    %229 = vmatprep.subr.mxu0 0.0
    %230 = vmatpush1.msra.mxu0 %v74
    %231 = vmatprep.subr.mxu0 0.0
    %232 = vmatpush1.msra.mxu0 %v75
    %233 = vmatprep.subr.mxu0 0.0
    %234 = vmatpush1.msra.mxu0 %v76
    %235 = vmatprep.subr.mxu0 0.0
    %236 = vmatpush1.msra.mxu0 0.0
    %237 = vmatprep.subr.mxu0 0.0
    %238 = vmatpush1.msra.mxu0 0.0
    %239 = vmatprep.subr.mxu0 0.0
    %240 = vmatpush1.msra.mxu0 0.0
    %241 = vmatprep.subr.mxu0 0.0
    %242 = vmatpush1.msra.mxu0 0.0
    %243 = vmatprep.subr.mxu0 0.0
    %244 = vmatpush1.msra.mxu0 0.0
    %245 = vmatprep.subr.mxu0 0.0
    %246 = vmatpush1.msra.mxu0 0.0
    %247 = vmatprep.subr.mxu0 0.0
    %248 = vmatpush1.msra.mxu0 0.0
    %249 = vmatprep.subr.mxu0 0.0
    %250 = vmatpush1.msra.mxu0 0.0
    %251 = vmatprep.subr.mxu0 0.0
    %252 = vmatpush1.msra.mxu0 0.0
    %253 = vmatprep.subr.mxu0 0.0
    %254 = vmatpush1.msra.mxu0 0.0
    %255 = vmatprep.subr.mxu0 0.0
    %256 = vmatpush1.msra.mxu0 0.0
    %257 = vmatprep.subr.mxu0 0.0
    %258 = vmatpush1.msra.mxu0 0.0
    %259 = vmatprep.mubr.f32.mxu0 %v193
    %260 = vmatmul.mubr.f32.gmra.mrb[0].mxu0 %v108
    %v261 = vpop.f32.mrb[0].mxu0
    %v262 = vadd.f32 0.0, %v261
    %v263 = vpop.f32.mrb[0].mxu0
    %264 = vdwg.mxu0
    %v265 = vld [vmem:[%s3] sm:$0xff]
    %v266 = vld [vmem:[%s3 + $0x8] sm:$0xff]
    %v267 = vld [vmem:[%s3 + $0x10] sm:$0xff]
    %v268 = vld [vmem:[%s3 + $0x18] sm:$0xff]
    %v269 = vld [vmem:[%s4] sm:$0xff]
    %v270 = vld [vmem:[%s4 + $0x8] sm:$0xff]
    %v271 = vld [vmem:[%s4 + $0x10] sm:$0xff]
    %v272 = vld [vmem:[%s4 + $0x18] sm:$0xff]
    %v273 = vld [vmem:[%s5] sm:$0x1]
    %v274 = vld [vmem:[%s6] sm:$0x1]
    %v276 = vlaneseq
    %v277 = vshrl.u32 %v276, 7
    %v278 = vsub.s32 0, %v277
    %v279 = vrot.slane %v273, %v278
    %v282 = vsel %vm110, %v184, 0
    %v285 = vsel %vm110, %v189, 0
    %287 = vmatprep.subr.mxu0 0.0
    %288 = vmatpush1.msra.mxu0 %v265
    %289 = vmatprep.subr.mxu0 0.0
    %290 = vmatpush1.msra.mxu0 %v266
    %291 = vmatprep.subr.mxu0 0.0
    %292 = vmatpush1.msra.mxu0 %v267
    %293 = vmatprep.subr.mxu0 0.0
    %294 = vmatpush1.msra.mxu0 %v268
    %295 = vmatprep.subr.mxu0 0.0
    %296 = vmatpush1.msra.mxu0 0.0
    %297 = vmatprep.subr.mxu0 0.0
    %298 = vmatpush1.msra.mxu0 0.0
    %299 = vmatprep.subr.mxu0 0.0
    %300 = vmatpush1.msra.mxu0 0.0
    %301 = vmatprep.subr.mxu0 0.0
    %302 = vmatpush1.msra.mxu0 0.0
    %303 = vmatprep.subr.mxu0 0.0
    %304 = vmatpush1.msra.mxu0 0.0
    %305 = vmatprep.subr.mxu0 0.0
    %306 = vmatpush1.msra.mxu0 0.0
    %307 = vmatprep.subr.mxu0 0.0
    %308 = vmatpush1.msra.mxu0 0.0
    %309 = vmatprep.subr.mxu0 0.0
    %310 = vmatpush1.msra.mxu0 0.0
    %311 = vmatprep.subr.mxu0 0.0
    %312 = vmatpush1.msra.mxu0 0.0
    %313 = vmatprep.subr.mxu0 0.0
    %314 = vmatpush1.msra.mxu0 0.0
    %315 = vmatprep.subr.mxu0 0.0
    %316 = vmatpush1.msra.mxu0 0.0
    %317 = vmatprep.subr.mxu0 0.0
    %318 = vmatpush1.msra.mxu0 0.0
    %319 = vmatprep.subr.mxu0 0.0
    %320 = vmatpush1.msra.mxu0 0.0
    %321 = vmatprep.subr.mxu0 0.0
    %322 = vmatpush1.msra.mxu0 0.0
    %323 = vmatprep.subr.mxu0 0.0
    %324 = vmatpush1.msra.mxu0 0.0
    %325 = vmatprep.subr.mxu0 0.0
    %326 = vmatpush1.msra.mxu0 0.0
    %327 = vmatprep.subr.mxu0 0.0
    %328 = vmatpush1.msra.mxu0 0.0
    %329 = vmatprep.subr.mxu0 0.0
    %330 = vmatpush1.msra.mxu0 0.0
    %331 = vmatprep.subr.mxu0 0.0
    %332 = vmatpush1.msra.mxu0 0.0
    %333 = vmatprep.subr.mxu0 0.0
    %334 = vmatpush1.msra.mxu0 0.0
    %335 = vmatprep.subr.mxu0 0.0
    %336 = vmatpush1.msra.mxu0 0.0
    %337 = vmatprep.subr.mxu0 0.0
    %338 = vmatpush1.msra.mxu0 0.0
    %339 = vmatprep.subr.mxu0 0.0
    %340 = vmatpush1.msra.mxu0 0.0
    %341 = vmatprep.subr.mxu0 0.0
    %342 = vmatpush1.msra.mxu0 0.0
    %343 = vmatprep.subr.mxu0 0.0
    %344 = vmatpush1.msra.mxu0 0.0
    %345 = vmatprep.subr.mxu0 0.0
    %346 = vmatpush1.msra.mxu0 0.0
    %347 = vmatprep.subr.mxu0 0.0
    %348 = vmatpush1.msra.mxu0 0.0
    %349 = vmatprep.subr.mxu0 0.0
    %350 = vmatpush1.msra.mxu0 0.0
    %351 = vmatprep.mubr.f32.mxu0 0.0
    %352 = vmatmul.mubr.f32.gmra.mrb[0].mxu0 %v282
    %v353 = vpop.f32.mrb[0].mxu0
    %v354 = vadd.f32 %v279, %v353
    %v355 = vpop.f32.mrb[0].mxu0
    %356 = vmatprep.mubr.f32.mxu0 0.0
    %357 = vmatmul.mubr.f32.gmra.mrb[0].mxu0 %v285
    %v358 = vpop.f32.mrb[0].mxu0
    %v359 = vadd.f32 %v279, %v358
    %v360 = vpop.f32.mrb[0].mxu0
    %361 = vdwg.mxu0
    %vm362 = vcmask 785408
    %363 = vst.msk [vmem:[#allocation2] sm:$0xff] %vm362, %v354
    %vm364 = vcmask 780288
    %365 = vst.msk [vmem:[#allocation2 + $0x8] sm:$0x7] %vm364, %v359
    %v366 = vld [vmem:[#allocation2] sm:$0x1]
    %v368 = vsel %vm110, 0.0, 0
    %370 = vmatprep.subr.mxu0 0.0
    %371 = vmatpush1.msra.mxu0 %v269
    %372 = vmatprep.subr.mxu0 0.0
    %373 = vmatpush1.msra.mxu0 %v270
    %374 = vmatprep.subr.mxu0 0.0
    %375 = vmatpush1.msra.mxu0 %v271
    %376 = vmatprep.subr.mxu0 0.0
    %377 = vmatpush1.msra.mxu0 %v272
    %378 = vmatprep.subr.mxu0 0.0
    %379 = vmatpush1.msra.mxu0 0.0
    %380 = vmatprep.subr.mxu0 0.0
    %381 = vmatpush1.msra.mxu0 0.0
    %382 = vmatprep.subr.mxu0 0.0
    %383 = vmatpush1.msra.mxu0 0.0
    %384 = vmatprep.subr.mxu0 0.0
    %385 = vmatpush1.msra.mxu0 0.0
    %386 = vmatprep.subr.mxu0 0.0
    %387 = vmatpush1.msra.mxu0 0.0
    %388 = vmatprep.subr.mxu0 0.0
    %389 = vmatpush1.msra.mxu0 0.0
    %390 = vmatprep.subr.mxu0 0.0
    %391 = vmatpush1.msra.mxu0 0.0
    %392 = vmatprep.subr.mxu0 0.0
    %393 = vmatpush1.msra.mxu0 0.0
    %394 = vmatprep.subr.mxu0 0.0
    %395 = vmatpush1.msra.mxu0 0.0
    %396 = vmatprep.subr.mxu0 0.0
    %397 = vmatpush1.msra.mxu0 0.0
    %398 = vmatprep.subr.mxu0 0.0
    %399 = vmatpush1.msra.mxu0 0.0
    %400 = vmatprep.subr.mxu0 0.0
    %401 = vmatpush1.msra.mxu0 0.0
    %402 = vmatprep.subr.mxu0 0.0
    %403 = vmatpush1.msra.mxu0 0.0
    %404 = vmatprep.subr.mxu0 0.0
    %405 = vmatpush1.msra.mxu0 0.0
    %406 = vmatprep.subr.mxu0 0.0
    %407 = vmatpush1.msra.mxu0 0.0
    %408 = vmatprep.subr.mxu0 0.0
    %409 = vmatpush1.msra.mxu0 0.0
    %410 = vmatprep.subr.mxu0 0.0
    %411 = vmatpush1.msra.mxu0 0.0
    %412 = vmatprep.subr.mxu0 0.0
    %413 = vmatpush1.msra.mxu0 0.0
    %414 = vmatprep.subr.mxu0 0.0
    %415 = vmatpush1.msra.mxu0 0.0
    %416 = vmatprep.subr.mxu0 0.0
    %417 = vmatpush1.msra.mxu0 0.0
    %418 = vmatprep.subr.mxu0 0.0
    %419 = vmatpush1.msra.mxu0 0.0
    %420 = vmatprep.subr.mxu0 0.0
    %421 = vmatpush1.msra.mxu0 0.0
    %422 = vmatprep.subr.mxu0 0.0
    %423 = vmatpush1.msra.mxu0 0.0
    %424 = vmatprep.subr.mxu0 0.0
    %425 = vmatpush1.msra.mxu0 0.0
    %426 = vmatprep.subr.mxu0 0.0
    %427 = vmatpush1.msra.mxu0 0.0
    %428 = vmatprep.subr.mxu0 0.0
    %429 = vmatpush1.msra.mxu0 0.0
    %430 = vmatprep.subr.mxu0 0.0
    %431 = vmatpush1.msra.mxu0 0.0
    %432 = vmatprep.subr.mxu0 0.0
    %433 = vmatpush1.msra.mxu0 0.0
    %434 = vmatprep.mubr.f32.mxu0 0.0
    %435 = vmatmul.mubr.f32.gmra.mrb[0].mxu0 %v368
    %v436 = vpop.f32.mrb[0].mxu0
    %v437 = vadd.f32 %v274, %v436
    %v438 = vpop.f32.mrb[0].mxu0
    %439 = vdwg.mxu0
    %v440 = vadd.f32 %v366, %v437
    %v441 = vxor.u32 %v440, 2147483648
    %v442 = vmul.f32 %v441, 1.442695
    %v443 = vpow.pop %v442
    %v444 = vadd.f32 %v443, 1.0
    %v445 = vrcp.pop %v444
    %v446 = vmul.f32 1.0, %v445
    %448 = vrot.lane.b32.xlu0 %v437, 64
    %v449 = vpop.permute.xlu0 %448
    %v451 = vmul.f32 %v446, %v449
    %453 = vrot.lane.b32.xlu0 %v451, 64
    %v454 = vpop.permute.xlu0 %453
    %v456 = vadd.f32 %v366, %v454
    %v457 = vtanh.pop %v456
    %v458 = vsub.f32 0.0, %v457
    %460 = vrot.lane.b32.xlu0 %v458, 96
    %v461 = vpop.permute.xlu0 %460
    %v463 = vmul.f32 %v446, %v461
    %465 = vrot.lane.b32.xlu0 %v463, 32
    %v466 = vpop.permute.xlu0 %465
    %v468 = vadd.f32 %v457, %v466
    %470 = vrot.lane.b32.xlu0 %v468, 64
    %v471 = vpop.permute.xlu0 %470
    %vm473 = vcmask 253952
    %474 = vst.msk [vmem:[#allocation4] sm:$0x1] %vm473, %v471
    %v475 = vld [vmem:[#allocation2 + $0x1] sm:$0x1]
    %v476 = vsel %vm110, %v471, 0
    %478 = vmatprep.subr.mxu0 0.0
    %479 = vmatpush1.msra.mxu0 %v269
    %480 = vmatprep.subr.mxu0 0.0
    %481 = vmatpush1.msra.mxu0 %v270
    %482 = vmatprep.subr.mxu0 0.0
    %483 = vmatpush1.msra.mxu0 %v271
    %484 = vmatprep.subr.mxu0 0.0
    %485 = vmatpush1.msra.mxu0 %v272
    %486 = vmatprep.subr.mxu0 0.0
    %487 = vmatpush1.msra.mxu0 0.0
    %488 = vmatprep.subr.mxu0 0.0
    %489 = vmatpush1.msra.mxu0 0.0
    %490 = vmatprep.subr.mxu0 0.0
    %491 = vmatpush1.msra.mxu0 0.0
    %492 = vmatprep.subr.mxu0 0.0
    %493 = vmatpush1.msra.mxu0 0.0
    %494 = vmatprep.subr.mxu0 0.0
    %495 = vmatpush1.msra.mxu0 0.0
    %496 = vmatprep.subr.mxu0 0.0
    %497 = vmatpush1.msra.mxu0 0.0
    %498 = vmatprep.subr.mxu0 0.0
    %499 = vmatpush1.msra.mxu0 0.0
    %500 = vmatprep.subr.mxu0 0.0
    %501 = vmatpush1.msra.mxu0 0.0
    %502 = vmatprep.subr.mxu0 0.0
    %503 = vmatpush1.msra.mxu0 0.0
    %504 = vmatprep.subr.mxu0 0.0
    %505 = vmatpush1.msra.mxu0 0.0
    %506 = vmatprep.subr.mxu0 0.0
    %507 = vmatpush1.msra.mxu0 0.0
    %508 = vmatprep.subr.mxu0 0.0
    %509 = vmatpush1.msra.mxu0 0.0
    %510 = vmatprep.subr.mxu0 0.0
    %511 = vmatpush1.msra.mxu0 0.0
    %512 = vmatprep.subr.mxu0 0.0
    %513 = vmatpush1.msra.mxu0 0.0
    %514 = vmatprep.subr.mxu0 0.0
    %515 = vmatpush1.msra.mxu0 0.0
    %516 = vmatprep.subr.mxu0 0.0
    %517 = vmatpush1.msra.mxu0 0.0
    %518 = vmatprep.subr.mxu0 0.0
    %519 = vmatpush1.msra.mxu0 0.0
    %520 = vmatprep.subr.mxu0 0.0
    %521 = vmatpush1.msra.mxu0 0.0
    %522 = vmatprep.subr.mxu0 0.0
    %523 = vmatpush1.msra.mxu0 0.0
    %524 = vmatprep.subr.mxu0 0.0
    %525 = vmatpush1.msra.mxu0 0.0
    %526 = vmatprep.subr.mxu0 0.0
    %527 = vmatpush1.msra.mxu0 0.0
    %528 = vmatprep.subr.mxu0 0.0
    %529 = vmatpush1.msra.mxu0 0.0
    %530 = vmatprep.subr.mxu0 0.0
    %531 = vmatpush1.msra.mxu0 0.0
    %532 = vmatprep.subr.mxu0 0.0
    %533 = vmatpush1.msra.mxu0 0.0
    %534 = vmatprep.subr.mxu0 0.0
    %535 = vmatpush1.msra.mxu0 0.0
    %536 = vmatprep.subr.mxu0 0.0
    %537 = vmatpush1.msra.mxu0 0.0
    %538 = vmatprep.subr.mxu0 0.0
    %539 = vmatpush1.msra.mxu0 0.0
    %540 = vmatprep.subr.mxu0 0.0
    %541 = vmatpush1.msra.mxu0 0.0
    %542 = vmatprep.mubr.f32.mxu0 0.0
    %543 = vmatmul.mubr.f32.gmra.mrb[0].mxu0 %v476
    %v544 = vpop.f32.mrb[0].mxu0
    %v545 = vadd.f32 %v274, %v544
    %v546 = vpop.f32.mrb[0].mxu0
    %547 = vdwg.mxu0
    %v548 = vadd.f32 %v475, %v545
    %v549 = vxor.u32 %v548, 2147483648
    %v550 = vmul.f32 %v549, 1.442695
    %v551 = vpow.pop %v550
    %v552 = vadd.f32 %v551, 1.0
    %v553 = vrcp.pop %v552
    %v554 = vmul.f32 1.0, %v553
    %556 = vrot.lane.b32.xlu0 %v545, 64
    %v557 = vpop.permute.xlu0 %556
    %v559 = vmul.f32 %v554, %v557
    %561 = vrot.lane.b32.xlu0 %v559, 64
    %v562 = vpop.permute.xlu0 %561
    %v564 = vadd.f32 %v475, %v562
    %v565 = vtanh.pop %v564
    %v566 = vsub.f32 %v468, %v565
    %568 = vrot.lane.b32.xlu0 %v566, 96
    %v569 = vpop.permute.xlu0 %568
    %v571 = vmul.f32 %v554, %v569
    %573 = vrot.lane.b32.xlu0 %v571, 32
    %v574 = vpop.permute.xlu0 %573
    %v576 = vadd.f32 %v565, %v574
    %578 = vrot.lane.b32.xlu0 %v576, 64
    %v579 = vpop.permute.xlu0 %578
    %581 = vst.msk [vmem:[#allocation4 + $0x1] sm:$0x1] %vm473, %v579
    %v582 = vld [vmem:[#allocation2 + $0x2] sm:$0x1]
    %v583 = vsel %vm110, %v579, 0
    %585 = vmatprep.subr.mxu0 0.0
    %586 = vmatpush1.msra.mxu0 %v269
    %587 = vmatprep.subr.mxu0 0.0
    %588 = vmatpush1.msra.mxu0 %v270
    %589 = vmatprep.subr.mxu0 0.0
    %590 = vmatpush1.msra.mxu0 %v271
    %591 = vmatprep.subr.mxu0 0.0
    %592 = vmatpush1.msra.mxu0 %v272
    %593 = vmatprep.subr.mxu0 0.0
    %594 = vmatpush1.msra.mxu0 0.0
    %595 = vmatprep.subr.mxu0 0.0
    %596 = vmatpush1.msra.mxu0 0.0
    %597 = vmatprep.subr.mxu0 0.0
    %598 = vmatpush1.msra.mxu0 0.0
    %599 = vmatprep.subr.mxu0 0.0
    %600 = vmatpush1.msra.mxu0 0.0
    %601 = vmatprep.subr.mxu0 0.0
    %602 = vmatpush1.msra.mxu0 0.0
    %603 = vmatprep.subr.mxu0 0.0
    %604 = vmatpush1.msra.mxu0 0.0
    %605 = vmatprep.subr.mxu0 0.0
    %606 = vmatpush1.msra.mxu0 0.0
    %607 = vmatprep.subr.mxu0 0.0
    %608 = vmatpush1.msra.mxu0 0.0
    %609 = vmatprep.subr.mxu0 0.0
    %610 = vmatpush1.msra.mxu0 0.0
    %611 = vmatprep.subr.mxu0 0.0
    %612 = vmatpush1.msra.mxu0 0.0
    %613 = vmatprep.subr.mxu0 0.0
    %614 = vmatpush1.msra.mxu0 0.0
    %615 = vmatprep.subr.mxu0 0.0
    %616 = vmatpush1.msra.mxu0 0.0
    %617 = vmatprep.subr.mxu0 0.0
    %618 = vmatpush1.msra.mxu0 0.0
    %619 = vmatprep.subr.mxu0 0.0
    %620 = vmatpush1.msra.mxu0 0.0
    %621 = vmatprep.subr.mxu0 0.0
    %622 = vmatpush1.msra.mxu0 0.0
    %623 = vmatprep.subr.mxu0 0.0
    %624 = vmatpush1.msra.mxu0 0.0
    %625 = vmatprep.subr.mxu0 0.0
    %626 = vmatpush1.msra.mxu0 0.0
    %627 = vmatprep.subr.mxu0 0.0
    %628 = vmatpush1.msra.mxu0 0.0
    %629 = vmatprep.subr.mxu0 0.0
    %630 = vmatpush1.msra.mxu0 0.0
    %631 = vmatprep.subr.mxu0 0.0
    %632 = vmatpush1.msra.mxu0 0.0
    %633 = vmatprep.subr.mxu0 0.0
    %634 = vmatpush1.msra.mxu0 0.0
    %635 = vmatprep.subr.mxu0 0.0
    %636 = vmatpush1.msra.mxu0 0.0
    %637 = vmatprep.subr.mxu0 0.0
    %638 = vmatpush1.msra.mxu0 0.0
    %639 = vmatprep.subr.mxu0 0.0
    %640 = vmatpush1.msra.mxu0 0.0
    %641 = vmatprep.subr.mxu0 0.0
    %642 = vmatpush1.msra.mxu0 0.0
    %643 = vmatprep.subr.mxu0 0.0
    %644 = vmatpush1.msra.mxu0 0.0
    %645 = vmatprep.subr.mxu0 0.0
    %646 = vmatpush1.msra.mxu0 0.0
    %647 = vmatprep.subr.mxu0 0.0
    %648 = vmatpush1.msra.mxu0 0.0
    %649 = vmatprep.mubr.f32.mxu0 0.0
    %650 = vmatmul.mubr.f32.gmra.mrb[0].mxu0 %v583
    %v651 = vpop.f32.mrb[0].mxu0
    %v652 = vadd.f32 %v274, %v651
    %v653 = vpop.f32.mrb[0].mxu0
    %654 = vdwg.mxu0
    %v655 = vadd.f32 %v582, %v652
    %v656 = vxor.u32 %v655, 2147483648
    %v657 = vmul.f32 %v656, 1.442695
    %v658 = vpow.pop %v657
    %v659 = vadd.f32 %v658, 1.0
    %v660 = vrcp.pop %v659
    %v661 = vmul.f32 1.0, %v660
    %663 = vrot.lane.b32.xlu0 %v652, 64
    %v664 = vpop.permute.xlu0 %663
    %v666 = vmul.f32 %v661, %v664
    %668 = vrot.lane.b32.xlu0 %v666, 64
    %v669 = vpop.permute.xlu0 %668
    %v671 = vadd.f32 %v582, %v669
    %v672 = vtanh.pop %v671
    %v673 = vsub.f32 %v576, %v672
    %675 = vrot.lane.b32.xlu0 %v673, 96
    %v676 = vpop.permute.xlu0 %675
    %v678 = vmul.f32 %v661, %v676
    %680 = vrot.lane.b32.xlu0 %v678, 32
    %v681 = vpop.permute.xlu0 %680
    %v683 = vadd.f32 %v672, %v681
    %685 = vrot.lane.b32.xlu0 %v683, 64
    %v686 = vpop.permute.xlu0 %685
    %688 = vst.msk [vmem:[#allocation4 + $0x2] sm:$0x1] %vm473, %v686
    %v689 = vld [vmem:[#allocation2 + $0x3] sm:$0x1]
    %v690 = vsel %vm110, %v686, 0
    %692 = vmatprep.subr.mxu0 0.0
    %693 = vmatpush1.msra.mxu0 %v269
    %694 = vmatprep.subr.mxu0 0.0
    %695 = vmatpush1.msra.mxu0 %v270
    %696 = vmatprep.subr.mxu0 0.0
    %697 = vmatpush1.msra.mxu0 %v271
    %698 = vmatprep.subr.mxu0 0.0
    %699 = vmatpush1.msra.mxu0 %v272
    %700 = vmatprep.subr.mxu0 0.0
    %701 = vmatpush1.msra.mxu0 0.0
    %702 = vmatprep.subr.mxu0 0.0
    %703 = vmatpush1.msra.mxu0 0.0
    %704 = vmatprep.subr.mxu0 0.0
    %705 = vmatpush1.msra.mxu0 0.0
    %706 = vmatprep.subr.mxu0 0.0
    %707 = vmatpush1.msra.mxu0 0.0
    %708 = vmatprep.subr.mxu0 0.0
    %709 = vmatpush1.msra.mxu0 0.0
    %710 = vmatprep.subr.mxu0 0.0
    %711 = vmatpush1.msra.mxu0 0.0
    %712 = vmatprep.subr.mxu0 0.0
    %713 = vmatpush1.msra.mxu0 0.0
    %714 = vmatprep.subr.mxu0 0.0
    %715 = vmatpush1.msra.mxu0 0.0
    %716 = vmatprep.subr.mxu0 0.0
    %717 = vmatpush1.msra.mxu0 0.0
    %718 = vmatprep.subr.mxu0 0.0
    %719 = vmatpush1.msra.mxu0 0.0
    %720 = vmatprep.subr.mxu0 0.0
    %721 = vmatpush1.msra.mxu0 0.0
    %722 = vmatprep.subr.mxu0 0.0
    %723 = vmatpush1.msra.mxu0 0.0
    %724 = vmatprep.subr.mxu0 0.0
    %725 = vmatpush1.msra.mxu0 0.0
    %726 = vmatprep.subr.mxu0 0.0
    %727 = vmatpush1.msra.mxu0 0.0
    %728 = vmatprep.subr.mxu0 0.0
    %729 = vmatpush1.msra.mxu0 0.0
    %730 = vmatprep.subr.mxu0 0.0
    %731 = vmatpush1.msra.mxu0 0.0
    %732 = vmatprep.subr.mxu0 0.0
    %733 = vmatpush1.msra.mxu0 0.0
    %734 = vmatprep.subr.mxu0 0.0
    %735 = vmatpush1.msra.mxu0 0.0
    %736 = vmatprep.subr.mxu0 0.0
    %737 = vmatpush1.msra.mxu0 0.0
    %738 = vmatprep.subr.mxu0 0.0
    %739 = vmatpush1.msra.mxu0 0.0
    %740 = vmatprep.subr.mxu0 0.0
    %741 = vmatpush1.msra.mxu0 0.0
    %742 = vmatprep.subr.mxu0 0.0
    %743 = vmatpush1.msra.mxu0 0.0
    %744 = vmatprep.subr.mxu0 0.0
    %745 = vmatpush1.msra.mxu0 0.0
    %746 = vmatprep.subr.mxu0 0.0
    %747 = vmatpush1.msra.mxu0 0.0
    %748 = vmatprep.subr.mxu0 0.0
    %749 = vmatpush1.msra.mxu0 0.0
    %750 = vmatprep.subr.mxu0 0.0
    %751 = vmatpush1.msra.mxu0 0.0
    %752 = vmatprep.subr.mxu0 0.0
    %753 = vmatpush1.msra.mxu0 0.0
    %754 = vmatprep.subr.mxu0 0.0
    %755 = vmatpush1.msra.mxu0 0.0
    %756 = vmatprep.mubr.f32.mxu0 0.0
    %757 = vmatmul.mubr.f32.gmra.mrb[0].mxu0 %v690
    %v758 = vpop.f32.mrb[0].mxu0
    %v759 = vadd.f32 %v274, %v758
    %v760 = vpop.f32.mrb[0].mxu0
    %761 = vdwg.mxu0
    %v762 = vadd.f32 %v689, %v759
    %v763 = vxor.u32 %v762, 2147483648
    %v764 = vmul.f32 %v763, 1.442695
    %v765 = vpow.pop %v764
    %v766 = vadd.f32 %v765, 1.0
    %v767 = vrcp.pop %v766
    %v768 = vmul.f32 1.0, %v767
    %770 = vrot.lane.b32.xlu0 %v759, 64
    %v771 = vpop.permute.xlu0 %770
    %v773 = vmul.f32 %v768, %v771
    %775 = vrot.lane.b32.xlu0 %v773, 64
    %v776 = vpop.permute.xlu0 %775
    %v778 = vadd.f32 %v689, %v776
    %v779 = vtanh.pop %v778
    %v780 = vsub.f32 %v683, %v779
    %782 = vrot.lane.b32.xlu0 %v780, 96
    %v783 = vpop.permute.xlu0 %782
    %v785 = vmul.f32 %v768, %v783
    %787 = vrot.lane.b32.xlu0 %v785, 32
    %v788 = vpop.permute.xlu0 %787
    %v790 = vadd.f32 %v779, %v788
    %792 = vrot.lane.b32.xlu0 %v790, 64
    %v793 = vpop.permute.xlu0 %792
    %795 = vst.msk [vmem:[#allocation4 + $0x3] sm:$0x1] %vm473, %v793
    %v796 = vld [vmem:[#allocation2 + $0x4] sm:$0x1]
    %v797 = vsel %vm110, %v793, 0
    %799 = vmatprep.subr.mxu0 0.0
    %800 = vmatpush1.msra.mxu0 %v269
    %801 = vmatprep.subr.mxu0 0.0
    %802 = vmatpush1.msra.mxu0 %v270
    %803 = vmatprep.subr.mxu0 0.0
    %804 = vmatpush1.msra.mxu0 %v271
    %805 = vmatprep.subr.mxu0 0.0
    %806 = vmatpush1.msra.mxu0 %v272
    %807 = vmatprep.subr.mxu0 0.0
    %808 = vmatpush1.msra.mxu0 0.0
    %809 = vmatprep.subr.mxu0 0.0
    %810 = vmatpush1.msra.mxu0 0.0
    %811 = vmatprep.subr.mxu0 0.0
    %812 = vmatpush1.msra.mxu0 0.0
    %813 = vmatprep.subr.mxu0 0.0
    %814 = vmatpush1.msra.mxu0 0.0
    %815 = vmatprep.subr.mxu0 0.0
    %816 = vmatpush1.msra.mxu0 0.0
    %817 = vmatprep.subr.mxu0 0.0
    %818 = vmatpush1.msra.mxu0 0.0
    %819 = vmatprep.subr.mxu0 0.0
    %820 = vmatpush1.msra.mxu0 0.0
    %821 = vmatprep.subr.mxu0 0.0
    %822 = vmatpush1.msra.mxu0 0.0
    %823 = vmatprep.subr.mxu0 0.0
    %824 = vmatpush1.msra.mxu0 0.0
    %825 = vmatprep.subr.mxu0 0.0
    %826 = vmatpush1.msra.mxu0 0.0
    %827 = vmatprep.subr.mxu0 0.0
    %828 = vmatpush1.msra.mxu0 0.0
    %829 = vmatprep.subr.mxu0 0.0
    %830 = vmatpush1.msra.mxu0 0.0
    %831 = vmatprep.subr.mxu0 0.0
    %832 = vmatpush1.msra.mxu0 0.0
    %833 = vmatprep.subr.mxu0 0.0
    %834 = vmatpush1.msra.mxu0 0.0
    %835 = vmatprep.subr.mxu0 0.0
    %836 = vmatpush1.msra.mxu0 0.0
    %837 = vmatprep.subr.mxu0 0.0
    %838 = vmatpush1.msra.mxu0 0.0
    %839 = vmatprep.subr.mxu0 0.0
    %840 = vmatpush1.msra.mxu0 0.0
    %841 = vmatprep.subr.mxu0 0.0
    %842 = vmatpush1.msra.mxu0 0.0
    %843 = vmatprep.subr.mxu0 0.0
    %844 = vmatpush1.msra.mxu0 0.0
    %845 = vmatprep.subr.mxu0 0.0
    %846 = vmatpush1.msra.mxu0 0.0
    %847 = vmatprep.subr.mxu0 0.0
    %848 = vmatpush1.msra.mxu0 0.0
    %849 = vmatprep.subr.mxu0 0.0
    %850 = vmatpush1.msra.mxu0 0.0
    %851 = vmatprep.subr.mxu0 0.0
    %852 = vmatpush1.msra.mxu0 0.0
    %853 = vmatprep.subr.mxu0 0.0
    %854 = vmatpush1.msra.mxu0 0.0
    %855 = vmatprep.subr.mxu0 0.0
    %856 = vmatpush1.msra.mxu0 0.0
    %857 = vmatprep.subr.mxu0 0.0
    %858 = vmatpush1.msra.mxu0 0.0
    %859 = vmatprep.subr.mxu0 0.0
    %860 = vmatpush1.msra.mxu0 0.0
    %861 = vmatprep.subr.mxu0 0.0
    %862 = vmatpush1.msra.mxu0 0.0
    %863 = vmatprep.mubr.f32.mxu0 0.0
    %864 = vmatmul.mubr.f32.gmra.mrb[0].mxu0 %v797
    %v865 = vpop.f32.mrb[0].mxu0
    %v866 = vadd.f32 %v274, %v865
    %v867 = vpop.f32.mrb[0].mxu0
    %868 = vdwg.mxu0
    %v869 = vadd.f32 %v796, %v866
    %v870 = vxor.u32 %v869, 2147483648
    %v871 = vmul.f32 %v870, 1.442695
    %v872 = vpow.pop %v871
    %v873 = vadd.f32 %v872, 1.0
    %v874 = vrcp.pop %v873
    %v875 = vmul.f32 1.0, %v874
    %877 = vrot.lane.b32.xlu0 %v866, 64
    %v878 = vpop.permute.xlu0 %877
    %v880 = vmul.f32 %v875, %v878
    %882 = vrot.lane.b32.xlu0 %v880, 64
    %v883 = vpop.permute.xlu0 %882
    %v885 = vadd.f32 %v796, %v883
    %v886 = vtanh.pop %v885
    %v887 = vsub.f32 %v790, %v886
    %889 = vrot.lane.b32.xlu0 %v887, 96
    %v890 = vpop.permute.xlu0 %889
    %v892 = vmul.f32 %v875, %v890
    %894 = vrot.lane.b32.xlu0 %v892, 32
    %v895 = vpop.permute.xlu0 %894
    %v897 = vadd.f32 %v886, %v895
    %899 = vrot.lane.b32.xlu0 %v897, 64
    %v900 = vpop.permute.xlu0 %899
    %902 = vst.msk [vmem:[#allocation4 + $0x4] sm:$0x1] %vm473, %v900
    %v903 = vld [vmem:[#allocation2 + $0x5] sm:$0x1]
    %v904 = vsel %vm110, %v900, 0
    %906 = vmatprep.subr.mxu0 0.0
    %907 = vmatpush1.msra.mxu0 %v269
    %908 = vmatprep.subr.mxu0 0.0
    %909 = vmatpush1.msra.mxu0 %v270
    %910 = vmatprep.subr.mxu0 0.0
    %911 = vmatpush1.msra.mxu0 %v271
    %912 = vmatprep.subr.mxu0 0.0
    %913 = vmatpush1.msra.mxu0 %v272
    %914 = vmatprep.subr.mxu0 0.0
    %915 = vmatpush1.msra.mxu0 0.0
    %916 = vmatprep.subr.mxu0 0.0
    %917 = vmatpush1.msra.mxu0 0.0
    %918 = vmatprep.subr.mxu0 0.0
    %919 = vmatpush1.msra.mxu0 0.0
    %920 = vmatprep.subr.mxu0 0.0
    %921 = vmatpush1.msra.mxu0 0.0
    %922 = vmatprep.subr.mxu0 0.0
    %923 = vmatpush1.msra.mxu0 0.0
    %924 = vmatprep.subr.mxu0 0.0
    %925 = vmatpush1.msra.mxu0 0.0
    %926 = vmatprep.subr.mxu0 0.0
    %927 = vmatpush1.msra.mxu0 0.0
    %928 = vmatprep.subr.mxu0 0.0
    %929 = vmatpush1.msra.mxu0 0.0
    %930 = vmatprep.subr.mxu0 0.0
    %931 = vmatpush1.msra.mxu0 0.0
    %932 = vmatprep.subr.mxu0 0.0
    %933 = vmatpush1.msra.mxu0 0.0
    %934 = vmatprep.subr.mxu0 0.0
    %935 = vmatpush1.msra.mxu0 0.0
    %936 = vmatprep.subr.mxu0 0.0
    %937 = vmatpush1.msra.mxu0 0.0
    %938 = vmatprep.subr.mxu0 0.0
    %939 = vmatpush1.msra.mxu0 0.0
    %940 = vmatprep.subr.mxu0 0.0
    %941 = vmatpush1.msra.mxu0 0.0
    %942 = vmatprep.subr.mxu0 0.0
    %943 = vmatpush1.msra.mxu0 0.0
    %944 = vmatprep.subr.mxu0 0.0
    %945 = vmatpush1.msra.mxu0 0.0
    %946 = vmatprep.subr.mxu0 0.0
    %947 = vmatpush1.msra.mxu0 0.0
    %948 = vmatprep.subr.mxu0 0.0
    %949 = vmatpush1.msra.mxu0 0.0
    %950 = vmatprep.subr.mxu0 0.0
    %951 = vmatpush1.msra.mxu0 0.0
    %952 = vmatprep.subr.mxu0 0.0
    %953 = vmatpush1.msra.mxu0 0.0
    %954 = vmatprep.subr.mxu0 0.0
    %955 = vmatpush1.msra.mxu0 0.0
    %956 = vmatprep.subr.mxu0 0.0
    %957 = vmatpush1.msra.mxu0 0.0
    %958 = vmatprep.subr.mxu0 0.0
    %959 = vmatpush1.msra.mxu0 0.0
    %960 = vmatprep.subr.mxu0 0.0
    %961 = vmatpush1.msra.mxu0 0.0
    %962 = vmatprep.subr.mxu0 0.0
    %963 = vmatpush1.msra.mxu0 0.0
    %964 = vmatprep.subr.mxu0 0.0
    %965 = vmatpush1.msra.mxu0 0.0
    %966 = vmatprep.subr.mxu0 0.0
    %967 = vmatpush1.msra.mxu0 0.0
    %968 = vmatprep.subr.mxu0 0.0
    %969 = vmatpush1.msra.mxu0 0.0
    %970 = vmatprep.mubr.f32.mxu0 0.0
    %971 = vmatmul.mubr.f32.gmra.mrb[0].mxu0 %v904
    %v972 = vpop.f32.mrb[0].mxu0
    %v973 = vadd.f32 %v274, %v972
    %v974 = vpop.f32.mrb[0].mxu0
    %975 = vdwg.mxu0
    %v976 = vadd.f32 %v903, %v973
    %v977 = vxor.u32 %v976, 2147483648
    %v978 = vmul.f32 %v977, 1.442695
    %v979 = vpow.pop %v978
    %v980 = vadd.f32 %v979, 1.0
    %v981 = vrcp.pop %v980
    %v982 = vmul.f32 1.0, %v981
    %984 = vrot.lane.b32.xlu0 %v973, 64
    %v985 = vpop.permute.xlu0 %984
    %v987 = vmul.f32 %v982, %v985
    %989 = vrot.lane.b32.xlu0 %v987, 64
    %v990 = vpop.permute.xlu0 %989
    %v992 = vadd.f32 %v903, %v990
    %v993 = vtanh.pop %v992
    %v994 = vsub.f32 %v897, %v993
    %996 = vrot.lane.b32.xlu0 %v994, 96
    %v997 = vpop.permute.xlu0 %996
    %v999 = vmul.f32 %v982, %v997
    %1001 = vrot.lane.b32.xlu0 %v999, 32
    %v1002 = vpop.permute.xlu0 %1001
    %v1004 = vadd.f32 %v993, %v1002
    %1006 = vrot.lane.b32.xlu0 %v1004, 64
    %v1007 = vpop.permute.xlu0 %1006
    %1009 = vst.msk [vmem:[#allocation4 + $0x5] sm:$0x1] %vm473, %v1007
    %v1010 = vld [vmem:[#allocation2 + $0x6] sm:$0x1]
    %v1011 = vsel %vm110, %v1007, 0
    %1013 = vmatprep.subr.mxu0 0.0
    %1014 = vmatpush1.msra.mxu0 %v269
    %1015 = vmatprep.subr.mxu0 0.0
    %1016 = vmatpush1.msra.mxu0 %v270
    %1017 = vmatprep.subr.mxu0 0.0
    %1018 = vmatpush1.msra.mxu0 %v271
    %1019 = vmatprep.subr.mxu0 0.0
    %1020 = vmatpush1.msra.mxu0 %v272
    %1021 = vmatprep.subr.mxu0 0.0
    %1022 = vmatpush1.msra.mxu0 0.0
    %1023 = vmatprep.subr.mxu0 0.0
    %1024 = vmatpush1.msra.mxu0 0.0
    %1025 = vmatprep.subr.mxu0 0.0
    %1026 = vmatpush1.msra.mxu0 0.0
    %1027 = vmatprep.subr.mxu0 0.0
    %1028 = vmatpush1.msra.mxu0 0.0
    %1029 = vmatprep.subr.mxu0 0.0
    %1030 = vmatpush1.msra.mxu0 0.0
    %1031 = vmatprep.subr.mxu0 0.0
    %1032 = vmatpush1.msra.mxu0 0.0
    %1033 = vmatprep.subr.mxu0 0.0
    %1034 = vmatpush1.msra.mxu0 0.0
    %1035 = vmatprep.subr.mxu0 0.0
    %1036 = vmatpush1.msra.mxu0 0.0
    %1037 = vmatprep.subr.mxu0 0.0
    %1038 = vmatpush1.msra.mxu0 0.0
    %1039 = vmatprep.subr.mxu0 0.0
    %1040 = vmatpush1.msra.mxu0 0.0
    %1041 = vmatprep.subr.mxu0 0.0
    %1042 = vmatpush1.msra.mxu0 0.0
    %1043 = vmatprep.subr.mxu0 0.0
    %1044 = vmatpush1.msra.mxu0 0.0
    %1045 = vmatprep.subr.mxu0 0.0
    %1046 = vmatpush1.msra.mxu0 0.0
    %1047 = vmatprep.subr.mxu0 0.0
    %1048 = vmatpush1.msra.mxu0 0.0
    %1049 = vmatprep.subr.mxu0 0.0
    %1050 = vmatpush1.msra.mxu0 0.0
    %1051 = vmatprep.subr.mxu0 0.0
    %1052 = vmatpush1.msra.mxu0 0.0
    %1053 = vmatprep.subr.mxu0 0.0
    %1054 = vmatpush1.msra.mxu0 0.0
    %1055 = vmatprep.subr.mxu0 0.0
    %1056 = vmatpush1.msra.mxu0 0.0
    %1057 = vmatprep.subr.mxu0 0.0
    %1058 = vmatpush1.msra.mxu0 0.0
    %1059 = vmatprep.subr.mxu0 0.0
    %1060 = vmatpush1.msra.mxu0 0.0
    %1061 = vmatprep.subr.mxu0 0.0
    %1062 = vmatpush1.msra.mxu0 0.0
    %1063 = vmatprep.subr.mxu0 0.0
    %1064 = vmatpush1.msra.mxu0 0.0
    %1065 = vmatprep.subr.mxu0 0.0
    %1066 = vmatpush1.msra.mxu0 0.0
    %1067 = vmatprep.subr.mxu0 0.0
    %1068 = vmatpush1.msra.mxu0 0.0
    %1069 = vmatprep.subr.mxu0 0.0
    %1070 = vmatpush1.msra.mxu0 0.0
    %1071 = vmatprep.subr.mxu0 0.0
    %1072 = vmatpush1.msra.mxu0 0.0
    %1073 = vmatprep.subr.mxu0 0.0
    %1074 = vmatpush1.msra.mxu0 0.0
    %1075 = vmatprep.subr.mxu0 0.0
    %1076 = vmatpush1.msra.mxu0 0.0
    %1077 = vmatprep.mubr.f32.mxu0 0.0
    %1078 = vmatmul.mubr.f32.gmra.mrb[0].mxu0 %v1011
    %v1079 = vpop.f32.mrb[0].mxu0
    %v1080 = vadd.f32 %v274, %v1079
    %v1081 = vpop.f32.mrb[0].mxu0
    %1082 = vdwg.mxu0
    %v1083 = vadd.f32 %v1010, %v1080
    %v1084 = vxor.u32 %v1083, 2147483648
    %v1085 = vmul.f32 %v1084, 1.442695
    %v1086 = vpow.pop %v1085
    %v1087 = vadd.f32 %v1086, 1.0
    %v1088 = vrcp.pop %v1087
    %v1089 = vmul.f32 1.0, %v1088
    %1091 = vrot.lane.b32.xlu0 %v1080, 64
    %v1092 = vpop.permute.xlu0 %1091
    %v1094 = vmul.f32 %v1089, %v1092
    %1096 = vrot.lane.b32.xlu0 %v1094, 64
    %v1097 = vpop.permute.xlu0 %1096
    %v1099 = vadd.f32 %v1010, %v1097
    %v1100 = vtanh.pop %v1099
    %v1101 = vsub.f32 %v1004, %v1100
    %1103 = vrot.lane.b32.xlu0 %v1101, 96
    %v1104 = vpop.permute.xlu0 %1103
    %v1106 = vmul.f32 %v1089, %v1104
    %1108 = vrot.lane.b32.xlu0 %v1106, 32
    %v1109 = vpop.permute.xlu0 %1108
    %v1111 = vadd.f32 %v1100, %v1109
    %1113 = vrot.lane.b32.xlu0 %v1111, 64
    %v1114 = vpop.permute.xlu0 %1113
    %1116 = vst.msk [vmem:[#allocation4 + $0x6] sm:$0x1] %vm473, %v1114
    %v1117 = vld [vmem:[#allocation2 + $0x7] sm:$0x1]
    %v1118 = vsel %vm110, %v1114, 0
    %1120 = vmatprep.subr.mxu0 0.0
    %1121 = vmatpush1.msra.mxu0 %v269
    %1122 = vmatprep.subr.mxu0 0.0
    %1123 = vmatpush1.msra.mxu0 %v270
    %1124 = vmatprep.subr.mxu0 0.0
    %1125 = vmatpush1.msra.mxu0 %v271
    %1126 = vmatprep.subr.mxu0 0.0
    %1127 = vmatpush1.msra.mxu0 %v272
    %1128 = vmatprep.subr.mxu0 0.0
    %1129 = vmatpush1.msra.mxu0 0.0
    %1130 = vmatprep.subr.mxu0 0.0
    %1131 = vmatpush1.msra.mxu0 0.0
    %1132 = vmatprep.subr.mxu0 0.0
    %1133 = vmatpush1.msra.mxu0 0.0
    %1134 = vmatprep.subr.mxu0 0.0
    %1135 = vmatpush1.msra.mxu0 0.0
    %1136 = vmatprep.subr.mxu0 0.0
    %1137 = vmatpush1.msra.mxu0 0.0
    %1138 = vmatprep.subr.mxu0 0.0
    %1139 = vmatpush1.msra.mxu0 0.0
    %1140 = vmatprep.subr.mxu0 0.0
    %1141 = vmatpush1.msra.mxu0 0.0
    %1142 = vmatprep.subr.mxu0 0.0
    %1143 = vmatpush1.msra.mxu0 0.0
    %1144 = vmatprep.subr.mxu0 0.0
    %1145 = vmatpush1.msra.mxu0 0.0
    %1146 = vmatprep.subr.mxu0 0.0
    %1147 = vmatpush1.msra.mxu0 0.0
    %1148 = vmatprep.subr.mxu0 0.0
    %1149 = vmatpush1.msra.mxu0 0.0
    %1150 = vmatprep.subr.mxu0 0.0
    %1151 = vmatpush1.msra.mxu0 0.0
    %1152 = vmatprep.subr.mxu0 0.0
    %1153 = vmatpush1.msra.mxu0 0.0
    %1154 = vmatprep.subr.mxu0 0.0
    %1155 = vmatpush1.msra.mxu0 0.0
    %1156 = vmatprep.subr.mxu0 0.0
    %1157 = vmatpush1.msra.mxu0 0.0
    %1158 = vmatprep.subr.mxu0 0.0
    %1159 = vmatpush1.msra.mxu0 0.0
    %1160 = vmatprep.subr.mxu0 0.0
    %1161 = vmatpush1.msra.mxu0 0.0
    %1162 = vmatprep.subr.mxu0 0.0
    %1163 = vmatpush1.msra.mxu0 0.0
    %1164 = vmatprep.subr.mxu0 0.0
    %1165 = vmatpush1.msra.mxu0 0.0
    %1166 = vmatprep.subr.mxu0 0.0
    %1167 = vmatpush1.msra.mxu0 0.0
    %1168 = vmatprep.subr.mxu0 0.0
    %1169 = vmatpush1.msra.mxu0 0.0
    %1170 = vmatprep.subr.mxu0 0.0
    %1171 = vmatpush1.msra.mxu0 0.0
    %1172 = vmatprep.subr.mxu0 0.0
    %1173 = vmatpush1.msra.mxu0 0.0
    %1174 = vmatprep.subr.mxu0 0.0
    %1175 = vmatpush1.msra.mxu0 0.0
    %1176 = vmatprep.subr.mxu0 0.0
    %1177 = vmatpush1.msra.mxu0 0.0
    %1178 = vmatprep.subr.mxu0 0.0
    %1179 = vmatpush1.msra.mxu0 0.0
    %1180 = vmatprep.subr.mxu0 0.0
    %1181 = vmatpush1.msra.mxu0 0.0
    %1182 = vmatprep.subr.mxu0 0.0
    %1183 = vmatpush1.msra.mxu0 0.0
    %1184 = vmatprep.mubr.f32.mxu0 0.0
    %1185 = vmatmul.mubr.f32.gmra.mrb[0].mxu0 %v1118
    %v1186 = vpop.f32.mrb[0].mxu0
    %v1187 = vadd.f32 %v274, %v1186
    %v1188 = vpop.f32.mrb[0].mxu0
    %1189 = vdwg.mxu0
    %v1190 = vadd.f32 %v1117, %v1187
    %v1191 = vxor.u32 %v1190, 2147483648
    %v1192 = vmul.f32 %v1191, 1.442695
    %v1193 = vpow.pop %v1192
    %v1194 = vadd.f32 %v1193, 1.0
    %v1195 = vrcp.pop %v1194
    %v1196 = vmul.f32 1.0, %v1195
    %1198 = vrot.lane.b32.xlu0 %v1187, 64
    %v1199 = vpop.permute.xlu0 %1198
    %v1201 = vmul.f32 %v1196, %v1199
    %1203 = vrot.lane.b32.xlu0 %v1201, 64
    %v1204 = vpop.permute.xlu0 %1203
    %v1206 = vadd.f32 %v1117, %v1204
    %v1207 = vtanh.pop %v1206
    %v1208 = vsub.f32 %v1111, %v1207
    %1210 = vrot.lane.b32.xlu0 %v1208, 96
    %v1211 = vpop.permute.xlu0 %1210
    %v1213 = vmul.f32 %v1196, %v1211
    %1215 = vrot.lane.b32.xlu0 %v1213, 32
    %v1216 = vpop.permute.xlu0 %1215
    %v1218 = vadd.f32 %v1207, %v1216
    %1220 = vrot.lane.b32.xlu0 %v1218, 64
    %v1221 = vpop.permute.xlu0 %1220
    %1223 = vst.msk [vmem:[#allocation4 + $0x7] sm:$0x1] %vm473, %v1221
    %v1224 = vld [vmem:[#allocation2 + $0x8] sm:$0x1]
    %v1225 = vsel %vm110, %v1221, 0
    %1227 = vmatprep.subr.mxu0 0.0
    %1228 = vmatpush1.msra.mxu0 %v269
    %1229 = vmatprep.subr.mxu0 0.0
    %1230 = vmatpush1.msra.mxu0 %v270
    %1231 = vmatprep.subr.mxu0 0.0
    %1232 = vmatpush1.msra.mxu0 %v271
    %1233 = vmatprep.subr.mxu0 0.0
    %1234 = vmatpush1.msra.mxu0 %v272
    %1235 = vmatprep.subr.mxu0 0.0
    %1236 = vmatpush1.msra.mxu0 0.0
    %1237 = vmatprep.subr.mxu0 0.0
    %1238 = vmatpush1.msra.mxu0 0.0
    %1239 = vmatprep.subr.mxu0 0.0
    %1240 = vmatpush1.msra.mxu0 0.0
    %1241 = vmatprep.subr.mxu0 0.0
    %1242 = vmatpush1.msra.mxu0 0.0
    %1243 = vmatprep.subr.mxu0 0.0
    %1244 = vmatpush1.msra.mxu0 0.0
    %1245 = vmatprep.subr.mxu0 0.0
    %1246 = vmatpush1.msra.mxu0 0.0
    %1247 = vmatprep.subr.mxu0 0.0
    %1248 = vmatpush1.msra.mxu0 0.0
    %1249 = vmatprep.subr.mxu0 0.0
    %1250 = vmatpush1.msra.mxu0 0.0
    %1251 = vmatprep.subr.mxu0 0.0
    %1252 = vmatpush1.msra.mxu0 0.0
    %1253 = vmatprep.subr.mxu0 0.0
    %1254 = vmatpush1.msra.mxu0 0.0
    %1255 = vmatprep.subr.mxu0 0.0
    %1256 = vmatpush1.msra.mxu0 0.0
    %1257 = vmatprep.subr.mxu0 0.0
    %1258 = vmatpush1.msra.mxu0 0.0
    %1259 = vmatprep.subr.mxu0 0.0
    %1260 = vmatpush1.msra.mxu0 0.0
    %1261 = vmatprep.subr.mxu0 0.0
    %1262 = vmatpush1.msra.mxu0 0.0
    %1263 = vmatprep.subr.mxu0 0.0
    %1264 = vmatpush1.msra.mxu0 0.0
    %1265 = vmatprep.subr.mxu0 0.0
    %1266 = vmatpush1.msra.mxu0 0.0
    %1267 = vmatprep.subr.mxu0 0.0
    %1268 = vmatpush1.msra.mxu0 0.0
    %1269 = vmatprep.subr.mxu0 0.0
    %1270 = vmatpush1.msra.mxu0 0.0
    %1271 = vmatprep.subr.mxu0 0.0
    %1272 = vmatpush1.msra.mxu0 0.0
    %1273 = vmatprep.subr.mxu0 0.0
    %1274 = vmatpush1.msra.mxu0 0.0
    %1275 = vmatprep.subr.mxu0 0.0
    %1276 = vmatpush1.msra.mxu0 0.0
    %1277 = vmatprep.subr.mxu0 0.0
    %1278 = vmatpush1.msra.mxu0 0.0
    %1279 = vmatprep.subr.mxu0 0.0
    %1280 = vmatpush1.msra.mxu0 0.0
    %1281 = vmatprep.subr.mxu0 0.0
    %1282 = vmatpush1.msra.mxu0 0.0
    %1283 = vmatprep.subr.mxu0 0.0
    %1284 = vmatpush1.msra.mxu0 0.0
    %1285 = vmatprep.subr.mxu0 0.0
    %1286 = vmatpush1.msra.mxu0 0.0
    %1287 = vmatprep.subr.mxu0 0.0
    %1288 = vmatpush1.msra.mxu0 0.0
    %1289 = vmatprep.subr.mxu0 0.0
    %1290 = vmatpush1.msra.mxu0 0.0
    %1291 = vmatprep.mubr.f32.mxu0 0.0
    %1292 = vmatmul.mubr.f32.gmra.mrb[0].mxu0 %v1225
    %v1293 = vpop.f32.mrb[0].mxu0
    %v1294 = vadd.f32 %v274, %v1293
    %v1295 = vpop.f32.mrb[0].mxu0
    %1296 = vdwg.mxu0
    %v1297 = vadd.f32 %v1224, %v1294
    %v1298 = vxor.u32 %v1297, 2147483648
    %v1299 = vmul.f32 %v1298, 1.442695
    %v1300 = vpow.pop %v1299
    %v1301 = vadd.f32 %v1300, 1.0
    %v1302 = vrcp.pop %v1301
    %v1303 = vmul.f32 1.0, %v1302
    %1305 = vrot.lane.b32.xlu0 %v1294, 64
    %v1306 = vpop.permute.xlu0 %1305
    %v1308 = vmul.f32 %v1303, %v1306
    %1310 = vrot.lane.b32.xlu0 %v1308, 64
    %v1311 = vpop.permute.xlu0 %1310
    %v1313 = vadd.f32 %v1224, %v1311
    %v1314 = vtanh.pop %v1313
    %v1315 = vsub.f32 %v1218, %v1314
    %1317 = vrot.lane.b32.xlu0 %v1315, 96
    %v1318 = vpop.permute.xlu0 %1317
    %v1320 = vmul.f32 %v1303, %v1318
    %1322 = vrot.lane.b32.xlu0 %v1320, 32
    %v1323 = vpop.permute.xlu0 %1322
    %v1325 = vadd.f32 %v1314, %v1323
    %1327 = vrot.lane.b32.xlu0 %v1325, 64
    %v1328 = vpop.permute.xlu0 %1327
    %1330 = vst.msk [vmem:[#allocation4 + $0x8] sm:$0x1] %vm473, %v1328
    %v1331 = vld [vmem:[#allocation2 + $0x9] sm:$0x1]
    %v1332 = vsel %vm110, %v1328, 0
    %1334 = vmatprep.subr.mxu0 0.0
    %1335 = vmatpush1.msra.mxu0 %v269
    %1336 = vmatprep.subr.mxu0 0.0
    %1337 = vmatpush1.msra.mxu0 %v270
    %1338 = vmatprep.subr.mxu0 0.0
    %1339 = vmatpush1.msra.mxu0 %v271
    %1340 = vmatprep.subr.mxu0 0.0
    %1341 = vmatpush1.msra.mxu0 %v272
    %1342 = vmatprep.subr.mxu0 0.0
    %1343 = vmatpush1.msra.mxu0 0.0
    %1344 = vmatprep.subr.mxu0 0.0
    %1345 = vmatpush1.msra.mxu0 0.0
    %1346 = vmatprep.subr.mxu0 0.0
    %1347 = vmatpush1.msra.mxu0 0.0
    %1348 = vmatprep.subr.mxu0 0.0
    %1349 = vmatpush1.msra.mxu0 0.0
    %1350 = vmatprep.subr.mxu0 0.0
    %1351 = vmatpush1.msra.mxu0 0.0
    %1352 = vmatprep.subr.mxu0 0.0
    %1353 = vmatpush1.msra.mxu0 0.0
    %1354 = vmatprep.subr.mxu0 0.0
    %1355 = vmatpush1.msra.mxu0 0.0
    %1356 = vmatprep.subr.mxu0 0.0
    %1357 = vmatpush1.msra.mxu0 0.0
    %1358 = vmatprep.subr.mxu0 0.0
    %1359 = vmatpush1.msra.mxu0 0.0
    %1360 = vmatprep.subr.mxu0 0.0
    %1361 = vmatpush1.msra.mxu0 0.0
    %1362 = vmatprep.subr.mxu0 0.0
    %1363 = vmatpush1.msra.mxu0 0.0
    %1364 = vmatprep.subr.mxu0 0.0
    %1365 = vmatpush1.msra.mxu0 0.0
    %1366 = vmatprep.subr.mxu0 0.0
    %1367 = vmatpush1.msra.mxu0 0.0
    %1368 = vmatprep.subr.mxu0 0.0
    %1369 = vmatpush1.msra.mxu0 0.0
    %1370 = vmatprep.subr.mxu0 0.0
    %1371 = vmatpush1.msra.mxu0 0.0
    %1372 = vmatprep.subr.mxu0 0.0
    %1373 = vmatpush1.msra.mxu0 0.0
    %1374 = vmatprep.subr.mxu0 0.0
    %1375 = vmatpush1.msra.mxu0 0.0
    %1376 = vmatprep.subr.mxu0 0.0
    %1377 = vmatpush1.msra.mxu0 0.0
    %1378 = vmatprep.subr.mxu0 0.0
    %1379 = vmatpush1.msra.mxu0 0.0
    %1380 = vmatprep.subr.mxu0 0.0
    %1381 = vmatpush1.msra.mxu0 0.0
    %1382 = vmatprep.subr.mxu0 0.0
    %1383 = vmatpush1.msra.mxu0 0.0
    %1384 = vmatprep.subr.mxu0 0.0
    %1385 = vmatpush1.msra.mxu0 0.0
    %1386 = vmatprep.subr.mxu0 0.0
    %1387 = vmatpush1.msra.mxu0 0.0
    %1388 = vmatprep.subr.mxu0 0.0
    %1389 = vmatpush1.msra.mxu0 0.0
    %1390 = vmatprep.subr.mxu0 0.0
    %1391 = vmatpush1.msra.mxu0 0.0
    %1392 = vmatprep.subr.mxu0 0.0
    %1393 = vmatpush1.msra.mxu0 0.0
    %1394 = vmatprep.subr.mxu0 0.0
    %1395 = vmatpush1.msra.mxu0 0.0
    %1396 = vmatprep.subr.mxu0 0.0
    %1397 = vmatpush1.msra.mxu0 0.0
    %1398 = vmatprep.mubr.f32.mxu0 0.0
    %1399 = vmatmul.mubr.f32.gmra.mrb[0].mxu0 %v1332
    %v1400 = vpop.f32.mrb[0].mxu0
    %v1401 = vadd.f32 %v274, %v1400
    %v1402 = vpop.f32.mrb[0].mxu0
    %1403 = vdwg.mxu0
    %v1404 = vadd.f32 %v1331, %v1401
    %v1405 = vxor.u32 %v1404, 2147483648
    %v1406 = vmul.f32 %v1405, 1.442695
    %v1407 = vpow.pop %v1406
    %v1408 = vadd.f32 %v1407, 1.0
    %v1409 = vrcp.pop %v1408
    %v1410 = vmul.f32 1.0, %v1409
    %1412 = vrot.lane.b32.xlu0 %v1401, 64
    %v1413 = vpop.permute.xlu0 %1412
    %v1415 = vmul.f32 %v1410, %v1413
    %1417 = vrot.lane.b32.xlu0 %v1415, 64
    %v1418 = vpop.permute.xlu0 %1417
    %v1420 = vadd.f32 %v1331, %v1418
    %v1421 = vtanh.pop %v1420
    %v1422 = vsub.f32 %v1325, %v1421
    %1424 = vrot.lane.b32.xlu0 %v1422, 96
    %v1425 = vpop.permute.xlu0 %1424
    %v1427 = vmul.f32 %v1410, %v1425
    %1429 = vrot.lane.b32.xlu0 %v1427, 32
    %v1430 = vpop.permute.xlu0 %1429
    %v1432 = vadd.f32 %v1421, %v1430
    %1434 = vrot.lane.b32.xlu0 %v1432, 64
    %v1435 = vpop.permute.xlu0 %1434
    %1437 = vst.msk [vmem:[#allocation4 + $0x9] sm:$0x1] %vm473, %v1435
    %v1438 = vld [vmem:[#allocation2 + $0xa] sm:$0x1]
    %v1439 = vsel %vm110, %v1435, 0
    %1441 = vmatprep.subr.mxu0 0.0
    %1442 = vmatpush1.msra.mxu0 %v269
    %1443 = vmatprep.subr.mxu0 0.0
    %1444 = vmatpush1.msra.mxu0 %v270
    %1445 = vmatprep.subr.mxu0 0.0
    %1446 = vmatpush1.msra.mxu0 %v271
    %1447 = vmatprep.subr.mxu0 0.0
    %1448 = vmatpush1.msra.mxu0 %v272
    %1449 = vmatprep.subr.mxu0 0.0
    %1450 = vmatpush1.msra.mxu0 0.0
    %1451 = vmatprep.subr.mxu0 0.0
    %1452 = vmatpush1.msra.mxu0 0.0
    %1453 = vmatprep.subr.mxu0 0.0
    %1454 = vmatpush1.msra.mxu0 0.0
    %1455 = vmatprep.subr.mxu0 0.0
    %1456 = vmatpush1.msra.mxu0 0.0
    %1457 = vmatprep.subr.mxu0 0.0
    %1458 = vmatpush1.msra.mxu0 0.0
    %1459 = vmatprep.subr.mxu0 0.0
    %1460 = vmatpush1.msra.mxu0 0.0
    %1461 = vmatprep.subr.mxu0 0.0
    %1462 = vmatpush1.msra.mxu0 0.0
    %1463 = vmatprep.subr.mxu0 0.0
    %1464 = vmatpush1.msra.mxu0 0.0
    %1465 = vmatprep.subr.mxu0 0.0
    %1466 = vmatpush1.msra.mxu0 0.0
    %1467 = vmatprep.subr.mxu0 0.0
    %1468 = vmatpush1.msra.mxu0 0.0
    %1469 = vmatprep.subr.mxu0 0.0
    %1470 = vmatpush1.msra.mxu0 0.0
    %1471 = vmatprep.subr.mxu0 0.0
    %1472 = vmatpush1.msra.mxu0 0.0
    %1473 = vmatprep.subr.mxu0 0.0
    %1474 = vmatpush1.msra.mxu0 0.0
    %1475 = vmatprep.subr.mxu0 0.0
    %1476 = vmatpush1.msra.mxu0 0.0
    %1477 = vmatprep.subr.mxu0 0.0
    %1478 = vmatpush1.msra.mxu0 0.0
    %1479 = vmatprep.subr.mxu0 0.0
    %1480 = vmatpush1.msra.mxu0 0.0
    %1481 = vmatprep.subr.mxu0 0.0
    %1482 = vmatpush1.msra.mxu0 0.0
    %1483 = vmatprep.subr.mxu0 0.0
    %1484 = vmatpush1.msra.mxu0 0.0
    %1485 = vmatprep.subr.mxu0 0.0
    %1486 = vmatpush1.msra.mxu0 0.0
    %1487 = vmatprep.subr.mxu0 0.0
    %1488 = vmatpush1.msra.mxu0 0.0
    %1489 = vmatprep.subr.mxu0 0.0
    %1490 = vmatpush1.msra.mxu0 0.0
    %1491 = vmatprep.subr.mxu0 0.0
    %1492 = vmatpush1.msra.mxu0 0.0
    %1493 = vmatprep.subr.mxu0 0.0
    %1494 = vmatpush1.msra.mxu0 0.0
    %1495 = vmatprep.subr.mxu0 0.0
    %1496 = vmatpush1.msra.mxu0 0.0
    %1497 = vmatprep.subr.mxu0 0.0
    %1498 = vmatpush1.msra.mxu0 0.0
    %1499 = vmatprep.subr.mxu0 0.0
    %1500 = vmatpush1.msra.mxu0 0.0
    %1501 = vmatprep.subr.mxu0 0.0
    %1502 = vmatpush1.msra.mxu0 0.0
    %1503 = vmatprep.subr.mxu0 0.0
    %1504 = vmatpush1.msra.mxu0 0.0
    %1505 = vmatprep.mubr.f32.mxu0 0.0
    %1506 = vmatmul.mubr.f32.gmra.mrb[0].mxu0 %v1439
    %v1507 = vpop.f32.mrb[0].mxu0
    %v1508 = vadd.f32 %v274, %v1507
    %v1509 = vpop.f32.mrb[0].mxu0
    %1510 = vdwg.mxu0
    %v1511 = vadd.f32 %v1438, %v1508
    %v1512 = vxor.u32 %v1511, 2147483648
    %v1513 = vmul.f32 %v1512, 1.442695
    %v1514 = vpow.pop %v1513
    %v1515 = vadd.f32 %v1514, 1.0
    %v1516 = vrcp.pop %v1515
    %v1517 = vmul.f32 1.0, %v1516
    %1519 = vrot.lane.b32.xlu0 %v1508, 64
    %v1520 = vpop.permute.xlu0 %1519
    %v1522 = vmul.f32 %v1517, %v1520
    %1524 = vrot.lane.b32.xlu0 %v1522, 64
    %v1525 = vpop.permute.xlu0 %1524
    %v1527 = vadd.f32 %v1438, %v1525
    %v1528 = vtanh.pop %v1527
    %v1529 = vsub.f32 %v1432, %v1528
    %1531 = vrot.lane.b32.xlu0 %v1529, 96
    %v1532 = vpop.permute.xlu0 %1531
    %v1534 = vmul.f32 %v1517, %v1532
    %1536 = vrot.lane.b32.xlu0 %v1534, 32
    %v1537 = vpop.permute.xlu0 %1536
    %v1539 = vadd.f32 %v1528, %v1537
    %1541 = vrot.lane.b32.xlu0 %v1539, 64
    %v1542 = vpop.permute.xlu0 %1541
    %1544 = vst.msk [vmem:[#allocation4 + $0xa] sm:$0x1] %vm473, %v1542
    %v1545 = vld [vmem:[%s7] sm:$0xff]
    %v1546 = vld [vmem:[%s7 + $0x8] sm:$0xff]
    %v1547 = vld [vmem:[%s7 + $0x10] sm:$0xff]
    %v1548 = vld [vmem:[%s7 + $0x18] sm:$0xff]
    %v1549 = vld [vmem:[%s8] sm:$0xff]
    %v1550 = vld [vmem:[%s8 + $0x8] sm:$0xff]
    %v1551 = vld [vmem:[%s8 + $0x10] sm:$0xff]
    %v1552 = vld [vmem:[%s8 + $0x18] sm:$0xff]
    %v1553 = vld [vmem:[%s9] sm:$0x1]
    %v1554 = vld [vmem:[%s10] sm:$0x1]
    %v1556 = vlaneseq
    %v1557 = vshrl.u32 %v1556, 7
    %v1558 = vsub.s32 0, %v1557
    %v1559 = vrot.slane %v1553, %v1558
    %v1562 = vsel %vm110, %v262, 0
    %1564 = vmatprep.subr.mxu0 0.0
    %1565 = vmatpush1.msra.mxu0 %v1545
    %1566 = vmatprep.subr.mxu0 0.0
    %1567 = vmatpush1.msra.mxu0 %v1546
    %1568 = vmatprep.subr.mxu0 0.0
    %1569 = vmatpush1.msra.mxu0 %v1547
    %1570 = vmatprep.subr.mxu0 0.0
    %1571 = vmatpush1.msra.mxu0 %v1548
    %1572 = vmatprep.subr.mxu0 0.0
    %1573 = vmatpush1.msra.mxu0 0.0
    %1574 = vmatprep.subr.mxu0 0.0
    %1575 = vmatpush1.msra.mxu0 0.0
    %1576 = vmatprep.subr.mxu0 0.0
    %1577 = vmatpush1.msra.mxu0 0.0
    %1578 = vmatprep.subr.mxu0 0.0
    %1579 = vmatpush1.msra.mxu0 0.0
    %1580 = vmatprep.subr.mxu0 0.0
    %1581 = vmatpush1.msra.mxu0 0.0
    %1582 = vmatprep.subr.mxu0 0.0
    %1583 = vmatpush1.msra.mxu0 0.0
    %1584 = vmatprep.subr.mxu0 0.0
    %1585 = vmatpush1.msra.mxu0 0.0
    %1586 = vmatprep.subr.mxu0 0.0
    %1587 = vmatpush1.msra.mxu0 0.0
    %1588 = vmatprep.subr.mxu0 0.0
    %1589 = vmatpush1.msra.mxu0 0.0
    %1590 = vmatprep.subr.mxu0 0.0
    %1591 = vmatpush1.msra.mxu0 0.0
    %1592 = vmatprep.subr.mxu0 0.0
    %1593 = vmatpush1.msra.mxu0 0.0
    %1594 = vmatprep.subr.mxu0 0.0
    %1595 = vmatpush1.msra.mxu0 0.0
    %1596 = vmatprep.subr.mxu0 0.0
    %1597 = vmatpush1.msra.mxu0 0.0
    %1598 = vmatprep.subr.mxu0 0.0
    %1599 = vmatpush1.msra.mxu0 0.0
    %1600 = vmatprep.subr.mxu0 0.0
    %1601 = vmatpush1.msra.mxu0 0.0
    %1602 = vmatprep.subr.mxu0 0.0
    %1603 = vmatpush1.msra.mxu0 0.0
    %1604 = vmatprep.subr.mxu0 0.0
    %1605 = vmatpush1.msra.mxu0 0.0
    %1606 = vmatprep.subr.mxu0 0.0
    %1607 = vmatpush1.msra.mxu0 0.0
    %1608 = vmatprep.subr.mxu0 0.0
    %1609 = vmatpush1.msra.mxu0 0.0
    %1610 = vmatprep.subr.mxu0 0.0
    %1611 = vmatpush1.msra.mxu0 0.0
    %1612 = vmatprep.subr.mxu0 0.0
    %1613 = vmatpush1.msra.mxu0 0.0
    %1614 = vmatprep.subr.mxu0 0.0
    %1615 = vmatpush1.msra.mxu0 0.0
    %1616 = vmatprep.subr.mxu0 0.0
    %1617 = vmatpush1.msra.mxu0 0.0
    %1618 = vmatprep.subr.mxu0 0.0
    %1619 = vmatpush1.msra.mxu0 0.0
    %1620 = vmatprep.subr.mxu0 0.0
    %1621 = vmatpush1.msra.mxu0 0.0
    %1622 = vmatprep.subr.mxu0 0.0
    %1623 = vmatpush1.msra.mxu0 0.0
    %1624 = vmatprep.subr.mxu0 0.0
    %1625 = vmatpush1.msra.mxu0 0.0
    %1626 = vmatprep.subr.mxu0 0.0
    %1627 = vmatpush1.msra.mxu0 0.0
    %1628 = vmatprep.mubr.f32.mxu0 0.0
    %1629 = vmatmul.mubr.f32.gmra.mrb[0].mxu0 %v1562
    %v1630 = vpop.f32.mrb[0].mxu0
    %v1631 = vadd.f32 %v1559, %v1630
    %v1632 = vpop.f32.mrb[0].mxu0
    %1633 = vdwg.mxu0
    %1634 = vst.msk [vmem:[#allocation3] sm:$0xff] %vm362, %v1631
    %v1635 = vld [vmem:[#allocation3] sm:$0x1]
    %v1636 = vsel %vm110, %v1542, 0
    %1638 = vmatprep.subr.mxu0 0.0
    %1639 = vmatpush1.msra.mxu0 %v1549
    %1640 = vmatprep.subr.mxu0 0.0
    %1641 = vmatpush1.msra.mxu0 %v1550
    %1642 = vmatprep.subr.mxu0 0.0
    %1643 = vmatpush1.msra.mxu0 %v1551
    %1644 = vmatprep.subr.mxu0 0.0
    %1645 = vmatpush1.msra.mxu0 %v1552
    %1646 = vmatprep.subr.mxu0 0.0
    %1647 = vmatpush1.msra.mxu0 0.0
    %1648 = vmatprep.subr.mxu0 0.0
    %1649 = vmatpush1.msra.mxu0 0.0
    %1650 = vmatprep.subr.mxu0 0.0
    %1651 = vmatpush1.msra.mxu0 0.0
    %1652 = vmatprep.subr.mxu0 0.0
    %1653 = vmatpush1.msra.mxu0 0.0
    %1654 = vmatprep.subr.mxu0 0.0
    %1655 = vmatpush1.msra.mxu0 0.0
    %1656 = vmatprep.subr.mxu0 0.0
    %1657 = vmatpush1.msra.mxu0 0.0
    %1658 = vmatprep.subr.mxu0 0.0
    %1659 = vmatpush1.msra.mxu0 0.0
    %1660 = vmatprep.subr.mxu0 0.0
    %1661 = vmatpush1.msra.mxu0 0.0
    %1662 = vmatprep.subr.mxu0 0.0
    %1663 = vmatpush1.msra.mxu0 0.0
    %1664 = vmatprep.subr.mxu0 0.0
    %1665 = vmatpush1.msra.mxu0 0.0
    %1666 = vmatprep.subr.mxu0 0.0
    %1667 = vmatpush1.msra.mxu0 0.0
    %1668 = vmatprep.subr.mxu0 0.0
    %1669 = vmatpush1.msra.mxu0 0.0
    %1670 = vmatprep.subr.mxu0 0.0
    %1671 = vmatpush1.msra.mxu0 0.0
    %1672 = vmatprep.subr.mxu0 0.0
    %1673 = vmatpush1.msra.mxu0 0.0
    %1674 = vmatprep.subr.mxu0 0.0
    %1675 = vmatpush1.msra.mxu0 0.0
    %1676 = vmatprep.subr.mxu0 0.0
    %1677 = vmatpush1.msra.mxu0 0.0
    %1678 = vmatprep.subr.mxu0 0.0
    %1679 = vmatpush1.msra.mxu0 0.0
    %1680 = vmatprep.subr.mxu0 0.0
    %1681 = vmatpush1.msra.mxu0 0.0
    %1682 = vmatprep.subr.mxu0 0.0
    %1683 = vmatpush1.msra.mxu0 0.0
    %1684 = vmatprep.subr.mxu0 0.0
    %1685 = vmatpush1.msra.mxu0 0.0
    %1686 = vmatprep.subr.mxu0 0.0
    %1687 = vmatpush1.msra.mxu0 0.0
    %1688 = vmatprep.subr.mxu0 0.0
    %1689 = vmatpush1.msra.mxu0 0.0
    %1690 = vmatprep.subr.mxu0 0.0
    %1691 = vmatpush1.msra.mxu0 0.0
    %1692 = vmatprep.subr.mxu0 0.0
    %1693 = vmatpush1.msra.mxu0 0.0
    %1694 = vmatprep.subr.mxu0 0.0
    %1695 = vmatpush1.msra.mxu0 0.0
    %1696 = vmatprep.subr.mxu0 0.0
    %1697 = vmatpush1.msra.mxu0 0.0
    %1698 = vmatprep.subr.mxu0 0.0
    %1699 = vmatpush1.msra.mxu0 0.0
    %1700 = vmatprep.subr.mxu0 0.0
    %1701 = vmatpush1.msra.mxu0 0.0
    %1702 = vmatprep.mubr.f32.mxu0 0.0
    %1703 = vmatmul.mubr.f32.gmra.mrb[0].mxu0 %v1636
    %v1704 = vpop.f32.mrb[0].mxu0
    %v1705 = vadd.f32 %v1554, %v1704
    %v1706 = vpop.f32.mrb[0].mxu0
    %1707 = vdwg.mxu0
    %v1708 = vadd.f32 %v1635, %v1705
    %v1709 = vxor.u32 %v1708, 2147483648
    %v1710 = vmul.f32 %v1709, 1.442695
    %v1711 = vpow.pop %v1710
    %v1712 = vadd.f32 %v1711, 1.0
    %v1713 = vrcp.pop %v1712
    %v1714 = vmul.f32 1.0, %v1713
    %1716 = vrot.lane.b32.xlu0 %v1705, 64
    %v1717 = vpop.permute.xlu0 %1716
    %v1719 = vmul.f32 %v1714, %v1717
    %1721 = vrot.lane.b32.xlu0 %v1719, 64
    %v1722 = vpop.permute.xlu0 %1721
    %v1724 = vadd.f32 %v1635, %v1722
    %v1725 = vtanh.pop %v1724
    %v1726 = vsub.f32 %v1539, %v1725
    %1728 = vrot.lane.b32.xlu0 %v1726, 96
    %v1729 = vpop.permute.xlu0 %1728
    %v1731 = vmul.f32 %v1714, %v1729
    %1733 = vrot.lane.b32.xlu0 %v1731, 32
    %v1734 = vpop.permute.xlu0 %1733
    %v1736 = vadd.f32 %v1725, %v1734
    %1738 = vrot.lane.b32.xlu0 %v1736, 64
    %v1739 = vpop.permute.xlu0 %1738
    %1741 = vst.msk [vmem:[#allocation5] sm:$0x1] %vm473, %v1739
    %v1742 = vld [vmem:[#allocation3 + $0x1] sm:$0x1]
    %v1743 = vsel %vm110, %v1739, 0
    %1745 = vmatprep.subr.mxu0 0.0
    %1746 = vmatpush1.msra.mxu0 %v1549
    %1747 = vmatprep.subr.mxu0 0.0
    %1748 = vmatpush1.msra.mxu0 %v1550
    %1749 = vmatprep.subr.mxu0 0.0
    %1750 = vmatpush1.msra.mxu0 %v1551
    %1751 = vmatprep.subr.mxu0 0.0
    %1752 = vmatpush1.msra.mxu0 %v1552
    %1753 = vmatprep.subr.mxu0 0.0
    %1754 = vmatpush1.msra.mxu0 0.0
    %1755 = vmatprep.subr.mxu0 0.0
    %1756 = vmatpush1.msra.mxu0 0.0
    %1757 = vmatprep.subr.mxu0 0.0
    %1758 = vmatpush1.msra.mxu0 0.0
    %1759 = vmatprep.subr.mxu0 0.0
    %1760 = vmatpush1.msra.mxu0 0.0
    %1761 = vmatprep.subr.mxu0 0.0
    %1762 = vmatpush1.msra.mxu0 0.0
    %1763 = vmatprep.subr.mxu0 0.0
    %1764 = vmatpush1.msra.mxu0 0.0
    %1765 = vmatprep.subr.mxu0 0.0
    %1766 = vmatpush1.msra.mxu0 0.0
    %1767 = vmatprep.subr.mxu0 0.0
    %1768 = vmatpush1.msra.mxu0 0.0
    %1769 = vmatprep.subr.mxu0 0.0
    %1770 = vmatpush1.msra.mxu0 0.0
    %1771 = vmatprep.subr.mxu0 0.0
    %1772 = vmatpush1.msra.mxu0 0.0
    %1773 = vmatprep.subr.mxu0 0.0
    %1774 = vmatpush1.msra.mxu0 0.0
    %1775 = vmatprep.subr.mxu0 0.0
    %1776 = vmatpush1.msra.mxu0 0.0
    %1777 = vmatprep.subr.mxu0 0.0
    %1778 = vmatpush1.msra.mxu0 0.0
    %1779 = vmatprep.subr.mxu0 0.0
    %1780 = vmatpush1.msra.mxu0 0.0
    %1781 = vmatprep.subr.mxu0 0.0
    %1782 = vmatpush1.msra.mxu0 0.0
    %1783 = vmatprep.subr.mxu0 0.0
    %1784 = vmatpush1.msra.mxu0 0.0
    %1785 = vmatprep.subr.mxu0 0.0
    %1786 = vmatpush1.msra.mxu0 0.0
    %1787 = vmatprep.subr.mxu0 0.0
    %1788 = vmatpush1.msra.mxu0 0.0
    %1789 = vmatprep.subr.mxu0 0.0
    %1790 = vmatpush1.msra.mxu0 0.0
    %1791 = vmatprep.subr.mxu0 0.0
    %1792 = vmatpush1.msra.mxu0 0.0
    %1793 = vmatprep.subr.mxu0 0.0
    %1794 = vmatpush1.msra.mxu0 0.0
    %1795 = vmatprep.subr.mxu0 0.0
    %1796 = vmatpush1.msra.mxu0 0.0
    %1797 = vmatprep.subr.mxu0 0.0
    %1798 = vmatpush1.msra.mxu0 0.0
    %1799 = vmatprep.subr.mxu0 0.0
    %1800 = vmatpush1.msra.mxu0 0.0
    %1801 = vmatprep.subr.mxu0 0.0
    %1802 = vmatpush1.msra.mxu0 0.0
    %1803 = vmatprep.subr.mxu0 0.0
    %1804 = vmatpush1.msra.mxu0 0.0
    %1805 = vmatprep.subr.mxu0 0.0
    %1806 = vmatpush1.msra.mxu0 0.0
    %1807 = vmatprep.subr.mxu0 0.0
    %1808 = vmatpush1.msra.mxu0 0.0
    %1809 = vmatprep.mubr.f32.mxu0 0.0
    %1810 = vmatmul.mubr.f32.gmra.mrb[0].mxu0 %v1743
    %v1811 = vpop.f32.mrb[0].mxu0
    %v1812 = vadd.f32 %v1554, %v1811
    %v1813 = vpop.f32.mrb[0].mxu0
    %1814 = vdwg.mxu0
    %v1815 = vadd.f32 %v1742, %v1812
    %v1816 = vxor.u32 %v1815, 2147483648
    %v1817 = vmul.f32 %v1816, 1.442695
    %v1818 = vpow.pop %v1817
    %v1819 = vadd.f32 %v1818, 1.0
    %v1820 = vrcp.pop %v1819
    %v1821 = vmul.f32 1.0, %v1820
    %1823 = vrot.lane.b32.xlu0 %v1812, 64
    %v1824 = vpop.permute.xlu0 %1823
    %v1826 = vmul.f32 %v1821, %v1824
    %1828 = vrot.lane.b32.xlu0 %v1826, 64
    %v1829 = vpop.permute.xlu0 %1828
    %v1831 = vadd.f32 %v1742, %v1829
    %v1832 = vtanh.pop %v1831
    %v1833 = vsub.f32 %v1736, %v1832
    %1835 = vrot.lane.b32.xlu0 %v1833, 96
    %v1836 = vpop.permute.xlu0 %1835
    %v1838 = vmul.f32 %v1821, %v1836
    %1840 = vrot.lane.b32.xlu0 %v1838, 32
    %v1841 = vpop.permute.xlu0 %1840
    %v1843 = vadd.f32 %v1832, %v1841
    %1845 = vrot.lane.b32.xlu0 %v1843, 64
    %v1846 = vpop.permute.xlu0 %1845
    %1848 = vst.msk [vmem:[#allocation5 + $0x1] sm:$0x1] %vm473, %v1846
    %v1849 = vld [vmem:[#allocation3 + $0x2] sm:$0x1]
    %v1850 = vsel %vm110, %v1846, 0
    %1852 = vmatprep.subr.mxu0 0.0
    %1853 = vmatpush1.msra.mxu0 %v1549
    %1854 = vmatprep.subr.mxu0 0.0
    %1855 = vmatpush1.msra.mxu0 %v1550
    %1856 = vmatprep.subr.mxu0 0.0
    %1857 = vmatpush1.msra.mxu0 %v1551
    %1858 = vmatprep.subr.mxu0 0.0
    %1859 = vmatpush1.msra.mxu0 %v1552
    %1860 = vmatprep.subr.mxu0 0.0
    %1861 = vmatpush1.msra.mxu0 0.0
    %1862 = vmatprep.subr.mxu0 0.0
    %1863 = vmatpush1.msra.mxu0 0.0
    %1864 = vmatprep.subr.mxu0 0.0
    %1865 = vmatpush1.msra.mxu0 0.0
    %1866 = vmatprep.subr.mxu0 0.0
    %1867 = vmatpush1.msra.mxu0 0.0
    %1868 = vmatprep.subr.mxu0 0.0
    %1869 = vmatpush1.msra.mxu0 0.0
    %1870 = vmatprep.subr.mxu0 0.0
    %1871 = vmatpush1.msra.mxu0 0.0
    %1872 = vmatprep.subr.mxu0 0.0
    %1873 = vmatpush1.msra.mxu0 0.0
    %1874 = vmatprep.subr.mxu0 0.0
    %1875 = vmatpush1.msra.mxu0 0.0
    %1876 = vmatprep.subr.mxu0 0.0
    %1877 = vmatpush1.msra.mxu0 0.0
    %1878 = vmatprep.subr.mxu0 0.0
    %1879 = vmatpush1.msra.mxu0 0.0
    %1880 = vmatprep.subr.mxu0 0.0
    %1881 = vmatpush1.msra.mxu0 0.0
    %1882 = vmatprep.subr.mxu0 0.0
    %1883 = vmatpush1.msra.mxu0 0.0
    %1884 = vmatprep.subr.mxu0 0.0
    %1885 = vmatpush1.msra.mxu0 0.0
    %1886 = vmatprep.subr.mxu0 0.0
    %1887 = vmatpush1.msra.mxu0 0.0
    %1888 = vmatprep.subr.mxu0 0.0
    %1889 = vmatpush1.msra.mxu0 0.0
    %1890 = vmatprep.subr.mxu0 0.0
    %1891 = vmatpush1.msra.mxu0 0.0
    %1892 = vmatprep.subr.mxu0 0.0
    %1893 = vmatpush1.msra.mxu0 0.0
    %1894 = vmatprep.subr.mxu0 0.0
    %1895 = vmatpush1.msra.mxu0 0.0
    %1896 = vmatprep.subr.mxu0 0.0
    %1897 = vmatpush1.msra.mxu0 0.0
    %1898 = vmatprep.subr.mxu0 0.0
    %1899 = vmatpush1.msra.mxu0 0.0
    %1900 = vmatprep.subr.mxu0 0.0
    %1901 = vmatpush1.msra.mxu0 0.0
    %1902 = vmatprep.subr.mxu0 0.0
    %1903 = vmatpush1.msra.mxu0 0.0
    %1904 = vmatprep.subr.mxu0 0.0
    %1905 = vmatpush1.msra.mxu0 0.0
    %1906 = vmatprep.subr.mxu0 0.0
    %1907 = vmatpush1.msra.mxu0 0.0
    %1908 = vmatprep.subr.mxu0 0.0
    %1909 = vmatpush1.msra.mxu0 0.0
    %1910 = vmatprep.subr.mxu0 0.0
    %1911 = vmatpush1.msra.mxu0 0.0
    %1912 = vmatprep.subr.mxu0 0.0
    %1913 = vmatpush1.msra.mxu0 0.0
    %1914 = vmatprep.subr.mxu0 0.0
    %1915 = vmatpush1.msra.mxu0 0.0
    %1916 = vmatprep.mubr.f32.mxu0 0.0
    %1917 = vmatmul.mubr.f32.gmra.mrb[0].mxu0 %v1850
    %v1918 = vpop.f32.mrb[0].mxu0
    %v1919 = vadd.f32 %v1554, %v1918
    %v1920 = vpop.f32.mrb[0].mxu0
    %1921 = vdwg.mxu0
    %v1922 = vadd.f32 %v1849, %v1919
    %v1923 = vxor.u32 %v1922, 2147483648
    %v1924 = vmul.f32 %v1923, 1.442695
    %v1925 = vpow.pop %v1924
    %v1926 = vadd.f32 %v1925, 1.0
    %v1927 = vrcp.pop %v1926
    %v1928 = vmul.f32 1.0, %v1927
    %1930 = vrot.lane.b32.xlu0 %v1919, 64
    %v1931 = vpop.permute.xlu0 %1930
    %v1933 = vmul.f32 %v1928, %v1931
    %1935 = vrot.lane.b32.xlu0 %v1933, 64
    %v1936 = vpop.permute.xlu0 %1935
    %v1938 = vadd.f32 %v1849, %v1936
    %v1939 = vtanh.pop %v1938
    %v1940 = vsub.f32 %v1843, %v1939
    %1942 = vrot.lane.b32.xlu0 %v1940, 96
    %v1943 = vpop.permute.xlu0 %1942
    %v1945 = vmul.f32 %v1928, %v1943
    %1947 = vrot.lane.b32.xlu0 %v1945, 32
    %v1948 = vpop.permute.xlu0 %1947
    %v1950 = vadd.f32 %v1939, %v1948
    %1952 = vrot.lane.b32.xlu0 %v1950, 64
    %v1953 = vpop.permute.xlu0 %1952
    %1955 = vst.msk [vmem:[#allocation5 + $0x2] sm:$0x1] %vm473, %v1953
    %v1956 = vld [vmem:[#allocation3 + $0x3] sm:$0x1]
    %v1957 = vsel %vm110, %v1953, 0
    %1959 = vmatprep.subr.mxu0 0.0
    %1960 = vmatpush1.msra.mxu0 %v1549
    %1961 = vmatprep.subr.mxu0 0.0
    %1962 = vmatpush1.msra.mxu0 %v1550
    %1963 = vmatprep.subr.mxu0 0.0
    %1964 = vmatpush1.msra.mxu0 %v1551
    %1965 = vmatprep.subr.mxu0 0.0
    %1966 = vmatpush1.msra.mxu0 %v1552
    %1967 = vmatprep.subr.mxu0 0.0
    %1968 = vmatpush1.msra.mxu0 0.0
    %1969 = vmatprep.subr.mxu0 0.0
    %1970 = vmatpush1.msra.mxu0 0.0
    %1971 = vmatprep.subr.mxu0 0.0
    %1972 = vmatpush1.msra.mxu0 0.0
    %1973 = vmatprep.subr.mxu0 0.0
    %1974 = vmatpush1.msra.mxu0 0.0
    %1975 = vmatprep.subr.mxu0 0.0
    %1976 = vmatpush1.msra.mxu0 0.0
    %1977 = vmatprep.subr.mxu0 0.0
    %1978 = vmatpush1.msra.mxu0 0.0
    %1979 = vmatprep.subr.mxu0 0.0
    %1980 = vmatpush1.msra.mxu0 0.0
    %1981 = vmatprep.subr.mxu0 0.0
    %1982 = vmatpush1.msra.mxu0 0.0
    %1983 = vmatprep.subr.mxu0 0.0
    %1984 = vmatpush1.msra.mxu0 0.0
    %1985 = vmatprep.subr.mxu0 0.0
    %1986 = vmatpush1.msra.mxu0 0.0
    %1987 = vmatprep.subr.mxu0 0.0
    %1988 = vmatpush1.msra.mxu0 0.0
    %1989 = vmatprep.subr.mxu0 0.0
    %1990 = vmatpush1.msra.mxu0 0.0
    %1991 = vmatprep.subr.mxu0 0.0
    %1992 = vmatpush1.msra.mxu0 0.0
    %1993 = vmatprep.subr.mxu0 0.0
    %1994 = vmatpush1.msra.mxu0 0.0
    %1995 = vmatprep.subr.mxu0 0.0
    %1996 = vmatpush1.msra.mxu0 0.0
    %1997 = vmatprep.subr.mxu0 0.0
    %1998 = vmatpush1.msra.mxu0 0.0
    %1999 = vmatprep.subr.mxu0 0.0
    %2000 = vmatpush1.msra.mxu0 0.0
    %2001 = vmatprep.subr.mxu0 0.0
    %2002 = vmatpush1.msra.mxu0 0.0
    %2003 = vmatprep.subr.mxu0 0.0
    %2004 = vmatpush1.msra.mxu0 0.0
    %2005 = vmatprep.subr.mxu0 0.0
    %2006 = vmatpush1.msra.mxu0 0.0
    %2007 = vmatprep.subr.mxu0 0.0
    %2008 = vmatpush1.msra.mxu0 0.0
    %2009 = vmatprep.subr.mxu0 0.0
    %2010 = vmatpush1.msra.mxu0 0.0
    %2011 = vmatprep.subr.mxu0 0.0
    %2012 = vmatpush1.msra.mxu0 0.0
    %2013 = vmatprep.subr.mxu0 0.0
    %2014 = vmatpush1.msra.mxu0 0.0
    %2015 = vmatprep.subr.mxu0 0.0
    %2016 = vmatpush1.msra.mxu0 0.0
    %2017 = vmatprep.subr.mxu0 0.0
    %2018 = vmatpush1.msra.mxu0 0.0
    %2019 = vmatprep.subr.mxu0 0.0
    %2020 = vmatpush1.msra.mxu0 0.0
    %2021 = vmatprep.subr.mxu0 0.0
    %2022 = vmatpush1.msra.mxu0 0.0
    %2023 = vmatprep.mubr.f32.mxu0 0.0
    %2024 = vmatmul.mubr.f32.gmra.mrb[0].mxu0 %v1957
    %v2025 = vpop.f32.mrb[0].mxu0
    %v2026 = vadd.f32 %v1554, %v2025
    %v2027 = vpop.f32.mrb[0].mxu0
    %2028 = vdwg.mxu0
    %v2029 = vadd.f32 %v1956, %v2026
    %v2030 = vxor.u32 %v2029, 2147483648
    %v2031 = vmul.f32 %v2030, 1.442695
    %v2032 = vpow.pop %v2031
    %v2033 = vadd.f32 %v2032, 1.0
    %v2034 = vrcp.pop %v2033
    %v2035 = vmul.f32 1.0, %v2034
    %2037 = vrot.lane.b32.xlu0 %v2026, 64
    %v2038 = vpop.permute.xlu0 %2037
    %v2040 = vmul.f32 %v2035, %v2038
    %2042 = vrot.lane.b32.xlu0 %v2040, 64
    %v2043 = vpop.permute.xlu0 %2042
    %v2045 = vadd.f32 %v1956, %v2043
    %v2046 = vtanh.pop %v2045
    %v2047 = vsub.f32 %v1950, %v2046
    %2049 = vrot.lane.b32.xlu0 %v2047, 96
    %v2050 = vpop.permute.xlu0 %2049
    %v2052 = vmul.f32 %v2035, %v2050
    %2054 = vrot.lane.b32.xlu0 %v2052, 32
    %v2055 = vpop.permute.xlu0 %2054
    %v2057 = vadd.f32 %v2046, %v2055
    %2059 = vrot.lane.b32.xlu0 %v2057, 64
    %v2060 = vpop.permute.xlu0 %2059
    %2062 = vst.msk [vmem:[#allocation5 + $0x3] sm:$0x1] %vm473, %v2060
    %v2063 = vld [vmem:[#allocation3 + $0x4] sm:$0x1]
    %v2064 = vsel %vm110, %v2060, 0
    %2066 = vmatprep.subr.mxu0 0.0
    %2067 = vmatpush1.msra.mxu0 %v1549
    %2068 = vmatprep.subr.mxu0 0.0
    %2069 = vmatpush1.msra.mxu0 %v1550
    %2070 = vmatprep.subr.mxu0 0.0
    %2071 = vmatpush1.msra.mxu0 %v1551
    %2072 = vmatprep.subr.mxu0 0.0
    %2073 = vmatpush1.msra.mxu0 %v1552
    %2074 = vmatprep.subr.mxu0 0.0
    %2075 = vmatpush1.msra.mxu0 0.0
    %2076 = vmatprep.subr.mxu0 0.0
    %2077 = vmatpush1.msra.mxu0 0.0
    %2078 = vmatprep.subr.mxu0 0.0
    %2079 = vmatpush1.msra.mxu0 0.0
    %2080 = vmatprep.subr.mxu0 0.0
    %2081 = vmatpush1.msra.mxu0 0.0
    %2082 = vmatprep.subr.mxu0 0.0
    %2083 = vmatpush1.msra.mxu0 0.0
    %2084 = vmatprep.subr.mxu0 0.0
    %2085 = vmatpush1.msra.mxu0 0.0
    %2086 = vmatprep.subr.mxu0 0.0
    %2087 = vmatpush1.msra.mxu0 0.0
    %2088 = vmatprep.subr.mxu0 0.0
    %2089 = vmatpush1.msra.mxu0 0.0
    %2090 = vmatprep.subr.mxu0 0.0
    %2091 = vmatpush1.msra.mxu0 0.0
    %2092 = vmatprep.subr.mxu0 0.0
    %2093 = vmatpush1.msra.mxu0 0.0
    %2094 = vmatprep.subr.mxu0 0.0
    %2095 = vmatpush1.msra.mxu0 0.0
    %2096 = vmatprep.subr.mxu0 0.0
    %2097 = vmatpush1.msra.mxu0 0.0
    %2098 = vmatprep.subr.mxu0 0.0
    %2099 = vmatpush1.msra.mxu0 0.0
    %2100 = vmatprep.subr.mxu0 0.0
    %2101 = vmatpush1.msra.mxu0 0.0
    %2102 = vmatprep.subr.mxu0 0.0
    %2103 = vmatpush1.msra.mxu0 0.0
    %2104 = vmatprep.subr.mxu0 0.0
    %2105 = vmatpush1.msra.mxu0 0.0
    %2106 = vmatprep.subr.mxu0 0.0
    %2107 = vmatpush1.msra.mxu0 0.0
    %2108 = vmatprep.subr.mxu0 0.0
    %2109 = vmatpush1.msra.mxu0 0.0
    %2110 = vmatprep.subr.mxu0 0.0
    %2111 = vmatpush1.msra.mxu0 0.0
    %2112 = vmatprep.subr.mxu0 0.0
    %2113 = vmatpush1.msra.mxu0 0.0
    %2114 = vmatprep.subr.mxu0 0.0
    %2115 = vmatpush1.msra.mxu0 0.0
    %2116 = vmatprep.subr.mxu0 0.0
    %2117 = vmatpush1.msra.mxu0 0.0
    %2118 = vmatprep.subr.mxu0 0.0
    %2119 = vmatpush1.msra.mxu0 0.0
    %2120 = vmatprep.subr.mxu0 0.0
    %2121 = vmatpush1.msra.mxu0 0.0
    %2122 = vmatprep.subr.mxu0 0.0
    %2123 = vmatpush1.msra.mxu0 0.0
    %2124 = vmatprep.subr.mxu0 0.0
    %2125 = vmatpush1.msra.mxu0 0.0
    %2126 = vmatprep.subr.mxu0 0.0
    %2127 = vmatpush1.msra.mxu0 0.0
    %2128 = vmatprep.subr.mxu0 0.0
    %2129 = vmatpush1.msra.mxu0 0.0
    %2130 = vmatprep.mubr.f32.mxu0 0.0
    %2131 = vmatmul.mubr.f32.gmra.mrb[0].mxu0 %v2064
    %v2132 = vpop.f32.mrb[0].mxu0
    %v2133 = vadd.f32 %v1554, %v2132
    %v2134 = vpop.f32.mrb[0].mxu0
    %2135 = vdwg.mxu0
    %v2136 = vadd.f32 %v2063, %v2133
    %v2137 = vxor.u32 %v2136, 2147483648
    %v2138 = vmul.f32 %v2137, 1.442695
    %v2139 = vpow.pop %v2138
    %v2140 = vadd.f32 %v2139, 1.0
    %v2141 = vrcp.pop %v2140
    %v2142 = vmul.f32 1.0, %v2141
    %2144 = vrot.lane.b32.xlu0 %v2133, 64
    %v2145 = vpop.permute.xlu0 %2144
    %v2147 = vmul.f32 %v2142, %v2145
    %2149 = vrot.lane.b32.xlu0 %v2147, 64
    %v2150 = vpop.permute.xlu0 %2149
    %v2152 = vadd.f32 %v2063, %v2150
    %v2153 = vtanh.pop %v2152
    %v2154 = vsub.f32 %v2057, %v2153
    %2156 = vrot.lane.b32.xlu0 %v2154, 96
    %v2157 = vpop.permute.xlu0 %2156
    %v2159 = vmul.f32 %v2142, %v2157
    %2161 = vrot.lane.b32.xlu0 %v2159, 32
    %v2162 = vpop.permute.xlu0 %2161
    %v2164 = vadd.f32 %v2153, %v2162
    %2166 = vrot.lane.b32.xlu0 %v2164, 64
    %v2167 = vpop.permute.xlu0 %2166
    %2169 = vst.msk [vmem:[#allocation5 + $0x4] sm:$0x1] %vm473, %v2167
    %v2170 = vld [vmem:[#allocation3 + $0x5] sm:$0x1]
    %v2171 = vsel %vm110, %v2167, 0
    %2173 = vmatprep.subr.mxu0 0.0
    %2174 = vmatpush1.msra.mxu0 %v1549
    %2175 = vmatprep.subr.mxu0 0.0
    %2176 = vmatpush1.msra.mxu0 %v1550
    %2177 = vmatprep.subr.mxu0 0.0
    %2178 = vmatpush1.msra.mxu0 %v1551
    %2179 = vmatprep.subr.mxu0 0.0
    %2180 = vmatpush1.msra.mxu0 %v1552
    %2181 = vmatprep.subr.mxu0 0.0
    %2182 = vmatpush1.msra.mxu0 0.0
    %2183 = vmatprep.subr.mxu0 0.0
    %2184 = vmatpush1.msra.mxu0 0.0
    %2185 = vmatprep.subr.mxu0 0.0
    %2186 = vmatpush1.msra.mxu0 0.0
    %2187 = vmatprep.subr.mxu0 0.0
    %2188 = vmatpush1.msra.mxu0 0.0
    %2189 = vmatprep.subr.mxu0 0.0
    %2190 = vmatpush1.msra.mxu0 0.0
    %2191 = vmatprep.subr.mxu0 0.0
    %2192 = vmatpush1.msra.mxu0 0.0
    %2193 = vmatprep.subr.mxu0 0.0
    %2194 = vmatpush1.msra.mxu0 0.0
    %2195 = vmatprep.subr.mxu0 0.0
    %2196 = vmatpush1.msra.mxu0 0.0
    %2197 = vmatprep.subr.mxu0 0.0
    %2198 = vmatpush1.msra.mxu0 0.0
    %2199 = vmatprep.subr.mxu0 0.0
    %2200 = vmatpush1.msra.mxu0 0.0
    %2201 = vmatprep.subr.mxu0 0.0
    %2202 = vmatpush1.msra.mxu0 0.0
    %2203 = vmatprep.subr.mxu0 0.0
    %2204 = vmatpush1.msra.mxu0 0.0
    %2205 = vmatprep.subr.mxu0 0.0
    %2206 = vmatpush1.msra.mxu0 0.0
    %2207 = vmatprep.subr.mxu0 0.0
    %2208 = vmatpush1.msra.mxu0 0.0
    %2209 = vmatprep.subr.mxu0 0.0
    %2210 = vmatpush1.msra.mxu0 0.0
    %2211 = vmatprep.subr.mxu0 0.0
    %2212 = vmatpush1.msra.mxu0 0.0
    %2213 = vmatprep.subr.mxu0 0.0
    %2214 = vmatpush1.msra.mxu0 0.0
    %2215 = vmatprep.subr.mxu0 0.0
    %2216 = vmatpush1.msra.mxu0 0.0
    %2217 = vmatprep.subr.mxu0 0.0
    %2218 = vmatpush1.msra.mxu0 0.0
    %2219 = vmatprep.subr.mxu0 0.0
    %2220 = vmatpush1.msra.mxu0 0.0
    %2221 = vmatprep.subr.mxu0 0.0
    %2222 = vmatpush1.msra.mxu0 0.0
    %2223 = vmatprep.subr.mxu0 0.0
    %2224 = vmatpush1.msra.mxu0 0.0
    %2225 = vmatprep.subr.mxu0 0.0
    %2226 = vmatpush1.msra.mxu0 0.0
    %2227 = vmatprep.subr.mxu0 0.0
    %2228 = vmatpush1.msra.mxu0 0.0
    %2229 = vmatprep.subr.mxu0 0.0
    %2230 = vmatpush1.msra.mxu0 0.0
    %2231 = vmatprep.subr.mxu0 0.0
    %2232 = vmatpush1.msra.mxu0 0.0
    %2233 = vmatprep.subr.mxu0 0.0
    %2234 = vmatpush1.msra.mxu0 0.0
    %2235 = vmatprep.subr.mxu0 0.0
    %2236 = vmatpush1.msra.mxu0 0.0
    %2237 = vmatprep.mubr.f32.mxu0 0.0
    %2238 = vmatmul.mubr.f32.gmra.mrb[0].mxu0 %v2171
    %v2239 = vpop.f32.mrb[0].mxu0
    %v2240 = vadd.f32 %v1554, %v2239
    %v2241 = vpop.f32.mrb[0].mxu0
    %2242 = vdwg.mxu0
    %v2243 = vadd.f32 %v2170, %v2240
    %v2244 = vxor.u32 %v2243, 2147483648
    %v2245 = vmul.f32 %v2244, 1.442695
    %v2246 = vpow.pop %v2245
    %v2247 = vadd.f32 %v2246, 1.0
    %v2248 = vrcp.pop %v2247
    %v2249 = vmul.f32 1.0, %v2248
    %2251 = vrot.lane.b32.xlu0 %v2240, 64
    %v2252 = vpop.permute.xlu0 %2251
    %v2254 = vmul.f32 %v2249, %v2252
    %2256 = vrot.lane.b32.xlu0 %v2254, 64
    %v2257 = vpop.permute.xlu0 %2256
    %v2259 = vadd.f32 %v2170, %v2257
    %v2260 = vtanh.pop %v2259
    %v2261 = vsub.f32 %v2164, %v2260
    %2263 = vrot.lane.b32.xlu0 %v2261, 96
    %v2264 = vpop.permute.xlu0 %2263
    %v2266 = vmul.f32 %v2249, %v2264
    %2268 = vrot.lane.b32.xlu0 %v2266, 32
    %v2269 = vpop.permute.xlu0 %2268
    %v2271 = vadd.f32 %v2260, %v2269
    %2273 = vrot.lane.b32.xlu0 %v2271, 64
    %v2274 = vpop.permute.xlu0 %2273
    %2276 = vst.msk [vmem:[#allocation5 + $0x5] sm:$0x1] %vm473, %v2274
    %v2277 = vld [vmem:[#allocation3 + $0x6] sm:$0x1]
    %v2278 = vsel %vm110, %v2274, 0
    %2280 = vmatprep.subr.mxu0 0.0
    %2281 = vmatpush1.msra.mxu0 %v1549
    %2282 = vmatprep.subr.mxu0 0.0
    %2283 = vmatpush1.msra.mxu0 %v1550
    %2284 = vmatprep.subr.mxu0 0.0
    %2285 = vmatpush1.msra.mxu0 %v1551
    %2286 = vmatprep.subr.mxu0 0.0
    %2287 = vmatpush1.msra.mxu0 %v1552
    %2288 = vmatprep.subr.mxu0 0.0
    %2289 = vmatpush1.msra.mxu0 0.0
    %2290 = vmatprep.subr.mxu0 0.0
    %2291 = vmatpush1.msra.mxu0 0.0
    %2292 = vmatprep.subr.mxu0 0.0
    %2293 = vmatpush1.msra.mxu0 0.0
    %2294 = vmatprep.subr.mxu0 0.0
    %2295 = vmatpush1.msra.mxu0 0.0
    %2296 = vmatprep.subr.mxu0 0.0
    %2297 = vmatpush1.msra.mxu0 0.0
    %2298 = vmatprep.subr.mxu0 0.0
    %2299 = vmatpush1.msra.mxu0 0.0
    %2300 = vmatprep.subr.mxu0 0.0
    %2301 = vmatpush1.msra.mxu0 0.0
    %2302 = vmatprep.subr.mxu0 0.0
    %2303 = vmatpush1.msra.mxu0 0.0
    %2304 = vmatprep.subr.mxu0 0.0
    %2305 = vmatpush1.msra.mxu0 0.0
    %2306 = vmatprep.subr.mxu0 0.0
    %2307 = vmatpush1.msra.mxu0 0.0
    %2308 = vmatprep.subr.mxu0 0.0
    %2309 = vmatpush1.msra.mxu0 0.0
    %2310 = vmatprep.subr.mxu0 0.0
    %2311 = vmatpush1.msra.mxu0 0.0
    %2312 = vmatprep.subr.mxu0 0.0
    %2313 = vmatpush1.msra.mxu0 0.0
    %2314 = vmatprep.subr.mxu0 0.0
    %2315 = vmatpush1.msra.mxu0 0.0
    %2316 = vmatprep.subr.mxu0 0.0
    %2317 = vmatpush1.msra.mxu0 0.0
    %2318 = vmatprep.subr.mxu0 0.0
    %2319 = vmatpush1.msra.mxu0 0.0
    %2320 = vmatprep.subr.mxu0 0.0
    %2321 = vmatpush1.msra.mxu0 0.0
    %2322 = vmatprep.subr.mxu0 0.0
    %2323 = vmatpush1.msra.mxu0 0.0
    %2324 = vmatprep.subr.mxu0 0.0
    %2325 = vmatpush1.msra.mxu0 0.0
    %2326 = vmatprep.subr.mxu0 0.0
    %2327 = vmatpush1.msra.mxu0 0.0
    %2328 = vmatprep.subr.mxu0 0.0
    %2329 = vmatpush1.msra.mxu0 0.0
    %2330 = vmatprep.subr.mxu0 0.0
    %2331 = vmatpush1.msra.mxu0 0.0
    %2332 = vmatprep.subr.mxu0 0.0
    %2333 = vmatpush1.msra.mxu0 0.0
    %2334 = vmatprep.subr.mxu0 0.0
    %2335 = vmatpush1.msra.mxu0 0.0
    %2336 = vmatprep.subr.mxu0 0.0
    %2337 = vmatpush1.msra.mxu0 0.0
    %2338 = vmatprep.subr.mxu0 0.0
    %2339 = vmatpush1.msra.mxu0 0.0
    %2340 = vmatprep.subr.mxu0 0.0
    %2341 = vmatpush1.msra.mxu0 0.0
    %2342 = vmatprep.subr.mxu0 0.0
    %2343 = vmatpush1.msra.mxu0 0.0
    %2344 = vmatprep.mubr.f32.mxu0 0.0
    %2345 = vmatmul.mubr.f32.gmra.mrb[0].mxu0 %v2278
    %v2346 = vpop.f32.mrb[0].mxu0
    %v2347 = vadd.f32 %v1554, %v2346
    %v2348 = vpop.f32.mrb[0].mxu0
    %2349 = vdwg.mxu0
    %v2350 = vadd.f32 %v2277, %v2347
    %v2351 = vxor.u32 %v2350, 2147483648
    %v2352 = vmul.f32 %v2351, 1.442695
    %v2353 = vpow.pop %v2352
    %v2354 = vadd.f32 %v2353, 1.0
    %v2355 = vrcp.pop %v2354
    %v2356 = vmul.f32 1.0, %v2355
    %2358 = vrot.lane.b32.xlu0 %v2347, 64
    %v2359 = vpop.permute.xlu0 %2358
    %v2361 = vmul.f32 %v2356, %v2359
    %2363 = vrot.lane.b32.xlu0 %v2361, 64
    %v2364 = vpop.permute.xlu0 %2363
    %v2366 = vadd.f32 %v2277, %v2364
    %v2367 = vtanh.pop %v2366
    %v2368 = vsub.f32 %v2271, %v2367
    %2370 = vrot.lane.b32.xlu0 %v2368, 96
    %v2371 = vpop.permute.xlu0 %2370
    %v2373 = vmul.f32 %v2356, %v2371
    %2375 = vrot.lane.b32.xlu0 %v2373, 32
    %v2376 = vpop.permute.xlu0 %2375
    %v2378 = vadd.f32 %v2367, %v2376
    %2380 = vrot.lane.b32.xlu0 %v2378, 64
    %v2381 = vpop.permute.xlu0 %2380
    %2383 = vst.msk [vmem:[#allocation5 + $0x6] sm:$0x1] %vm473, %v2381
    %v2384 = vld [vmem:[#allocation3 + $0x7] sm:$0x1]
    %v2385 = vsel %vm110, %v2381, 0
    %2387 = vmatprep.subr.mxu0 0.0
    %2388 = vmatpush1.msra.mxu0 %v1549
    %2389 = vmatprep.subr.mxu0 0.0
    %2390 = vmatpush1.msra.mxu0 %v1550
    %2391 = vmatprep.subr.mxu0 0.0
    %2392 = vmatpush1.msra.mxu0 %v1551
    %2393 = vmatprep.subr.mxu0 0.0
    %2394 = vmatpush1.msra.mxu0 %v1552
    %2395 = vmatprep.subr.mxu0 0.0
    %2396 = vmatpush1.msra.mxu0 0.0
    %2397 = vmatprep.subr.mxu0 0.0
    %2398 = vmatpush1.msra.mxu0 0.0
    %2399 = vmatprep.subr.mxu0 0.0
    %2400 = vmatpush1.msra.mxu0 0.0
    %2401 = vmatprep.subr.mxu0 0.0
    %2402 = vmatpush1.msra.mxu0 0.0
    %2403 = vmatprep.subr.mxu0 0.0
    %2404 = vmatpush1.msra.mxu0 0.0
    %2405 = vmatprep.subr.mxu0 0.0
    %2406 = vmatpush1.msra.mxu0 0.0
    %2407 = vmatprep.subr.mxu0 0.0
    %2408 = vmatpush1.msra.mxu0 0.0
    %2409 = vmatprep.subr.mxu0 0.0
    %2410 = vmatpush1.msra.mxu0 0.0
    %2411 = vmatprep.subr.mxu0 0.0
    %2412 = vmatpush1.msra.mxu0 0.0
    %2413 = vmatprep.subr.mxu0 0.0
    %2414 = vmatpush1.msra.mxu0 0.0
    %2415 = vmatprep.subr.mxu0 0.0
    %2416 = vmatpush1.msra.mxu0 0.0
    %2417 = vmatprep.subr.mxu0 0.0
    %2418 = vmatpush1.msra.mxu0 0.0
    %2419 = vmatprep.subr.mxu0 0.0
    %2420 = vmatpush1.msra.mxu0 0.0
    %2421 = vmatprep.subr.mxu0 0.0
    %2422 = vmatpush1.msra.mxu0 0.0
    %2423 = vmatprep.subr.mxu0 0.0
    %2424 = vmatpush1.msra.mxu0 0.0
    %2425 = vmatprep.subr.mxu0 0.0
    %2426 = vmatpush1.msra.mxu0 0.0
    %2427 = vmatprep.subr.mxu0 0.0
    %2428 = vmatpush1.msra.mxu0 0.0
    %2429 = vmatprep.subr.mxu0 0.0
    %2430 = vmatpush1.msra.mxu0 0.0
    %2431 = vmatprep.subr.mxu0 0.0
    %2432 = vmatpush1.msra.mxu0 0.0
    %2433 = vmatprep.subr.mxu0 0.0
    %2434 = vmatpush1.msra.mxu0 0.0
    %2435 = vmatprep.subr.mxu0 0.0
    %2436 = vmatpush1.msra.mxu0 0.0
    %2437 = vmatprep.subr.mxu0 0.0
    %2438 = vmatpush1.msra.mxu0 0.0
    %2439 = vmatprep.subr.mxu0 0.0
    %2440 = vmatpush1.msra.mxu0 0.0
    %2441 = vmatprep.subr.mxu0 0.0
    %2442 = vmatpush1.msra.mxu0 0.0
    %2443 = vmatprep.subr.mxu0 0.0
    %2444 = vmatpush1.msra.mxu0 0.0
    %2445 = vmatprep.subr.mxu0 0.0
    %2446 = vmatpush1.msra.mxu0 0.0
    %2447 = vmatprep.subr.mxu0 0.0
    %2448 = vmatpush1.msra.mxu0 0.0
    %2449 = vmatprep.subr.mxu0 0.0
    %2450 = vmatpush1.msra.mxu0 0.0
    %2451 = vmatprep.mubr.f32.mxu0 0.0
    %2452 = vmatmul.mubr.f32.gmra.mrb[0].mxu0 %v2385
    %v2453 = vpop.f32.mrb[0].mxu0
    %v2454 = vadd.f32 %v1554, %v2453
    %v2455 = vpop.f32.mrb[0].mxu0
    %2456 = vdwg.mxu0
    %v2457 = vadd.f32 %v2384, %v2454
    %v2458 = vxor.u32 %v2457, 2147483648
    %v2459 = vmul.f32 %v2458, 1.442695
    %v2460 = vpow.pop %v2459
    %v2461 = vadd.f32 %v2460, 1.0
    %v2462 = vrcp.pop %v2461
    %v2463 = vmul.f32 1.0, %v2462
    %2465 = vrot.lane.b32.xlu0 %v2454, 64
    %v2466 = vpop.permute.xlu0 %2465
    %v2468 = vmul.f32 %v2463, %v2466
    %2470 = vrot.lane.b32.xlu0 %v2468, 64
    %v2471 = vpop.permute.xlu0 %2470
    %v2473 = vadd.f32 %v2384, %v2471
    %v2474 = vtanh.pop %v2473
    %v2475 = vsub.f32 %v2378, %v2474
    %2477 = vrot.lane.b32.xlu0 %v2475, 96
    %v2478 = vpop.permute.xlu0 %2477
    %v2480 = vmul.f32 %v2463, %v2478
    %2482 = vrot.lane.b32.xlu0 %v2480, 32
    %v2483 = vpop.permute.xlu0 %2482
    %v2485 = vadd.f32 %v2474, %v2483
    %2487 = vrot.lane.b32.xlu0 %v2485, 64
    %v2488 = vpop.permute.xlu0 %2487
    %2490 = vst.msk [vmem:[#allocation5 + $0x7] sm:$0x1] %vm473, %v2488
    %v2491 = vld [vmem:[#allocation4] sm:$0xff]
    %v2492 = vld [vmem:[#allocation4 + $0x8] sm:$0x7]
    %v2493 = vld [vmem:[#allocation5] sm:$0xff]
    %v2494 = vld [vmem:[%s11] sm:$0xff]
    %v2495 = vld [vmem:[%s11 + $0x8] sm:$0xff]
    %v2496 = vld [vmem:[%s11 + $0x10] sm:$0xff]
    %v2497 = vld [vmem:[%s11 + $0x18] sm:$0xff]
    %v2499 = vsel %vm110, %v2493, 0
    %2501 = vmatprep.subr.mxu0 0.0
    %2502 = vmatpush1.msra.mxu0 %v2494
    %2503 = vmatprep.subr.mxu0 0.0
    %2504 = vmatpush1.msra.mxu0 %v2495
    %2505 = vmatprep.subr.mxu0 0.0
    %2506 = vmatpush1.msra.mxu0 %v2496
    %2507 = vmatprep.subr.mxu0 0.0
    %2508 = vmatpush1.msra.mxu0 %v2497
    %2509 = vmatprep.subr.mxu0 0.0
    %2510 = vmatpush1.msra.mxu0 0.0
    %2511 = vmatprep.subr.mxu0 0.0
    %2512 = vmatpush1.msra.mxu0 0.0
    %2513 = vmatprep.subr.mxu0 0.0
    %2514 = vmatpush1.msra.mxu0 0.0
    %2515 = vmatprep.subr.mxu0 0.0
    %2516 = vmatpush1.msra.mxu0 0.0
    %2517 = vmatprep.subr.mxu0 0.0
    %2518 = vmatpush1.msra.mxu0 0.0
    %2519 = vmatprep.subr.mxu0 0.0
    %2520 = vmatpush1.msra.mxu0 0.0
    %2521 = vmatprep.subr.mxu0 0.0
    %2522 = vmatpush1.msra.mxu0 0.0
    %2523 = vmatprep.subr.mxu0 0.0
    %2524 = vmatpush1.msra.mxu0 0.0
    %2525 = vmatprep.subr.mxu0 0.0
    %2526 = vmatpush1.msra.mxu0 0.0
    %2527 = vmatprep.subr.mxu0 0.0
    %2528 = vmatpush1.msra.mxu0 0.0
    %2529 = vmatprep.subr.mxu0 0.0
    %2530 = vmatpush1.msra.mxu0 0.0
    %2531 = vmatprep.subr.mxu0 0.0
    %2532 = vmatpush1.msra.mxu0 0.0
    %2533 = vmatprep.subr.mxu0 0.0
    %2534 = vmatpush1.msra.mxu0 0.0
    %2535 = vmatprep.subr.mxu0 0.0
    %2536 = vmatpush1.msra.mxu0 0.0
    %2537 = vmatprep.subr.mxu0 0.0
    %2538 = vmatpush1.msra.mxu0 0.0
    %2539 = vmatprep.subr.mxu0 0.0
    %2540 = vmatpush1.msra.mxu0 0.0
    %2541 = vmatprep.subr.mxu0 0.0
    %2542 = vmatpush1.msra.mxu0 0.0
    %2543 = vmatprep.subr.mxu0 0.0
    %2544 = vmatpush1.msra.mxu0 0.0
    %2545 = vmatprep.subr.mxu0 0.0
    %2546 = vmatpush1.msra.mxu0 0.0
    %2547 = vmatprep.subr.mxu0 0.0
    %2548 = vmatpush1.msra.mxu0 0.0
    %2549 = vmatprep.subr.mxu0 0.0
    %2550 = vmatpush1.msra.mxu0 0.0
    %2551 = vmatprep.subr.mxu0 0.0
    %2552 = vmatpush1.msra.mxu0 0.0
    %2553 = vmatprep.subr.mxu0 0.0
    %2554 = vmatpush1.msra.mxu0 0.0
    %2555 = vmatprep.subr.mxu0 0.0
    %2556 = vmatpush1.msra.mxu0 0.0
    %2557 = vmatprep.subr.mxu0 0.0
    %2558 = vmatpush1.msra.mxu0 0.0
    %2559 = vmatprep.subr.mxu0 0.0
    %2560 = vmatpush1.msra.mxu0 0.0
    %2561 = vmatprep.subr.mxu0 0.0
    %2562 = vmatpush1.msra.mxu0 0.0
    %2563 = vmatprep.subr.mxu0 0.0
    %2564 = vmatpush1.msra.mxu0 0.0
    %2565 = vmatprep.mubr.f32.mxu0 0.0
    %2566 = vmatmul.mubr.f32.gmra.mrb[0].mxu0 %v2499
    %v2567 = vpop.f32.mrb[0].mxu0
    %v2568 = vadd.f32 0.0, %v2567
    %v2569 = vpop.f32.mrb[0].mxu0
    %2570 = vdwg.mxu0
    %v2572 = vsel %vm110, %v2568, 0
    %v2575 = vsel %vm110, %v2491, 0
    %v2578 = vsel %vm110, %v2492, 0
    %2580 = vmatprep.subr.mxu0 0.0
    %2581 = vmatpush1.xpose.msra.mxu0 %v2575
    %2582 = vmatprep.subr.mxu0 0.0
    %2583 = vmatpush1.xpose.msra.mxu0 %v2578
    %2584 = vmatprep.subr.mxu0 0.0
    %2585 = vmatpush1.xpose.msra.mxu0 0.0
    %2586 = vmatprep.subr.mxu0 0.0
    %2587 = vmatpush1.xpose.msra.mxu0 0.0
    %2588 = vmatprep.subr.mxu0 0.0
    %2589 = vmatpush1.xpose.msra.mxu0 0.0
    %2590 = vmatprep.subr.mxu0 0.0
    %2591 = vmatpush1.xpose.msra.mxu0 0.0
    %2592 = vmatprep.subr.mxu0 0.0
    %2593 = vmatpush1.xpose.msra.mxu0 0.0
    %2594 = vmatprep.subr.mxu0 0.0
    %2595 = vmatpush1.xpose.msra.mxu0 0.0
    %2596 = vmatprep.subr.mxu0 0.0
    %2597 = vmatpush1.xpose.msra.mxu0 0.0
    %2598 = vmatprep.subr.mxu0 0.0
    %2599 = vmatpush1.xpose.msra.mxu0 0.0
    %2600 = vmatprep.subr.mxu0 0.0
    %2601 = vmatpush1.xpose.msra.mxu0 0.0
    %2602 = vmatprep.subr.mxu0 0.0
    %2603 = vmatpush1.xpose.msra.mxu0 0.0
    %2604 = vmatprep.subr.mxu0 0.0
    %2605 = vmatpush1.xpose.msra.mxu0 0.0
    %2606 = vmatprep.subr.mxu0 0.0
    %2607 = vmatpush1.xpose.msra.mxu0 0.0
    %2608 = vmatprep.subr.mxu0 0.0
    %2609 = vmatpush1.xpose.msra.mxu0 0.0
    %2610 = vmatprep.subr.mxu0 0.0
    %2611 = vmatpush1.xpose.msra.mxu0 0.0
    %2612 = vmatprep.subr.mxu0 0.0
    %2613 = vmatpush1.xpose.msra.mxu0 0.0
    %2614 = vmatprep.subr.mxu0 0.0
    %2615 = vmatpush1.xpose.msra.mxu0 0.0
    %2616 = vmatprep.subr.mxu0 0.0
    %2617 = vmatpush1.xpose.msra.mxu0 0.0
    %2618 = vmatprep.subr.mxu0 0.0
    %2619 = vmatpush1.xpose.msra.mxu0 0.0
    %2620 = vmatprep.subr.mxu0 0.0
    %2621 = vmatpush1.xpose.msra.mxu0 0.0
    %2622 = vmatprep.subr.mxu0 0.0
    %2623 = vmatpush1.xpose.msra.mxu0 0.0
    %2624 = vmatprep.subr.mxu0 0.0
    %2625 = vmatpush1.xpose.msra.mxu0 0.0
    %2626 = vmatprep.subr.mxu0 0.0
    %2627 = vmatpush1.xpose.msra.mxu0 0.0
    %2628 = vmatprep.subr.mxu0 0.0
    %2629 = vmatpush1.xpose.msra.mxu0 0.0
    %2630 = vmatprep.subr.mxu0 0.0
    %2631 = vmatpush1.xpose.msra.mxu0 0.0
    %2632 = vmatprep.subr.mxu0 0.0
    %2633 = vmatpush1.xpose.msra.mxu0 0.0
    %2634 = vmatprep.subr.mxu0 0.0
    %2635 = vmatpush1.xpose.msra.mxu0 0.0
    %2636 = vmatprep.subr.mxu0 0.0
    %2637 = vmatpush1.xpose.msra.mxu0 0.0
    %2638 = vmatprep.subr.mxu0 0.0
    %2639 = vmatpush1.xpose.msra.mxu0 0.0
    %2640 = vmatprep.subr.mxu0 0.0
    %2641 = vmatpush1.xpose.msra.mxu0 0.0
    %2642 = vmatprep.subr.mxu0 0.0
    %2643 = vmatpush1.xpose.msra.mxu0 0.0
    %2644 = vmatprep.mubr.f32.mxu0 0.0
    %2645 = vmatmul.mubr.f32.gmra.mrb[0].mxu0 %v2572
    %v2646 = vpop.f32.mrb[0].mxu0
    %v2647 = vadd.f32 0.0, %v2646
    %v2648 = vpop.f32.mrb[0].mxu0
    %2649 = vdwg.mxu0
    %vm2650 = vcmask 89088
    %v2651 = vsel %vm2650, %v2647, -inf
    %2652 = vmax.xlane.f32.xlu0 %v2651
    %v2653 = vpop.xlane.xlu0 %2652
    %v2654 = vsub.f32 %v2647, %v2653
    %v2655 = vmul.f32 %v2654, 1.442695
    %v2656 = vpow.pop %v2655
    %v2657 = vsel %vm2650, %v2656, 0.0
    %2658 = vadd.xlane.f32.xlu0 %v2657
    %v2659 = vpop.xlane.xlu0 %2658
    %v2660 = vrcp.pop %v2659
    %v2661 = vmul.f32 %v2656, %v2660
    %v2663 = vsel %vm2650, %v2661, 0
    %vm2665 = vcmask 1042432
    %v2666 = vsel %vm2665, %v2492, 0
    %2668 = vmatprep.subr.mxu0 0.0
    %2669 = vmatpush1.msra.mxu0 %v2491
    %2670 = vmatprep.subr.mxu0 0.0
    %2671 = vmatpush1.msra.mxu0 %v2666
    %2672 = vmatprep.subr.mxu0 0.0
    %2673 = vmatpush1.msra.mxu0 0.0
    %2674 = vmatprep.subr.mxu0 0.0
    %2675 = vmatpush1.msra.mxu0 0.0
    %2676 = vmatprep.subr.mxu0 0.0
    %2677 = vmatpush1.msra.mxu0 0.0
    %2678 = vmatprep.subr.mxu0 0.0
    %2679 = vmatpush1.msra.mxu0 0.0
    %2680 = vmatprep.subr.mxu0 0.0
    %2681 = vmatpush1.msra.mxu0 0.0
    %2682 = vmatprep.subr.mxu0 0.0
    %2683 = vmatpush1.msra.mxu0 0.0
    %2684 = vmatprep.subr.mxu0 0.0
    %2685 = vmatpush1.msra.mxu0 0.0
    %2686 = vmatprep.subr.mxu0 0.0
    %2687 = vmatpush1.msra.mxu0 0.0
    %2688 = vmatprep.subr.mxu0 0.0
    %2689 = vmatpush1.msra.mxu0 0.0
    %2690 = vmatprep.subr.mxu0 0.0
    %2691 = vmatpush1.msra.mxu0 0.0
    %2692 = vmatprep.subr.mxu0 0.0
    %2693 = vmatpush1.msra.mxu0 0.0
    %2694 = vmatprep.subr.mxu0 0.0
    %2695 = vmatpush1.msra.mxu0 0.0
    %2696 = vmatprep.subr.mxu0 0.0
    %2697 = vmatpush1.msra.mxu0 0.0
    %2698 = vmatprep.subr.mxu0 0.0
    %2699 = vmatpush1.msra.mxu0 0.0
    %2700 = vmatprep.subr.mxu0 0.0
    %2701 = vmatpush1.msra.mxu0 0.0
    %2702 = vmatprep.subr.mxu0 0.0
    %2703 = vmatpush1.msra.mxu0 0.0
    %2704 = vmatprep.subr.mxu0 0.0
    %2705 = vmatpush1.msra.mxu0 0.0
    %2706 = vmatprep.subr.mxu0 0.0
    %2707 = vmatpush1.msra.mxu0 0.0
    %2708 = vmatprep.subr.mxu0 0.0
    %2709 = vmatpush1.msra.mxu0 0.0
    %2710 = vmatprep.subr.mxu0 0.0
    %2711 = vmatpush1.msra.mxu0 0.0
    %2712 = vmatprep.subr.mxu0 0.0
    %2713 = vmatpush1.msra.mxu0 0.0
    %2714 = vmatprep.subr.mxu0 0.0
    %2715 = vmatpush1.msra.mxu0 0.0
    %2716 = vmatprep.subr.mxu0 0.0
    %2717 = vmatpush1.msra.mxu0 0.0
    %2718 = vmatprep.subr.mxu0 0.0
    %2719 = vmatpush1.msra.mxu0 0.0
    %2720 = vmatprep.subr.mxu0 0.0
    %2721 = vmatpush1.msra.mxu0 0.0
    %2722 = vmatprep.subr.mxu0 0.0
    %2723 = vmatpush1.msra.mxu0 0.0
    %2724 = vmatprep.subr.mxu0 0.0
    %2725 = vmatpush1.msra.mxu0 0.0
    %2726 = vmatprep.subr.mxu0 0.0
    %2727 = vmatpush1.msra.mxu0 0.0
    %2728 = vmatprep.subr.mxu0 0.0
    %2729 = vmatpush1.msra.mxu0 0.0
    %2730 = vmatprep.subr.mxu0 0.0
    %2731 = vmatpush1.msra.mxu0 0.0
    %2732 = vmatprep.mubr.f32.mxu0 0.0
    %2733 = vmatmul.mubr.f32.gmra.mrb[0].mxu0 %v2663
    %v2734 = vpop.f32.mrb[0].mxu0
    %v2735 = vadd.f32 0.0, %v2734
    %v2736 = vpop.f32.mrb[0].mxu0
    %2737 = vdwg.mxu0
    %v2738 = vld [vmem:[%s12] sm:$0xff]
    %v2739 = vld [vmem:[%s12 + $0x8] sm:$0xff]
    %v2740 = vld [vmem:[%s12 + $0x10] sm:$0xff]
    %v2741 = vld [vmem:[%s12 + $0x18] sm:$0xff]
    %v2742 = vld [vmem:[%s13] sm:$0xff]
    %v2743 = vld [vmem:[%s13 + $0x8] sm:$0xff]
    %v2744 = vld [vmem:[%s13 + $0x10] sm:$0xff]
    %v2745 = vld [vmem:[%s13 + $0x18] sm:$0xff]
    %2746 = vmatprep.subr.mxu0 0.0
    %2747 = vmatpush1.msra.mxu0 %v2742
    %2748 = vmatprep.subr.mxu0 0.0
    %2749 = vmatpush1.msra.mxu0 %v2743
    %2750 = vmatprep.subr.mxu0 0.0
    %2751 = vmatpush1.msra.mxu0 %v2744
    %2752 = vmatprep.subr.mxu0 0.0
    %2753 = vmatpush1.msra.mxu0 %v2745
    %2754 = vmatprep.subr.mxu0 0.0
    %2755 = vmatpush1.msra.mxu0 0.0
    %2756 = vmatprep.subr.mxu0 0.0
    %2757 = vmatpush1.msra.mxu0 0.0
    %2758 = vmatprep.subr.mxu0 0.0
    %2759 = vmatpush1.msra.mxu0 0.0
    %2760 = vmatprep.subr.mxu0 0.0
    %2761 = vmatpush1.msra.mxu0 0.0
    %2762 = vmatprep.subr.mxu0 0.0
    %2763 = vmatpush1.msra.mxu0 0.0
    %2764 = vmatprep.subr.mxu0 0.0
    %2765 = vmatpush1.msra.mxu0 0.0
    %2766 = vmatprep.subr.mxu0 0.0
    %2767 = vmatpush1.msra.mxu0 0.0
    %2768 = vmatprep.subr.mxu0 0.0
    %2769 = vmatpush1.msra.mxu0 0.0
    %2770 = vmatprep.subr.mxu0 0.0
    %2771 = vmatpush1.msra.mxu0 0.0
    %2772 = vmatprep.subr.mxu0 0.0
    %2773 = vmatpush1.msra.mxu0 0.0
    %2774 = vmatprep.subr.mxu0 0.0
    %2775 = vmatpush1.msra.mxu0 0.0
    %2776 = vmatprep.subr.mxu0 0.0
    %2777 = vmatpush1.msra.mxu0 0.0
    %2778 = vmatprep.subr.mxu0 0.0
    %2779 = vmatpush1.msra.mxu0 0.0
    %2780 = vmatprep.subr.mxu0 0.0
    %2781 = vmatpush1.msra.mxu0 0.0
    %2782 = vmatprep.subr.mxu0 0.0
    %2783 = vmatpush1.msra.mxu0 0.0
    %2784 = vmatprep.subr.mxu0 0.0
    %2785 = vmatpush1.msra.mxu0 0.0
    %2786 = vmatprep.subr.mxu0 0.0
    %2787 = vmatpush1.msra.mxu0 0.0
    %2788 = vmatprep.subr.mxu0 0.0
    %2789 = vmatpush1.msra.mxu0 0.0
    %2790 = vmatprep.subr.mxu0 0.0
    %2791 = vmatpush1.msra.mxu0 0.0
    %2792 = vmatprep.subr.mxu0 0.0
    %2793 = vmatpush1.msra.mxu0 0.0
    %2794 = vmatprep.subr.mxu0 0.0
    %2795 = vmatpush1.msra.mxu0 0.0
    %2796 = vmatprep.subr.mxu0 0.0
    %2797 = vmatpush1.msra.mxu0 0.0
    %2798 = vmatprep.subr.mxu0 0.0
    %2799 = vmatpush1.msra.mxu0 0.0
    %2800 = vmatprep.subr.mxu0 0.0
    %2801 = vmatpush1.msra.mxu0 0.0
    %2802 = vmatprep.subr.mxu0 0.0
    %2803 = vmatpush1.msra.mxu0 0.0
    %2804 = vmatprep.subr.mxu0 0.0
    %2805 = vmatpush1.msra.mxu0 0.0
    %2806 = vmatprep.subr.mxu0 0.0
    %2807 = vmatpush1.msra.mxu0 0.0
    %2808 = vmatprep.subr.mxu0 0.0
    %2809 = vmatpush1.msra.mxu0 0.0
    %2810 = vmatprep.mubr.f32.mxu0 0.0
    %2811 = vmatmul.mubr.f32.gmra.mrb[0].mxu0 %v2499
    %v2812 = vpop.f32.mrb[0].mxu0
    %v2813 = vadd.f32 0.0, %v2812
    %v2814 = vpop.f32.mrb[0].mxu0
    %2815 = vdwg.mxu0
    %v2817 = vsel %vm110, %v2735, 0
    %2819 = vmatprep.subr.mxu0 0.0
    %2820 = vmatpush1.msra.mxu0 %v2738
    %2821 = vmatprep.subr.mxu0 0.0
    %2822 = vmatpush1.msra.mxu0 %v2739
    %2823 = vmatprep.subr.mxu0 0.0
    %2824 = vmatpush1.msra.mxu0 %v2740
    %2825 = vmatprep.subr.mxu0 0.0
    %2826 = vmatpush1.msra.mxu0 %v2741
    %2827 = vmatprep.subr.mxu0 0.0
    %2828 = vmatpush1.msra.mxu0 0.0
    %2829 = vmatprep.subr.mxu0 0.0
    %2830 = vmatpush1.msra.mxu0 0.0
    %2831 = vmatprep.subr.mxu0 0.0
    %2832 = vmatpush1.msra.mxu0 0.0
    %2833 = vmatprep.subr.mxu0 0.0
    %2834 = vmatpush1.msra.mxu0 0.0
    %2835 = vmatprep.subr.mxu0 0.0
    %2836 = vmatpush1.msra.mxu0 0.0
    %2837 = vmatprep.subr.mxu0 0.0
    %2838 = vmatpush1.msra.mxu0 0.0
    %2839 = vmatprep.subr.mxu0 0.0
    %2840 = vmatpush1.msra.mxu0 0.0
    %2841 = vmatprep.subr.mxu0 0.0
    %2842 = vmatpush1.msra.mxu0 0.0
    %2843 = vmatprep.subr.mxu0 0.0
    %2844 = vmatpush1.msra.mxu0 0.0
    %2845 = vmatprep.subr.mxu0 0.0
    %2846 = vmatpush1.msra.mxu0 0.0
    %2847 = vmatprep.subr.mxu0 0.0
    %2848 = vmatpush1.msra.mxu0 0.0
    %2849 = vmatprep.subr.mxu0 0.0
    %2850 = vmatpush1.msra.mxu0 0.0
    %2851 = vmatprep.subr.mxu0 0.0
    %2852 = vmatpush1.msra.mxu0 0.0
    %2853 = vmatprep.subr.mxu0 0.0
    %2854 = vmatpush1.msra.mxu0 0.0
    %2855 = vmatprep.subr.mxu0 0.0
    %2856 = vmatpush1.msra.mxu0 0.0
    %2857 = vmatprep.subr.mxu0 0.0
    %2858 = vmatpush1.msra.mxu0 0.0
    %2859 = vmatprep.subr.mxu0 0.0
    %2860 = vmatpush1.msra.mxu0 0.0
    %2861 = vmatprep.subr.mxu0 0.0
    %2862 = vmatpush1.msra.mxu0 0.0
    %2863 = vmatprep.subr.mxu0 0.0
    %2864 = vmatpush1.msra.mxu0 0.0
    %2865 = vmatprep.subr.mxu0 0.0
    %2866 = vmatpush1.msra.mxu0 0.0
    %2867 = vmatprep.subr.mxu0 0.0
    %2868 = vmatpush1.msra.mxu0 0.0
    %2869 = vmatprep.subr.mxu0 0.0
    %2870 = vmatpush1.msra.mxu0 0.0
    %2871 = vmatprep.subr.mxu0 0.0
    %2872 = vmatpush1.msra.mxu0 0.0
    %2873 = vmatprep.subr.mxu0 0.0
    %2874 = vmatpush1.msra.mxu0 0.0
    %2875 = vmatprep.subr.mxu0 0.0
    %2876 = vmatpush1.msra.mxu0 0.0
    %2877 = vmatprep.subr.mxu0 0.0
    %2878 = vmatpush1.msra.mxu0 0.0
    %2879 = vmatprep.subr.mxu0 0.0
    %2880 = vmatpush1.msra.mxu0 0.0
    %2881 = vmatprep.subr.mxu0 0.0
    %2882 = vmatpush1.msra.mxu0 0.0
    %2883 = vmatprep.mubr.f32.mxu0 0.0
    %2884 = vmatmul.mubr.f32.gmra.mrb[0].mxu0 %v2817
    %v2885 = vpop.f32.mrb[0].mxu0
    %v2886 = vadd.f32 %v2813, %v2885
    %v2887 = vpop.f32.mrb[0].mxu0
    %2888 = vdwg.mxu0
    %v2889 = vld [vmem:[%s14] sm:$0x1]
    %v2891 = vlaneseq
    %v2892 = vshrl.u32 %v2891, 7
    %v2893 = vsub.s32 0, %v2892
    %v2894 = vrot.slane %v2889, %v2893
    %v2896 = vadd.f32 %v2886, %v2894
    %v2897 = vtanh.pop %v2896
    %v2898 = vld [vmem:[%s15] sm:$0xff]
    %v2899 = vld [vmem:[%s15 + $0x8] sm:$0xff]
    %v2900 = vld [vmem:[%s15 + $0x10] sm:$0xff]
    %v2901 = vld [vmem:[%s15 + $0x18] sm:$0xff]
    %v2902 = vld [vmem:[%s16] sm:$0x1]
    %v2904 = vlaneseq
    %v2905 = vshrl.u32 %v2904, 7
    %v2906 = vsub.s32 0, %v2905
    %v2907 = vrot.slane %v2902, %v2906
    %v2910 = vsel %vm110, %v2897, 0
    %2912 = vmatprep.subr.mxu0 0.0
    %2913 = vmatpush1.msra.mxu0 %v2898
    %2914 = vmatprep.subr.mxu0 0.0
    %2915 = vmatpush1.msra.mxu0 %v2899
    %2916 = vmatprep.subr.mxu0 0.0
    %2917 = vmatpush1.msra.mxu0 %v2900
    %2918 = vmatprep.subr.mxu0 0.0
    %2919 = vmatpush1.msra.mxu0 %v2901
    %2920 = vmatprep.subr.mxu0 0.0
    %2921 = vmatpush1.msra.mxu0 0.0
    %2922 = vmatprep.subr.mxu0 0.0
    %2923 = vmatpush1.msra.mxu0 0.0
    %2924 = vmatprep.subr.mxu0 0.0
    %2925 = vmatpush1.msra.mxu0 0.0
    %2926 = vmatprep.subr.mxu0 0.0
    %2927 = vmatpush1.msra.mxu0 0.0
    %2928 = vmatprep.subr.mxu0 0.0
    %2929 = vmatpush1.msra.mxu0 0.0
    %2930 = vmatprep.subr.mxu0 0.0
    %2931 = vmatpush1.msra.mxu0 0.0
    %2932 = vmatprep.subr.mxu0 0.0
    %2933 = vmatpush1.msra.mxu0 0.0
    %2934 = vmatprep.subr.mxu0 0.0
    %2935 = vmatpush1.msra.mxu0 0.0
    %2936 = vmatprep.subr.mxu0 0.0
    %2937 = vmatpush1.msra.mxu0 0.0
    %2938 = vmatprep.subr.mxu0 0.0
    %2939 = vmatpush1.msra.mxu0 0.0
    %2940 = vmatprep.subr.mxu0 0.0
    %2941 = vmatpush1.msra.mxu0 0.0
    %2942 = vmatprep.subr.mxu0 0.0
    %2943 = vmatpush1.msra.mxu0 0.0
    %2944 = vmatprep.subr.mxu0 0.0
    %2945 = vmatpush1.msra.mxu0 0.0
    %2946 = vmatprep.subr.mxu0 0.0
    %2947 = vmatpush1.msra.mxu0 0.0
    %2948 = vmatprep.subr.mxu0 0.0
    %2949 = vmatpush1.msra.mxu0 0.0
    %2950 = vmatprep.subr.mxu0 0.0
    %2951 = vmatpush1.msra.mxu0 0.0
    %2952 = vmatprep.subr.mxu0 0.0
    %2953 = vmatpush1.msra.mxu0 0.0
    %2954 = vmatprep.subr.mxu0 0.0
    %2955 = vmatpush1.msra.mxu0 0.0
    %2956 = vmatprep.subr.mxu0 0.0
    %2957 = vmatpush1.msra.mxu0 0.0
    %2958 = vmatprep.subr.mxu0 0.0
    %2959 = vmatpush1.msra.mxu0 0.0
    %2960 = vmatprep.subr.mxu0 0.0
    %2961 = vmatpush1.msra.mxu0 0.0
    %2962 = vmatprep.subr.mxu0 0.0
    %2963 = vmatpush1.msra.mxu0 0.0
    %2964 = vmatprep.subr.mxu0 0.0
    %2965 = vmatpush1.msra.mxu0 0.0
    %2966 = vmatprep.subr.mxu0 0.0
    %2967 = vmatpush1.msra.mxu0 0.0
    %2968 = vmatprep.subr.mxu0 0.0
    %2969 = vmatpush1.msra.mxu0 0.0
    %2970 = vmatprep.subr.mxu0 0.0
    %2971 = vmatpush1.msra.mxu0 0.0
    %2972 = vmatprep.subr.mxu0 0.0
    %2973 = vmatpush1.msra.mxu0 0.0
    %2974 = vmatprep.subr.mxu0 0.0
    %2975 = vmatpush1.msra.mxu0 0.0
    %2976 = vmatprep.mubr.f32.mxu0 0.0
    %2977 = vmatmul.mubr.f32.gmra.mrb[0].mxu0 %v2910
    %v2978 = vpop.f32.mrb[0].mxu0
    %v2979 = vadd.f32 %v2907, %v2978
    %v2980 = vpop.f32.mrb[0].mxu0
    %2981 = vdwg.mxu0
    %2982 = vmax.xlane.f32.xlu0 %v2979
    %v2983 = vpop.xlane.xlu0 %2982
    %v2984 = vsub.f32 %v2979, %v2983
    %v2985 = vmul.f32 %v2984, 1.442695
    %v2986 = vpow.pop %v2985
    %2987 = vadd.xlane.f32.xlu0 %v2986
    %v2988 = vpop.xlane.xlu0 %2987
    %v2989 = vlog2.pop %v2988
    %v2990 = vmul.f32 %v2989, 0.6931472
    %v2991 = vadd.f32 %v2990, %v2983
    %v2992 = vsub.f32 %v2979, %v2991
    %2993 = vst [vmem:[#allocation6] sm:$0xff] %v2992
    // Predicated region
    $region70: #{poet_gen_forward.1} parent=1 // pred_check
      _
    $region71: #{poet_gen_forward.1} parent=1 // pred_check_branch
      %2995 = sbr.rel (0) target = $region73
    $region72: #{poet_gen_forward.1} parent=1 // pred_region
      %s2997 = ssub.s32 128, 128
      %2998 = vsyncadd [#allocation7], %s2997
      %s3000 = sshll.u32 [#allocation6], 4
      %s3001 = int_to_ptr.vmem [resolvable:$true] %s3000
      %3003 = dma.vmem_to_hbm [thread:$0]  %s3001, 128, %s17, [#allocation7]
    $region73: #{poet_gen_forward.1} parent=1 // pred_fallthru
      _
    // Predicated region
    $region74: #{poet_gen_forward.1} parent=1 // pred_check
      _
    $region75: #{poet_gen_forward.1} parent=1 // pred_check_branch
      %3005 = sbr.rel (0) target = $region77
    $region76: #{poet_gen_forward.1} parent=1 // pred_region
      %3006 = dma.done [#allocation7], 128
    $region77: #{poet_gen_forward.1} parent=1 // pred_fallthru
      _
    %3007 = vsyncpa [#allocation7], 1

</llo_original>
